<compile_context>
chip_gen: v5e
topology: v5e:2x2
jax: 0.10.0
libtpu: 0.0.40
codegen_flags: <defaults>
</compile_context>

<pallas_src>
import functools

import jax
import jax.numpy as jnp
from jax.experimental import pallas as pl
from jax.experimental.pallas import tpu as pltpu

K1 = 20
K2 = 6
LAMBDA = 0.3
MARGIN = 0.03

_VMEM_LIMIT = 32 * 1024 * 1024  # safe on v5e/v6e (128 MiB) and v7x (64 MiB)


# ------------------------------------------------------------------ helpers --
def _round_up(x, m):
    return ((x + m - 1) // m) * m


def _pad2(a, rows, cols, value=0):
    pr = rows - a.shape[0]
    pc = cols - a.shape[1]
    if pr == 0 and pc == 0:
        return a
    return jnp.pad(a, ((0, pr), (0, pc)), constant_values=value)


# ----------------------------------------------------- pairwise distance ----
def _pdist_kernel(a_ref, bt_ref, sr_ref, sc_ref, o_ref, acc_ref):
    k = pl.program_id(2)

    @pl.when(k == 0)
    def _():
        acc_ref[...] = jnp.zeros_like(acc_ref)

    acc_ref[...] += jnp.dot(a_ref[...], bt_ref[...],
                            preferred_element_type=jnp.float32)

    @pl.when(k == pl.num_programs(2) - 1)
    def _():
        d = sr_ref[...] + sc_ref[...] - 2.0 * acc_ref[...]
        o_ref[...] = jnp.maximum(d, 0.0)   # clamp cancellation negatives


def pairwise_distance(x, *, bmn=256, bk=128):
    """Squared Euclidean distance matrix (N, N), tiled MXU kernel."""
    n, d = x.shape
    npad = _round_up(n, bmn)
    kpad = _round_up(d, bk)
    x32 = x.astype(jnp.float32)           # keep features in f32 (numerics)
    xp = _pad2(x32, npad, kpad)           # (NP, KP)
    xt = xp.T                             # (KP, NP) pre-transposed for MXU
    sq = jnp.sum(xp * xp, axis=1)         # (NP,)
    sr = sq[:, None]                      # (NP, 1)
    sc = sq[None, :]                      # (1, NP)

    out = pl.pallas_call(
        _pdist_kernel,
        grid=(npad // bmn, npad // bmn, kpad // bk),
        in_specs=[
            pl.BlockSpec((bmn, bk), lambda i, j, k: (i, k)),
            pl.BlockSpec((bk, bmn), lambda i, j, k: (k, j)),
            pl.BlockSpec((bmn, 1), lambda i, j, k: (i, 0)),
            pl.BlockSpec((1, bmn), lambda i, j, k: (0, j)),
        ],
        out_specs=pl.BlockSpec((bmn, bmn), lambda i, j, k: (i, j)),
        out_shape=jax.ShapeDtypeStruct((npad, npad), jnp.float32),
        scratch_shapes=[pltpu.VMEM((bmn, bmn), jnp.float32)],
        compiler_params=pltpu.CompilerParams(
            dimension_semantics=("parallel", "parallel", "arbitrary"),
            vmem_limit_bytes=_VMEM_LIMIT),
    )(xp, xt, sr, sc)
    return out[:n, :n]


# ------------------------------------------------------------ tiled matmul --
def _matmul_kernel(a_ref, b_ref, o_ref, acc_ref, *, scale):
    k = pl.program_id(2)

    @pl.when(k == 0)
    def _():
        acc_ref[...] = jnp.zeros_like(acc_ref)

    acc_ref[...] += jnp.dot(a_ref[...], b_ref[...],
                            preferred_element_type=jnp.float32)

    @pl.when(k == pl.num_programs(2) - 1)
    def _():
        o_ref[...] = acc_ref[...] * scale


def pallas_matmul(a, b, *, scale=1.0, operand_dtype=jnp.bfloat16,
                  bm=256, bn=256, bk=256):
    """Tiled MXU matmul with f32 accumulation and fused output scale.

    For exact 0/1 mask operands pass operand_dtype=bf16 (exact, 2x MXU rate);
    for real-valued operands pass operand_dtype=f32.
    """
    m, k = a.shape
    kb, n = b.shape
    assert k == kb
    mp, np_, kp = _round_up(m, bm), _round_up(n, bn), _round_up(k, bk)
    a_p = _pad2(a.astype(operand_dtype), mp, kp)
    b_p = _pad2(b.astype(operand_dtype), kp, np_)

    out = pl.pallas_call(
        functools.partial(_matmul_kernel, scale=float(scale)),
        grid=(mp // bm, np_ // bn, kp // bk),
        in_specs=[
            pl.BlockSpec((bm, bk), lambda i, j, kk: (i, kk)),
            pl.BlockSpec((bk, bn), lambda i, j, kk: (kk, j)),
        ],
        out_specs=pl.BlockSpec((bm, bn), lambda i, j, kk: (i, j)),
        out_shape=jax.ShapeDtypeStruct((mp, np_), jnp.float32),
        scratch_shapes=[pltpu.VMEM((bm, bn), jnp.float32)],
        compiler_params=pltpu.CompilerParams(
            dimension_semantics=("parallel", "parallel", "arbitrary"),
            vmem_limit_bytes=_VMEM_LIMIT),
    )(a_p, b_p)
    return out[:m, :n]


# --------------------------------------- exp(-dist) weighting + row norm ----
def _vnorm_kernel(e_ref, d_ref, o_ref):
    w = jnp.where(e_ref[...] > 0.5, jnp.exp(-d_ref[...]), 0.0)
    s = jnp.sum(w, axis=1, keepdims=True)
    o_ref[...] = jnp.where(s > 0.0, w / s, 0.0)   # guard padded (all-zero) rows


def weighted_rows(expanded_f, dist, *, bm=128):
    """V[i, :] = exp(-dist[i, :]) * expanded[i, :] / row_sum  (fused in one pass)."""
    n = dist.shape[0]
    rp = _round_up(n, bm)
    cp = _round_up(n, 128)
    e_p = _pad2(expanded_f.astype(jnp.float32), rp, cp)
    d_p = _pad2(dist, rp, cp)
    out = pl.pallas_call(
        _vnorm_kernel,
        grid=(rp // bm,),
        in_specs=[pl.BlockSpec((bm, cp), lambda i: (i, 0)),
                  pl.BlockSpec((bm, cp), lambda i: (i, 0))],
        out_specs=pl.BlockSpec((bm, cp), lambda i: (i, 0)),
        out_shape=jax.ShapeDtypeStruct((rp, cp), jnp.float32),
        compiler_params=pltpu.CompilerParams(
            dimension_semantics=("parallel",),
            vmem_limit_bytes=_VMEM_LIMIT),
    )(e_p, d_p)
    return out[:n, :n]


# --------------------------------- jaccard min-sum + blend (the O(N^3) op) --
def _jaccard_kernel(vq_ref, v_ref, dq_ref, o_ref, acc_ref, *, lam):
    c = pl.program_id(2)

    @pl.when(c == 0)
    def _():
        acc_ref[...] = jnp.zeros_like(acc_ref)

    v = v_ref[...]                                       # (tl, tc)

    # Stream over the tq query rows: per row, min against the whole (tl, tc)
    # V tile and reduce over c — never materializes a (tq, tl, tc) broadcast.
    def body(i, carry):
        row = vq_ref[pl.ds(i, 1), :]                     # (1, tc)
        part = jnp.sum(jnp.minimum(row, v), axis=1)      # (tl,)
        acc_ref[pl.ds(i, 1), :] += part[None, :]
        return carry

    jax.lax.fori_loop(0, vq_ref.shape[0], body, 0)

    @pl.when(c == pl.num_programs(2) - 1)
    def _():
        t = acc_ref[...]
        jac = 1.0 - t / (2.0 - t)
        o_ref[...] = jac * (1.0 - lam) + dq_ref[...] * lam


def jaccard_final(vq, v, orig_q, lam, *, tq=128, tl=128, tc=256):
    """final[i, l] = (1 - t/(2-t)) * (1-lam) + orig_q[i, l] * lam,
    with t[i, l] = sum_c min(vq[i, c], v[l, c]) (the torch 'temp_min').

    `v` here is only the slice of rows whose columns are actually kept in the
    final distance (gallery rows), so the O(Q*L*C) work is not wasted on
    columns that get discarded."""
    q, c = vq.shape
    n = v.shape[0]
    qp = _round_up(q, tq)
    lp = _round_up(n, tl)
    cp = _round_up(c, tc)
    vq_p = _pad2(vq, qp, cp)
    v_p = _pad2(v, lp, cp)
    d_p = _pad2(orig_q, qp, lp)

    # TODO(synk): a deeper pipeline (pl.Buffered(3)) on the streamed V tiles would
    # hide more DMA latency of this memory-bound reduction; left at the default
    # double-buffering for portability.
    out = pl.pallas_call(
        functools.partial(_jaccard_kernel, lam=float(lam)),
        grid=(qp // tq, lp // tl, cp // tc),
        in_specs=[
            pl.BlockSpec((tq, tc), lambda i, l, cc: (i, cc)),
            pl.BlockSpec((tl, tc), lambda i, l, cc: (l, cc)),
            pl.BlockSpec((tq, tl), lambda i, l, cc: (i, l)),
        ],
        out_specs=pl.BlockSpec((tq, tl), lambda i, l, cc: (i, l)),
        out_shape=jax.ShapeDtypeStruct((qp, lp), jnp.float32),
        scratch_shapes=[pltpu.VMEM((tq, tl), jnp.float32)],
        compiler_params=pltpu.CompilerParams(
            dimension_semantics=("parallel", "parallel", "arbitrary"),
            vmem_limit_bytes=_VMEM_LIMIT),
    )(vq_p, v_p, d_p)
    return out[:q, :n]


# ----------------------------------------------------------- triplet loss ---
def _triplet_kernel(d_ref, m_ref, ap_ref, an_ref, ls_ref, *, margin):
    d = d_ref[...]
    m = m_ref[...]                        # 1.0 = positive, 0.0 = negative, -1.0 = pad
    pos = m > 0.5
    neg = jnp.abs(m) < 0.5
    ap = jnp.max(jnp.where(pos, d, -jnp.inf), axis=1, keepdims=True)   # (bm, 1)
    an = jnp.min(jnp.where(neg, d, jnp.inf), axis=1, keepdims=True)    # (bm, 1)
    ap_ref[...] = ap
    an_ref[...] = an
    # MarginRankingLoss(dist_an, dist_ap, y=1) = mean(relu(ap - an + margin))
    ls_ref[...] = jnp.maximum(ap - an + margin, 0.0)


def triplet_from_dist(dist, mask_bool, margin, *, bm=128):
    n = dist.shape[0]
    rp = _round_up(n, bm)
    cp = _round_up(n, 128)
    d_p = _pad2(dist, rp, cp)
    mcode = jnp.where(mask_bool, 1.0, 0.0).astype(jnp.float32)
    m_p = _pad2(mcode, rp, cp, value=-1.0)          # -1 marks padded entries

    ap, an, ls = pl.pallas_call(
        functools.partial(_triplet_kernel, margin=float(margin)),
        grid=(rp // bm,),
        in_specs=[pl.BlockSpec((bm, cp), lambda i: (i, 0)),
                  pl.BlockSpec((bm, cp), lambda i: (i, 0))],
        out_specs=(pl.BlockSpec((bm, 1), lambda i: (i, 0)),
                   pl.BlockSpec((bm, 1), lambda i: (i, 0)),
                   pl.BlockSpec((bm, 1), lambda i: (i, 0))),
        out_shape=(jax.ShapeDtypeStruct((rp, 1), jnp.float32),
                   jax.ShapeDtypeStruct((rp, 1), jnp.float32),
                   jax.ShapeDtypeStruct((rp, 1), jnp.float32)),
        compiler_params=pltpu.CompilerParams(
            dimension_semantics=("parallel",),
            vmem_limit_bytes=_VMEM_LIMIT),
    )(d_p, m_p)

    dist_ap = ap[:n, 0]
    dist_an = an[:n, 0]
    loss = jnp.mean(ls[:n, 0])
    return loss, dist_ap, dist_an


# --------------------------------------------------------------- rerank dist --
def _ranks_eval(dist, query_num):
    """Rank of column j in row i of the eval-type distance matrix.

    eval_type=True replaces every gallery column with the global max, so under a
    stable argsort (jnp default) all gallery columns land after every query
    column, ordered by index: their rank is simply their column index.  Only the
    (N, query_num) query block needs sorting — exact equivalence with the
    materialize-dist_eval-then-argsort-twice formulation, at half the sort work.
    """
    all_num = dist.shape[0]
    # TODO(synk): argsort / rank bookkeeping has no clean Pallas equivalent; done
    # in plain JAX (XLA sort), while all heavy matmuls/reductions use Pallas.
    order_q = jnp.argsort(dist[:, :query_num], axis=1)        # stable by default
    ranks_q = jnp.argsort(order_q, axis=1)                    # (all, query_num)
    gal_idx = jnp.arange(query_num, all_num, dtype=ranks_q.dtype)
    ranks_g = jnp.broadcast_to(gal_idx[None, :], (all_num, all_num - query_num))
    return jnp.concatenate([ranks_q, ranks_g], axis=1)        # (all, all)


def rerank_dist(feat1, feat2, k1=K1, k2=K2, lambda_value=LAMBDA):
    # TODO(synk): the k-reciprocal set expansion bookkeeping (data-dependent
    # ranks, unique / intersection of index sets) is expressed as dense rank
    # masks in plain JAX; all matmuls / heavy reductions run in Pallas kernels.
    feats = jnp.concatenate([feat1, feat2], axis=0)
    query_num = feat1.shape[0]
    all_num = feats.shape[0]

    dist = pairwise_distance(feats)                  # symmetric (all_num, all_num)
    # original_dist = dist.T dropped: dist is symmetric.

    ranks = _ranks_eval(dist, query_num)             # eval_type=True ranks

    topk = ranks < (k1 + 1)                          # j in forward_k_neigh(i)
    half = int(round(k1 / 2)) + 1
    topk_half = ranks < half

    recip = topk & topk.T                            # k-reciprocal neighbours
    recip_half = topk_half & topk_half.T             # candidate reciprocal sets (symmetric)
    recip_f = recip.astype(jnp.float32)
    recip_half_f = recip_half.astype(jnp.float32)

    # |recip(i) ∩ recip_half(j)| and |recip_half(j)|   (bf16 masks are exact 0/1)
    inter = pallas_matmul(recip_f, recip_half_f)     # == recip @ recip_half.T (symmetry)
    cand_sz = jnp.sum(recip_half_f, axis=1)
    cond = recip & (inter > (2.0 / 3.0) * cand_sz[None, :])
    expanded = recip | (
        pallas_matmul(cond.astype(jnp.float32), recip_half_f) > 0.5)

    # V = row-normalized exp(-dist) restricted to the expanded sets (fused kernel).
    V = weighted_rows(expanded.astype(jnp.float32), dist)

    if k2 != 1:                                      # query expansion (mean of top-k2 rows)
        topk2 = (ranks < k2).astype(jnp.float32)
        V = pallas_matmul(topk2, V, scale=1.0 / k2,
                          operand_dtype=jnp.float32)  # V is real-valued: keep f32

    # Only the [:query_num, query_num:] block of the final distance is kept, and
    # temp_min[i, l] depends only on rows i (query) and l (gallery) of V — so the
    # O(Q*L*C) jaccard reduction is computed for gallery columns only (2x less
    # work than producing the full (Q, N) matrix and slicing afterwards).
    Vq = V[:query_num]                               # (Q, C)
    Vg = V[query_num:]                               # (G, C)
    orig_qg = dist[:query_num, query_num:]           # (Q, G)

    # temp_min + jaccard + lambda blend, fused and blocked (never (Q, G, C)).
    return jaccard_final(Vq, Vg, orig_qg, lambda_value)   # (query_num, gallery_num)


# ------------------------------------------------------------------- forward --
def rerank_loss_forward(inputs, targets, margin=MARGIN):
    """JAX/Pallas equivalent of RerankLoss.forward -> (loss, dist, dist_ap, dist_an)."""
    dist = rerank_dist(inputs, inputs)               # (n, n)
    mask = targets[:, None] == targets[None, :]
    loss, dist_ap, dist_an = triplet_from_dist(dist, mask, margin)
    return loss, dist, dist_ap, dist_an


if __name__ == "__main__":
    key = jax.random.PRNGKey(0)
    n, d = 8, 32
    inputs = jax.random.normal(key, (n, d), dtype=jnp.float32)
    targets = jnp.array([0, 0, 1, 1, 2, 2, 3, 3], dtype=jnp.int32)

    fwd = jax.jit(rerank_loss_forward)
    loss, dist, dist_ap, dist_an = fwd(inputs, targets)
    jax.block_until_ready((loss, dist, dist_ap, dist_an))

    assert dist.shape == (n, n)
    assert dist_ap.shape == (n,) and dist_an.shape == (n,)
    assert jnp.isfinite(loss)
    assert bool(jnp.all(jnp.isfinite(dist)))
    print("KERNEL_OK")
</pallas_src>

<mosaic_0001>
module attributes {stable_mosaic.version = 11 : i64} {
  func.func @_pdist_kernel(%arg0: i32, %arg1: i32, %arg2: i32, %arg3: memref<256x128xf32, #tpu.memory_space<vmem>>, %arg4: memref<128x256xf32, #tpu.memory_space<vmem>>, %arg5: memref<256x1xf32, #tpu.memory_space<vmem>>, %arg6: memref<1x256xf32, #tpu.memory_space<vmem>>, %arg7: memref<256x256xf32, #tpu.memory_space<vmem>>, %arg8: memref<256x256xf32, #tpu.memory_space<vmem>>) attributes {dimension_semantics = [#tpu.dimension_semantics<parallel>, #tpu.dimension_semantics<parallel>, #tpu.dimension_semantics<arbitrary>], iteration_bounds = array<i64: 1, 1, 1>, scalar_prefetch = 0 : i64, scratch_operands = 1 : i64, tpu.core_type = #tpu.core_type<tc>, window_params = [{transform_indices = @transform_0, window_bounds = array<i64: 256, 128>}, {transform_indices = @transform_1, window_bounds = array<i64: 128, 256>}, {transform_indices = @transform_2, window_bounds = array<i64: 256, 1>}, {transform_indices = @transform_3, window_bounds = array<i64: 1, 256>}, {transform_indices = @transform_4, window_bounds = array<i64: 256, 256>}]} {
    %c0_i32 = arith.constant 0 : i32
    %0 = arith.cmpi eq, %arg2, %c0_i32 : i32
    %1 = arith.extui %0 : i1 to i32
    %c0_i32_0 = arith.constant 0 : i32
    %2 = arith.cmpi ne, %1, %c0_i32_0 : i32
    scf.if %2 {
      %cst_10 = arith.constant 0.000000e+00 : f32
      %12 = vector.broadcast %cst_10 : f32 to vector<256x256xf32>
      %c0_11 = arith.constant 0 : index
      %c0_12 = arith.constant 0 : index
      %13 = vector.load %arg8[%c0_11, %c0_12] : memref<256x256xf32, #tpu.memory_space<vmem>>, vector<256x256xf32>
      tpu.vector_store %arg8[%c0_11, %c0_12], %12 {strides = array<i32>} : memref<256x256xf32, #tpu.memory_space<vmem>>, vector<256x256xf32>,
    } else {
    }
    %c0 = arith.constant 0 : index
    %c0_1 = arith.constant 0 : index
    %3 = vector.load %arg8[%c0, %c0_1] : memref<256x256xf32, #tpu.memory_space<vmem>>, vector<256x256xf32>
    %c0_2 = arith.constant 0 : index
    %c0_3 = arith.constant 0 : index
    %4 = vector.load %arg3[%c0_2, %c0_3] : memref<256x128xf32, #tpu.memory_space<vmem>>, vector<256x128xf32>
    %c0_4 = arith.constant 0 : index
    %c0_5 = arith.constant 0 : index
    %5 = vector.load %arg4[%c0_4, %c0_5] : memref<128x256xf32, #tpu.memory_space<vmem>>, vector<128x256xf32>
    %cst = arith.constant dense<0.000000e+00> : vector<256x256xf32>
    %6 = tpu.matmul %4, %5, %cst {dimension_numbers = #tpu.dot_dimension_numbers<[1], [0], [0], [1], [0, 0, 1, 1], [], []>} : vector<256x128xf32>, vector<128x256xf32>, vector<256x256xf32> -> vector<256x256xf32>
    %7 = arith.addf %3, %6 : vector<256x256xf32>
    %c0_6 = arith.constant 0 : index
    %c0_7 = arith.constant 0 : index
    %8 = vector.load %arg8[%c0_6, %c0_7] : memref<256x256xf32, #tpu.memory_space<vmem>>, vector<256x256xf32>
    tpu.vector_store %arg8[%c0_6, %c0_7], %7 {strides = array<i32>} : memref<256x256xf32, #tpu.memory_space<vmem>>, vector<256x256xf32>,
    %c0_i32_8 = arith.constant 0 : i32
    %9 = arith.cmpi eq, %arg2, %c0_i32_8 : i32
    %10 = arith.extui %9 : i1 to i32
    %c0_i32_9 = arith.constant 0 : i32
    %11 = arith.cmpi ne, %10, %c0_i32_9 : i32
    scf.if %11 {
      %c0_10 = arith.constant 0 : index
      %c0_11 = arith.constant 0 : index
      %12 = vector.load %arg5[%c0_10, %c0_11] : memref<256x1xf32, #tpu.memory_space<vmem>>, vector<256x1xf32>
      %c0_12 = arith.constant 0 : index
      %c0_13 = arith.constant 0 : index
      %13 = vector.load %arg6[%c0_12, %c0_13] : memref<1x256xf32, #tpu.memory_space<vmem>>, vector<1x256xf32>
      %14 = vector.broadcast %12 : vector<256x1xf32> to vector<256x256xf32>
      %15 = vector.broadcast %13 : vector<1x256xf32> to vector<256x256xf32>
      %16 = arith.addf %14, %15 : vector<256x256xf32>
      %c0_14 = arith.constant 0 : index
      %c0_15 = arith.constant 0 : index
      %17 = vector.load %arg8[%c0_14, %c0_15] : memref<256x256xf32, #tpu.memory_space<vmem>>, vector<256x256xf32>
      %cst_16 = arith.constant 2.000000e+00 : f32
      %18 = vector.broadcast %cst_16 : f32 to vector<256x256xf32>
      %19 = arith.mulf %18, %17 : vector<256x256xf32>
      %20 = arith.subf %16, %19 : vector<256x256xf32>
      %cst_17 = arith.constant 0.000000e+00 : f32
      %21 = vector.broadcast %cst_17 : f32 to vector<256x256xf32>
      %22 = arith.maximumf %20, %21 : vector<256x256xf32>
      %c0_18 = arith.constant 0 : index
      %c0_19 = arith.constant 0 : index
      %23 = vector.load %arg7[%c0_18, %c0_19] : memref<256x256xf32, #tpu.memory_space<vmem>>, vector<256x256xf32>
      tpu.vector_store %arg7[%c0_18, %c0_19], %22 {strides = array<i32>} : memref<256x256xf32, #tpu.memory_space<vmem>>, vector<256x256xf32>,
    } else {
    }
    return
  }
  func.func @transform_0(%arg0: i32, %arg1: i32, %arg2: i32) -> (i32, i32) {
    %c0_i32 = arith.constant 0 : i32
    return %arg0, %arg2 : i32, i32
  }
  func.func @transform_1(%arg0: i32, %arg1: i32, %arg2: i32) -> (i32, i32) {
    %c0_i32 = arith.constant 0 : i32
    return %arg2, %arg1 : i32, i32
  }
  func.func @transform_2(%arg0: i32, %arg1: i32, %arg2: i32) -> (i32, i32) {
    %c0_i32 = arith.constant 0 : i32
    %c0_i32_0 = arith.constant 0 : i32
    return %arg0, %c0_i32 : i32, i32
  }
  func.func @transform_3(%arg0: i32, %arg1: i32, %arg2: i32) -> (i32, i32) {
    %c0_i32 = arith.constant 0 : i32
    %c0_i32_0 = arith.constant 0 : i32
    return %c0_i32, %arg1 : i32, i32
  }
  func.func @transform_4(%arg0: i32, %arg1: i32, %arg2: i32) -> (i32, i32) {
    %c0_i32 = arith.constant 0 : i32
    return %arg0, %arg1 : i32, i32
  }
}

module attributes {stable_mosaic.version = 11 : i64} {
  func.func @_matmul_kernel(%arg0: i32, %arg1: i32, %arg2: i32, %arg3: memref<256x256xbf16, #tpu.memory_space<vmem>>, %arg4: memref<256x256xbf16, #tpu.memory_space<vmem>>, %arg5: memref<256x256xf32, #tpu.memory_space<vmem>>, %arg6: memref<256x256xf32, #tpu.memory_space<vmem>>) attributes {dimension_semantics = [#tpu.dimension_semantics<parallel>, #tpu.dimension_semantics<parallel>, #tpu.dimension_semantics<arbitrary>], iteration_bounds = array<i64: 1, 1, 1>, scalar_prefetch = 0 : i64, scratch_operands = 1 : i64, tpu.core_type = #tpu.core_type<tc>, window_params = [{transform_indices = @transform_0, window_bounds = array<i64: 256, 256>}, {transform_indices = @transform_1, window_bounds = array<i64: 256, 256>}, {transform_indices = @transform_2, window_bounds = array<i64: 256, 256>}]} {
    %c0_i32 = arith.constant 0 : i32
    %0 = arith.cmpi eq, %arg2, %c0_i32 : i32
    %1 = arith.extui %0 : i1 to i32
    %c0_i32_0 = arith.constant 0 : i32
    %2 = arith.cmpi ne, %1, %c0_i32_0 : i32
    scf.if %2 {
      %cst_10 = arith.constant 0.000000e+00 : f32
      %12 = vector.broadcast %cst_10 : f32 to vector<256x256xf32>
      %c0_11 = arith.constant 0 : index
      %c0_12 = arith.constant 0 : index
      %13 = vector.load %arg6[%c0_11, %c0_12] : memref<256x256xf32, #tpu.memory_space<vmem>>, vector<256x256xf32>
      tpu.vector_store %arg6[%c0_11, %c0_12], %12 {strides = array<i32>} : memref<256x256xf32, #tpu.memory_space<vmem>>, vector<256x256xf32>,
    } else {
    }
    %c0 = arith.constant 0 : index
    %c0_1 = arith.constant 0 : index
    %3 = vector.load %arg6[%c0, %c0_1] : memref<256x256xf32, #tpu.memory_space<vmem>>, vector<256x256xf32>
    %c0_2 = arith.constant 0 : index
    %c0_3 = arith.constant 0 : index
    %4 = vector.load %arg3[%c0_2, %c0_3] : memref<256x256xbf16, #tpu.memory_space<vmem>>, vector<256x256xbf16>
    %c0_4 = arith.constant 0 : index
    %c0_5 = arith.constant 0 : index
    %5 = vector.load %arg4[%c0_4, %c0_5] : memref<256x256xbf16, #tpu.memory_space<vmem>>, vector<256x256xbf16>
    %cst = arith.constant dense<0.000000e+00> : vector<256x256xf32>
    %6 = tpu.matmul %4, %5, %cst {dimension_numbers = #tpu.dot_dimension_numbers<[1], [0], [0], [1], [0, 0, 1, 1], [], []>} : vector<256x256xbf16>, vector<256x256xbf16>, vector<256x256xf32> -> vector<256x256xf32>
    %7 = arith.addf %3, %6 : vector<256x256xf32>
    %c0_6 = arith.constant 0 : index
    %c0_7 = arith.constant 0 : index
    %8 = vector.load %arg6[%c0_6, %c0_7] : memref<256x256xf32, #tpu.memory_space<vmem>>, vector<256x256xf32>
    tpu.vector_store %arg6[%c0_6, %c0_7], %7 {strides = array<i32>} : memref<256x256xf32, #tpu.memory_space<vmem>>, vector<256x256xf32>,
    %c0_i32_8 = arith.constant 0 : i32
    %9 = arith.cmpi eq, %arg2, %c0_i32_8 : i32
    %10 = arith.extui %9 : i1 to i32
    %c0_i32_9 = arith.constant 0 : i32
    %11 = arith.cmpi ne, %10, %c0_i32_9 : i32
    scf.if %11 {
      %c0_10 = arith.constant 0 : index
      %c0_11 = arith.constant 0 : index
      %12 = vector.load %arg6[%c0_10, %c0_11] : memref<256x256xf32, #tpu.memory_space<vmem>>, vector<256x256xf32>
      %cst_12 = arith.constant 1.000000e+00 : f32
      %13 = vector.broadcast %cst_12 : f32 to vector<256x256xf32>
      %14 = arith.mulf %12, %13 : vector<256x256xf32>
      %c0_13 = arith.constant 0 : index
      %c0_14 = arith.constant 0 : index
      %15 = vector.load %arg5[%c0_13, %c0_14] : memref<256x256xf32, #tpu.memory_space<vmem>>, vector<256x256xf32>
      tpu.vector_store %arg5[%c0_13, %c0_14], %14 {strides = array<i32>} : memref<256x256xf32, #tpu.memory_space<vmem>>, vector<256x256xf32>,
    } else {
    }
    return
  }
  func.func @transform_0(%arg0: i32, %arg1: i32, %arg2: i32) -> (i32, i32) {
    %c0_i32 = arith.constant 0 : i32
    return %arg0, %arg2 : i32, i32
  }
  func.func @transform_1(%arg0: i32, %arg1: i32, %arg2: i32) -> (i32, i32) {
    %c0_i32 = arith.constant 0 : i32
    return %arg2, %arg1 : i32, i32
  }
  func.func @transform_2(%arg0: i32, %arg1: i32, %arg2: i32) -> (i32, i32) {
    %c0_i32 = arith.constant 0 : i32
    return %arg0, %arg1 : i32, i32
  }
}

module attributes {stable_mosaic.version = 11 : i64} {
  func.func @_vnorm_kernel(%arg0: i32, %arg1: memref<128x128xf32, #tpu.memory_space<vmem>>, %arg2: memref<128x128xf32, #tpu.memory_space<vmem>>, %arg3: memref<128x128xf32, #tpu.memory_space<vmem>>) attributes {dimension_semantics = [#tpu.dimension_semantics<parallel>], iteration_bounds = array<i64: 1>, scalar_prefetch = 0 : i64, scratch_operands = 0 : i64, tpu.core_type = #tpu.core_type<tc>, window_params = [{transform_indices = @transform_0, window_bounds = array<i64: 128, 128>}, {transform_indices = @transform_1, window_bounds = array<i64: 128, 128>}, {transform_indices = @transform_2, window_bounds = array<i64: 128, 128>}]} {
    %c0 = arith.constant 0 : index
    %c0_0 = arith.constant 0 : index
    %0 = vector.load %arg1[%c0, %c0_0] : memref<128x128xf32, #tpu.memory_space<vmem>>, vector<128x128xf32>
    %cst = arith.constant 5.000000e-01 : f32
    %1 = vector.broadcast %cst : f32 to vector<128x128xf32>
    %2 = arith.cmpf ogt, %0, %1 : vector<128x128xf32>
    %c0_1 = arith.constant 0 : index
    %c0_2 = arith.constant 0 : index
    %3 = vector.load %arg2[%c0_1, %c0_2] : memref<128x128xf32, #tpu.memory_space<vmem>>, vector<128x128xf32>
    %cst_3 = arith.constant 0.000000e+00 : f32
    %4 = vector.broadcast %cst_3 : f32 to vector<128x128xf32>
    %5 = arith.subf %4, %3 : vector<128x128xf32>
    %6 = math.exp %5 : vector<128x128xf32>
    %cst_4 = arith.constant 0.000000e+00 : f32
    %7 = vector.broadcast %cst_4 : f32 to vector<128x128xf32>
    %8 = arith.select %2, %6, %7 : vector<128x128xi1>, vector<128x128xf32>
    %cst_5 = arith.constant dense<0.000000e+00> : vector<128xf32>
    %9 = vector.multi_reduction <add>, %8, %cst_5 [1] : vector<128x128xf32> to vector<128xf32>
    %10 = vector.shape_cast %9 : vector<128xf32> to vector<128x1xf32>
    %cst_6 = arith.constant 0.000000e+00 : f32
    %11 = vector.broadcast %cst_6 : f32 to vector<128x1xf32>
    %12 = arith.cmpf ogt, %10, %11 : vector<128x1xf32>
    %13 = vector.broadcast %10 : vector<128x1xf32> to vector<128x128xf32>
    %14 = arith.divf %8, %13 : vector<128x128xf32>
    %cst_7 = arith.constant 0.000000e+00 : f32
    %15 = vector.shape_cast %12 : vector<128x1xi1> to vector<128x1xi1>
    %16 = vector.broadcast %15 : vector<128x1xi1> to vector<128x128xi1>
    %17 = vector.broadcast %cst_7 : f32 to vector<128x128xf32>
    %18 = arith.select %16, %14, %17 : vector<128x128xi1>, vector<128x128xf32>
    %c0_8 = arith.constant 0 : index
    %c0_9 = arith.constant 0 : index
    %19 = vector.load %arg3[%c0_8, %c0_9] : memref<128x128xf32, #tpu.memory_space<vmem>>, vector<128x128xf32>
    tpu.vector_store %arg3[%c0_8, %c0_9], %18 {strides = array<i32>} : memref<128x128xf32, #tpu.memory_space<vmem>>, vector<128x128xf32>,
    return
  }
  func.func @transform_0(%arg0: i32) -> (i32, i32) {
    %c0_i32 = arith.constant 0 : i32
    %c0_i32_0 = arith.constant 0 : i32
    return %arg0, %c0_i32 : i32, i32
  }
  func.func @transform_1(%arg0: i32) -> (i32, i32) {
    %c0_i32 = arith.constant 0 : i32
    %c0_i32_0 = arith.constant 0 : i32
    return %arg0, %c0_i32 : i32, i32
  }
  func.func @transform_2(%arg0: i32) -> (i32, i32) {
    %c0_i32 = arith.constant 0 : i32
    %c0_i32_0 = arith.constant 0 : i32
    return %arg0, %c0_i32 : i32, i32
  }
}

module attributes {stable_mosaic.version = 11 : i64} {
  func.func @_matmul_kernel(%arg0: i32, %arg1: i32, %arg2: i32, %arg3: memref<256x256xf32, #tpu.memory_space<vmem>>, %arg4: memref<256x256xf32, #tpu.memory_space<vmem>>, %arg5: memref<256x256xf32, #tpu.memory_space<vmem>>, %arg6: memref<256x256xf32, #tpu.memory_space<vmem>>) attributes {dimension_semantics = [#tpu.dimension_semantics<parallel>, #tpu.dimension_semantics<parallel>, #tpu.dimension_semantics<arbitrary>], iteration_bounds = array<i64: 1, 1, 1>, scalar_prefetch = 0 : i64, scratch_operands = 1 : i64, tpu.core_type = #tpu.core_type<tc>, window_params = [{transform_indices = @transform_0, window_bounds = array<i64: 256, 256>}, {transform_indices = @transform_1, window_bounds = array<i64: 256, 256>}, {transform_indices = @transform_2, window_bounds = array<i64: 256, 256>}]} {
    %c0_i32 = arith.constant 0 : i32
    %0 = arith.cmpi eq, %arg2, %c0_i32 : i32
    %1 = arith.extui %0 : i1 to i32
    %c0_i32_0 = arith.constant 0 : i32
    %2 = arith.cmpi ne, %1, %c0_i32_0 : i32
    scf.if %2 {
      %cst_10 = arith.constant 0.000000e+00 : f32
      %12 = vector.broadcast %cst_10 : f32 to vector<256x256xf32>
      %c0_11 = arith.constant 0 : index
      %c0_12 = arith.constant 0 : index
      %13 = vector.load %arg6[%c0_11, %c0_12] : memref<256x256xf32, #tpu.memory_space<vmem>>, vector<256x256xf32>
      tpu.vector_store %arg6[%c0_11, %c0_12], %12 {strides = array<i32>} : memref<256x256xf32, #tpu.memory_space<vmem>>, vector<256x256xf32>,
    } else {
    }
    %c0 = arith.constant 0 : index
    %c0_1 = arith.constant 0 : index
    %3 = vector.load %arg6[%c0, %c0_1] : memref<256x256xf32, #tpu.memory_space<vmem>>, vector<256x256xf32>
    %c0_2 = arith.constant 0 : index
    %c0_3 = arith.constant 0 : index
    %4 = vector.load %arg3[%c0_2, %c0_3] : memref<256x256xf32, #tpu.memory_space<vmem>>, vector<256x256xf32>
    %c0_4 = arith.constant 0 : index
    %c0_5 = arith.constant 0 : index
    %5 = vector.load %arg4[%c0_4, %c0_5] : memref<256x256xf32, #tpu.memory_space<vmem>>, vector<256x256xf32>
    %cst = arith.constant dense<0.000000e+00> : vector<256x256xf32>
    %6 = tpu.matmul %4, %5, %cst {dimension_numbers = #tpu.dot_dimension_numbers<[1], [0], [0], [1], [0, 0, 1, 1], [], []>} : vector<256x256xf32>, vector<256x256xf32>, vector<256x256xf32> -> vector<256x256xf32>
    %7 = arith.addf %3, %6 : vector<256x256xf32>
    %c0_6 = arith.constant 0 : index
    %c0_7 = arith.constant 0 : index
    %8 = vector.load %arg6[%c0_6, %c0_7] : memref<256x256xf32, #tpu.memory_space<vmem>>, vector<256x256xf32>
    tpu.vector_store %arg6[%c0_6, %c0_7], %7 {strides = array<i32>} : memref<256x256xf32, #tpu.memory_space<vmem>>, vector<256x256xf32>,
    %c0_i32_8 = arith.constant 0 : i32
    %9 = arith.cmpi eq, %arg2, %c0_i32_8 : i32
    %10 = arith.extui %9 : i1 to i32
    %c0_i32_9 = arith.constant 0 : i32
    %11 = arith.cmpi ne, %10, %c0_i32_9 : i32
    scf.if %11 {
      %c0_10 = arith.constant 0 : index
      %c0_11 = arith.constant 0 : index
      %12 = vector.load %arg6[%c0_10, %c0_11] : memref<256x256xf32, #tpu.memory_space<vmem>>, vector<256x256xf32>
      %cst_12 = arith.constant 0.166666672 : f32
      %13 = vector.broadcast %cst_12 : f32 to vector<256x256xf32>
      %14 = arith.mulf %12, %13 : vector<256x256xf32>
      %c0_13 = arith.constant 0 : index
      %c0_14 = arith.constant 0 : index
      %15 = vector.load %arg5[%c0_13, %c0_14] : memref<256x256xf32, #tpu.memory_space<vmem>>, vector<256x256xf32>
      tpu.vector_store %arg5[%c0_13, %c0_14], %14 {strides = array<i32>} : memref<256x256xf32, #tpu.memory_space<vmem>>, vector<256x256xf32>,
    } else {
    }
    return
  }
  func.func @transform_0(%arg0: i32, %arg1: i32, %arg2: i32) -> (i32, i32) {
    %c0_i32 = arith.constant 0 : i32
    return %arg0, %arg2 : i32, i32
  }
  func.func @transform_1(%arg0: i32, %arg1: i32, %arg2: i32) -> (i32, i32) {
    %c0_i32 = arith.constant 0 : i32
    return %arg2, %arg1 : i32, i32
  }
  func.func @transform_2(%arg0: i32, %arg1: i32, %arg2: i32) -> (i32, i32) {
    %c0_i32 = arith.constant 0 : i32
    return %arg0, %arg1 : i32, i32
  }
}

module attributes {stable_mosaic.version = 11 : i64} {
  func.func @_jaccard_kernel(%arg0: i32, %arg1: i32, %arg2: i32, %arg3: memref<128x256xf32, #tpu.memory_space<vmem>>, %arg4: memref<128x256xf32, #tpu.memory_space<vmem>>, %arg5: memref<128x128xf32, #tpu.memory_space<vmem>>, %arg6: memref<128x128xf32, #tpu.memory_space<vmem>>, %arg7: memref<128x128xf32, #tpu.memory_space<vmem>>) attributes {dimension_semantics = [#tpu.dimension_semantics<parallel>, #tpu.dimension_semantics<parallel>, #tpu.dimension_semantics<arbitrary>], iteration_bounds = array<i64: 1, 1, 1>, scalar_prefetch = 0 : i64, scratch_operands = 1 : i64, tpu.core_type = #tpu.core_type<tc>, window_params = [{transform_indices = @transform_0, window_bounds = array<i64: 128, 256>}, {transform_indices = @transform_1, window_bounds = array<i64: 128, 256>}, {transform_indices = @transform_2, window_bounds = array<i64: 128, 128>}, {transform_indices = @transform_3, window_bounds = array<i64: 128, 128>}]} {
    %c0_i32 = arith.constant 0 : i32
    %0 = arith.cmpi eq, %arg2, %c0_i32 : i32
    %1 = arith.extui %0 : i1 to i32
    %c0_i32_0 = arith.constant 0 : i32
    %2 = arith.cmpi ne, %1, %c0_i32_0 : i32
    scf.if %2 {
      %cst = arith.constant 0.000000e+00 : f32
      %8 = vector.broadcast %cst : f32 to vector<128x128xf32>
      %c0_6 = arith.constant 0 : index
      %c0_7 = arith.constant 0 : index
      %9 = vector.load %arg7[%c0_6, %c0_7] : memref<128x128xf32, #tpu.memory_space<vmem>>, vector<128x128xf32>
      tpu.vector_store %arg7[%c0_6, %c0_7], %8 {strides = array<i32>} : memref<128x128xf32, #tpu.memory_space<vmem>>, vector<128x128xf32>,
    } else {
    }
    %c0 = arith.constant 0 : index
    %c0_1 = arith.constant 0 : index
    %3 = vector.load %arg4[%c0, %c0_1] : memref<128x256xf32, #tpu.memory_space<vmem>>, vector<128x256xf32>
    %c0_i32_2 = arith.constant 0 : i32
    %c128_i32 = arith.constant 128 : i32
    %4 = arith.addi %c0_i32_2, %c128_i32 : i32
    %c1_i32 = arith.constant 1 : i32
    scf.for %arg8 = %c0_i32_2 to %4 step %c1_i32  : i32 {
      %8 = arith.index_cast %arg8 : i32 to index
      %c0_6 = arith.constant 0 : index
      %9 = vector.load %arg3[%8, %c0_6] : memref<128x256xf32, #tpu.memory_space<vmem>>, vector<1x256xf32>
      %10 = vector.broadcast %9 : vector<1x256xf32> to vector<128x256xf32>
      %11 = arith.minimumf %10, %3 : vector<128x256xf32>
      %cst = arith.constant dense<0.000000e+00> : vector<128xf32>
      %12 = vector.multi_reduction <add>, %11, %cst [1] : vector<128x256xf32> to vector<128xf32>
      %13 = arith.index_cast %arg8 : i32 to index
      %c0_7 = arith.constant 0 : index
      %14 = vector.load %arg7[%13, %c0_7] : memref<128x128xf32, #tpu.memory_space<vmem>>, vector<1x128xf32>
      %15 = vector.shape_cast %12 : vector<128xf32> to vector<1x128xf32>
      %16 = arith.addf %14, %15 : vector<1x128xf32>
      %17 = arith.index_cast %arg8 : i32 to index
      %c0_8 = arith.constant 0 : index
      %18 = vector.load %arg7[%17, %c0_8] : memref<128x128xf32, #tpu.memory_space<vmem>>, vector<1x128xf32>
      tpu.vector_store %arg7[%17, %c0_8], %16 {strides = array<i32>} : memref<128x128xf32, #tpu.memory_space<vmem>>, vector<1x128xf32>,
    }
    %c128_i32_3 = arith.constant 128 : i32
    %c0_i32_4 = arith.constant 0 : i32
    %5 = arith.cmpi eq, %arg2, %c0_i32_4 : i32
    %6 = arith.extui %5 : i1 to i32
    %c0_i32_5 = arith.constant 0 : i32
    %7 = arith.cmpi ne, %6, %c0_i32_5 : i32
    scf.if %7 {
      %c0_6 = arith.constant 0 : index
      %c0_7 = arith.constant 0 : index
      %8 = vector.load %arg7[%c0_6, %c0_7] : memref<128x128xf32, #tpu.memory_space<vmem>>, vector<128x128xf32>
      %cst = arith.constant 2.000000e+00 : f32
      %9 = vector.broadcast %cst : f32 to vector<128x128xf32>
      %10 = arith.subf %9, %8 : vector<128x128xf32>
      %11 = arith.divf %8, %10 : vector<128x128xf32>
      %cst_8 = arith.constant 1.000000e+00 : f32
      %12 = vector.broadcast %cst_8 : f32 to vector<128x128xf32>
      %13 = arith.subf %12, %11 : vector<128x128xf32>
      %cst_9 = arith.constant 0.699999988 : f32
      %14 = vector.broadcast %cst_9 : f32 to vector<128x128xf32>
      %15 = arith.mulf %13, %14 : vector<128x128xf32>
      %c0_10 = arith.constant 0 : index
      %c0_11 = arith.constant 0 : index
      %16 = vector.load %arg5[%c0_10, %c0_11] : memref<128x128xf32, #tpu.memory_space<vmem>>, vector<128x128xf32>
      %cst_12 = arith.constant 3.000000e-01 : f32
      %17 = vector.broadcast %cst_12 : f32 to vector<128x128xf32>
      %18 = arith.mulf %16, %17 : vector<128x128xf32>
      %19 = arith.addf %15, %18 : vector<128x128xf32>
      %c0_13 = arith.constant 0 : index
      %c0_14 = arith.constant 0 : index
      %20 = vector.load %arg6[%c0_13, %c0_14] : memref<128x128xf32, #tpu.memory_space<vmem>>, vector<128x128xf32>
      tpu.vector_store %arg6[%c0_13, %c0_14], %19 {strides = array<i32>} : memref<128x128xf32, #tpu.memory_space<vmem>>, vector<128x128xf32>,
    } else {
    }
    return
  }
  func.func @transform_0(%arg0: i32, %arg1: i32, %arg2: i32) -> (i32, i32) {
    %c0_i32 = arith.constant 0 : i32
    return %arg0, %arg2 : i32, i32
  }
  func.func @transform_1(%arg0: i32, %arg1: i32, %arg2: i32) -> (i32, i32) {
    %c0_i32 = arith.constant 0 : i32
    return %arg1, %arg2 : i32, i32
  }
  func.func @transform_2(%arg0: i32, %arg1: i32, %arg2: i32) -> (i32, i32) {
    %c0_i32 = arith.constant 0 : i32
    return %arg0, %arg1 : i32, i32
  }
  func.func @transform_3(%arg0: i32, %arg1: i32, %arg2: i32) -> (i32, i32) {
    %c0_i32 = arith.constant 0 : i32
    return %arg0, %arg1 : i32, i32
  }
}

module attributes {stable_mosaic.version = 11 : i64} {
  func.func @_triplet_kernel(%arg0: i32, %arg1: memref<128x128xf32, #tpu.memory_space<vmem>>, %arg2: memref<128x128xf32, #tpu.memory_space<vmem>>, %arg3: memref<128x1xf32, #tpu.memory_space<vmem>>, %arg4: memref<128x1xf32, #tpu.memory_space<vmem>>, %arg5: memref<128x1xf32, #tpu.memory_space<vmem>>) attributes {dimension_semantics = [#tpu.dimension_semantics<parallel>], iteration_bounds = array<i64: 1>, scalar_prefetch = 0 : i64, scratch_operands = 0 : i64, tpu.core_type = #tpu.core_type<tc>, window_params = [{transform_indices = @transform_0, window_bounds = array<i64: 128, 128>}, {transform_indices = @transform_1, window_bounds = array<i64: 128, 128>}, {transform_indices = @transform_2, window_bounds = array<i64: 128, 1>}, {transform_indices = @transform_3, window_bounds = array<i64: 128, 1>}, {transform_indices = @transform_4, window_bounds = array<i64: 128, 1>}]} {
    %c0 = arith.constant 0 : index
    %c0_0 = arith.constant 0 : index
    %0 = vector.load %arg1[%c0, %c0_0] : memref<128x128xf32, #tpu.memory_space<vmem>>, vector<128x128xf32>
    %c0_1 = arith.constant 0 : index
    %c0_2 = arith.constant 0 : index
    %1 = vector.load %arg2[%c0_1, %c0_2] : memref<128x128xf32, #tpu.memory_space<vmem>>, vector<128x128xf32>
    %cst = arith.constant 5.000000e-01 : f32
    %2 = vector.broadcast %cst : f32 to vector<128x128xf32>
    %3 = arith.cmpf ogt, %1, %2 : vector<128x128xf32>
    %4 = math.absf %1 : vector<128x128xf32>
    %cst_3 = arith.constant 5.000000e-01 : f32
    %5 = vector.broadcast %cst_3 : f32 to vector<128x128xf32>
    %6 = arith.cmpf olt, %4, %5 : vector<128x128xf32>
    %cst_4 = arith.constant 0xFF800000 : f32
    %7 = vector.broadcast %cst_4 : f32 to vector<128x128xf32>
    %8 = arith.select %3, %0, %7 : vector<128x128xi1>, vector<128x128xf32>
    %cst_5 = arith.constant dense<0xFF800000> : vector<128xf32>
    %9 = vector.multi_reduction <maximumf>, %8, %cst_5 [1] : vector<128x128xf32> to vector<128xf32>
    %10 = vector.shape_cast %9 : vector<128xf32> to vector<128x1xf32>
    %cst_6 = arith.constant 0x7F800000 : f32
    %11 = vector.broadcast %cst_6 : f32 to vector<128x128xf32>
    %12 = arith.select %6, %0, %11 : vector<128x128xi1>, vector<128x128xf32>
    %cst_7 = arith.constant dense<0x7F800000> : vector<128xf32>
    %13 = vector.multi_reduction <minimumf>, %12, %cst_7 [1] : vector<128x128xf32> to vector<128xf32>
    %14 = vector.shape_cast %13 : vector<128xf32> to vector<128x1xf32>
    %c0_8 = arith.constant 0 : index
    %c0_9 = arith.constant 0 : index
    %15 = vector.load %arg3[%c0_8, %c0_9] : memref<128x1xf32, #tpu.memory_space<vmem>>, vector<128x1xf32>
    tpu.vector_store %arg3[%c0_8, %c0_9], %10 {strides = array<i32>} : memref<128x1xf32, #tpu.memory_space<vmem>>, vector<128x1xf32>,
    %c0_10 = arith.constant 0 : index
    %c0_11 = arith.constant 0 : index
    %16 = vector.load %arg4[%c0_10, %c0_11] : memref<128x1xf32, #tpu.memory_space<vmem>>, vector<128x1xf32>
    tpu.vector_store %arg4[%c0_10, %c0_11], %14 {strides = array<i32>} : memref<128x1xf32, #tpu.memory_space<vmem>>, vector<128x1xf32>,
    %17 = arith.subf %10, %14 : vector<128x1xf32>
    %cst_12 = arith.constant 3.000000e-02 : f32
    %18 = vector.broadcast %cst_12 : f32 to vector<128x1xf32>
    %19 = arith.addf %17, %18 : vector<128x1xf32>
    %cst_13 = arith.constant 0.000000e+00 : f32
    %20 = vector.broadcast %cst_13 : f32 to vector<128x1xf32>
    %21 = arith.maximumf %19, %20 : vector<128x1xf32>
    %c0_14 = arith.constant 0 : index
    %c0_15 = arith.constant 0 : index
    %22 = vector.load %arg5[%c0_14, %c0_15] : memref<128x1xf32, #tpu.memory_space<vmem>>, vector<128x1xf32>
    tpu.vector_store %arg5[%c0_14, %c0_15], %21 {strides = array<i32>} : memref<128x1xf32, #tpu.memory_space<vmem>>, vector<128x1xf32>,
    return
  }
  func.func @transform_0(%arg0: i32) -> (i32, i32) {
    %c0_i32 = arith.constant 0 : i32
    %c0_i32_0 = arith.constant 0 : i32
    return %arg0, %c0_i32 : i32, i32
  }
  func.func @transform_1(%arg0: i32) -> (i32, i32) {
    %c0_i32 = arith.constant 0 : i32
    %c0_i32_0 = arith.constant 0 : i32
    return %arg0, %c0_i32 : i32, i32
  }
  func.func @transform_2(%arg0: i32) -> (i32, i32) {
    %c0_i32 = arith.constant 0 : i32
    %c0_i32_0 = arith.constant 0 : i32
    return %arg0, %c0_i32 : i32, i32
  }
  func.func @transform_3(%arg0: i32) -> (i32, i32) {
    %c0_i32 = arith.constant 0 : i32
    %c0_i32_0 = arith.constant 0 : i32
    return %arg0, %c0_i32 : i32, i32
  }
  func.func @transform_4(%arg0: i32) -> (i32, i32) {
    %c0_i32 = arith.constant 0 : i32
    %c0_i32_0 = arith.constant 0 : i32
    return %arg0, %c0_i32 : i32, i32
  }
}

</mosaic_0001>

<llo_original>
// kernel: rerank_loss_forward.10
$region0: #{rerank_loss_forward.10}
  #allocation0 [shape = 'u32[]', space=smem, size = 0x4, offset = 0x4, fixed_abs, tag = 'smem constant byte address 0x4 - core index']
  #allocation1 [shape = 'u32[72,128]{1,0:T(1,128)}', space=vmem, size = 0x9000, scoped, tag = 'internal scratch']
  %s0 = inlined_call_operand.vmem [shape: f32[128,128], index: 0, kind: input, shape index: {}]
  %s1 = inlined_call_operand.vmem [shape: f32[128,128], index: 1, kind: input, shape index: {}]
  %s2 = inlined_call_operand.vmem [shape: f32[128,128], index: 2, kind: output, shape index: {}]
  %s3 = sld [smem:[#allocation0]]
  $region18: #{rerank_loss_forward.10} parent=0
    _
  %s5 = ssub.s32 1, %s3
  %s6 = scalar_select 0, %s5, %s3
  // Predicated region
  $region2: #{rerank_loss_forward.10} parent=0 // pred_check
    _
  $region3: #{rerank_loss_forward.10} parent=0 // pred_check_branch
    %8 = sbr.rel (0) target = $region5
  $region4: #{rerank_loss_forward.10} parent=0 // pred_region
    _
  $region5: #{rerank_loss_forward.10} parent=0 // pred_fallthru
    _
  // Predicated region
  $region6: #{rerank_loss_forward.10} parent=0 // pred_check
    _
  $region7: #{rerank_loss_forward.10} parent=0 // pred_check_branch
    %10 = sbr.rel (0) target = $region9
  $region8: #{rerank_loss_forward.10} parent=0 // pred_region
    _
  $region9: #{rerank_loss_forward.10} parent=0 // pred_fallthru
    _
  %v11 = vld [vmem:[%s0] sm:$0xff]
  %v12 = vld [vmem:[%s0 + $0x8] sm:$0xff]
  %v13 = vld [vmem:[%s0 + $0x10] sm:$0xff]
  %v14 = vld [vmem:[%s0 + $0x18] sm:$0xff]
  %v15 = vld [vmem:[%s0 + $0x20] sm:$0xff]
  %v16 = vld [vmem:[%s0 + $0x28] sm:$0xff]
  %v17 = vld [vmem:[%s0 + $0x30] sm:$0xff]
  %v18 = vld [vmem:[%s0 + $0x38] sm:$0xff]
  %v19 = vld [vmem:[%s0 + $0x40] sm:$0xff]
  %v20 = vld [vmem:[%s0 + $0x48] sm:$0xff]
  %v21 = vld [vmem:[%s0 + $0x50] sm:$0xff]
  %v22 = vld [vmem:[%s0 + $0x58] sm:$0xff]
  %v23 = vld [vmem:[%s0 + $0x60] sm:$0xff]
  %v24 = vld [vmem:[%s0 + $0x68] sm:$0xff]
  %v25 = vld [vmem:[%s0 + $0x70] sm:$0xff]
  %v26 = vld [vmem:[%s0 + $0x78] sm:$0xff]
  %vm27 = vcmp.gt.f32.partialorder %v11, 0.5
  %vm28 = vcmp.gt.f32.partialorder %v12, 0.5
  %vm29 = vcmp.gt.f32.partialorder %v13, 0.5
  %vm30 = vcmp.gt.f32.partialorder %v14, 0.5
  %vm31 = vcmp.gt.f32.partialorder %v15, 0.5
  %vm32 = vcmp.gt.f32.partialorder %v16, 0.5
  %vm33 = vcmp.gt.f32.partialorder %v17, 0.5
  %vm34 = vcmp.gt.f32.partialorder %v18, 0.5
  %vm35 = vcmp.gt.f32.partialorder %v19, 0.5
  %vm36 = vcmp.gt.f32.partialorder %v20, 0.5
  %vm37 = vcmp.gt.f32.partialorder %v21, 0.5
  %vm38 = vcmp.gt.f32.partialorder %v22, 0.5
  %vm39 = vcmp.gt.f32.partialorder %v23, 0.5
  %vm40 = vcmp.gt.f32.partialorder %v24, 0.5
  %vm41 = vcmp.gt.f32.partialorder %v25, 0.5
  %vm42 = vcmp.gt.f32.partialorder %v26, 0.5
  %v43 = vld [vmem:[%s1] sm:$0xff]
  %v44 = vld [vmem:[%s1 + $0x8] sm:$0xff]
  %v45 = vld [vmem:[%s1 + $0x10] sm:$0xff]
  %v46 = vld [vmem:[%s1 + $0x18] sm:$0xff]
  %v47 = vld [vmem:[%s1 + $0x20] sm:$0xff]
  %v48 = vld [vmem:[%s1 + $0x28] sm:$0xff]
  %v49 = vld [vmem:[%s1 + $0x30] sm:$0xff]
  %v50 = vld [vmem:[%s1 + $0x38] sm:$0xff]
  %v51 = vld [vmem:[%s1 + $0x40] sm:$0xff]
  %v52 = vld [vmem:[%s1 + $0x48] sm:$0xff]
  %v53 = vld [vmem:[%s1 + $0x50] sm:$0xff]
  %v54 = vld [vmem:[%s1 + $0x58] sm:$0xff]
  %v55 = vld [vmem:[%s1 + $0x60] sm:$0xff]
  %v56 = vld [vmem:[%s1 + $0x68] sm:$0xff]
  %v57 = vld [vmem:[%s1 + $0x70] sm:$0xff]
  %v58 = vld [vmem:[%s1 + $0x78] sm:$0xff]
  %v59 = vsub.f32 0.0, %v43
  %v60 = vsub.f32 0.0, %v44
  %v61 = vsub.f32 0.0, %v45
  %v62 = vsub.f32 0.0, %v46
  %v63 = vsub.f32 0.0, %v47
  %v64 = vsub.f32 0.0, %v48
  %v65 = vsub.f32 0.0, %v49
  %v66 = vsub.f32 0.0, %v50
  %v67 = vsub.f32 0.0, %v51
  %v68 = vsub.f32 0.0, %v52
  %v69 = vsub.f32 0.0, %v53
  %v70 = vsub.f32 0.0, %v54
  %v71 = vsub.f32 0.0, %v55
  %v72 = vsub.f32 0.0, %v56
  %v73 = vsub.f32 0.0, %v57
  %v74 = vsub.f32 0.0, %v58
  %v75 = vmul.f32 %v59, 1.442695
  %v76 = vpow.pop %v75
  %v77 = vmul.f32 %v60, 1.442695
  %v78 = vpow.pop %v77
  %v79 = vmul.f32 %v61, 1.442695
  %v80 = vpow.pop %v79
  %v81 = vmul.f32 %v62, 1.442695
  %v82 = vpow.pop %v81
  %v83 = vmul.f32 %v63, 1.442695
  %v84 = vpow.pop %v83
  %v85 = vmul.f32 %v64, 1.442695
  %v86 = vpow.pop %v85
  %v87 = vmul.f32 %v65, 1.442695
  %v88 = vpow.pop %v87
  %v89 = vmul.f32 %v66, 1.442695
  %v90 = vpow.pop %v89
  %v91 = vmul.f32 %v67, 1.442695
  %v92 = vpow.pop %v91
  %v93 = vmul.f32 %v68, 1.442695
  %v94 = vpow.pop %v93
  %v95 = vmul.f32 %v69, 1.442695
  %v96 = vpow.pop %v95
  %v97 = vmul.f32 %v70, 1.442695
  %v98 = vpow.pop %v97
  %v99 = vmul.f32 %v71, 1.442695
  %v100 = vpow.pop %v99
  %v101 = vmul.f32 %v72, 1.442695
  %v102 = vpow.pop %v101
  %v103 = vmul.f32 %v73, 1.442695
  %v104 = vpow.pop %v103
  %v105 = vmul.f32 %v74, 1.442695
  %v106 = vpow.pop %v105
  %v107 = vsel %vm27, %v76, 0.0
  %v108 = vsel %vm28, %v78, 0.0
  %v109 = vsel %vm29, %v80, 0.0
  %v110 = vsel %vm30, %v82, 0.0
  %v111 = vsel %vm31, %v84, 0.0
  %v112 = vsel %vm32, %v86, 0.0
  %v113 = vsel %vm33, %v88, 0.0
  %v114 = vsel %vm34, %v90, 0.0
  %v115 = vsel %vm35, %v92, 0.0
  %v116 = vsel %vm36, %v94, 0.0
  %v117 = vsel %vm37, %v96, 0.0
  %v118 = vsel %vm38, %v98, 0.0
  %v119 = vsel %vm39, %v100, 0.0
  %v120 = vsel %vm40, %v102, 0.0
  %v121 = vsel %vm41, %v104, 0.0
  %v122 = vsel %vm42, %v106, 0.0
  %123 = vadd.xlane.f32.xlu0 %v107
  %v124 = vpop.xlane.xlu0 %123
  %125 = vadd.xlane.f32.xlu0 %v108
  %v126 = vpop.xlane.xlu0 %125
  %127 = vadd.xlane.f32.xlu0 %v109
  %v128 = vpop.xlane.xlu0 %127
  %129 = vadd.xlane.f32.xlu0 %v110
  %v130 = vpop.xlane.xlu0 %129
  %131 = vadd.xlane.f32.xlu0 %v111
  %v132 = vpop.xlane.xlu0 %131
  %133 = vadd.xlane.f32.xlu0 %v112
  %v134 = vpop.xlane.xlu0 %133
  %135 = vadd.xlane.f32.xlu0 %v113
  %v136 = vpop.xlane.xlu0 %135
  %137 = vadd.xlane.f32.xlu0 %v114
  %v138 = vpop.xlane.xlu0 %137
  %139 = vadd.xlane.f32.xlu0 %v115
  %v140 = vpop.xlane.xlu0 %139
  %141 = vadd.xlane.f32.xlu0 %v116
  %v142 = vpop.xlane.xlu0 %141
  %143 = vadd.xlane.f32.xlu0 %v117
  %v144 = vpop.xlane.xlu0 %143
  %145 = vadd.xlane.f32.xlu0 %v118
  %v146 = vpop.xlane.xlu0 %145
  %147 = vadd.xlane.f32.xlu0 %v119
  %v148 = vpop.xlane.xlu0 %147
  %149 = vadd.xlane.f32.xlu0 %v120
  %v150 = vpop.xlane.xlu0 %149
  %151 = vadd.xlane.f32.xlu0 %v121
  %v152 = vpop.xlane.xlu0 %151
  %153 = vadd.xlane.f32.xlu0 %v122
  %v154 = vpop.xlane.xlu0 %153
  %vm155 = vcmp.gt.f32.partialorder %v124, 0.0
  %vm156 = vcmp.gt.f32.partialorder %v126, 0.0
  %vm157 = vcmp.gt.f32.partialorder %v128, 0.0
  %vm158 = vcmp.gt.f32.partialorder %v130, 0.0
  %vm159 = vcmp.gt.f32.partialorder %v132, 0.0
  %vm160 = vcmp.gt.f32.partialorder %v134, 0.0
  %vm161 = vcmp.gt.f32.partialorder %v136, 0.0
  %vm162 = vcmp.gt.f32.partialorder %v138, 0.0
  %vm163 = vcmp.gt.f32.partialorder %v140, 0.0
  %vm164 = vcmp.gt.f32.partialorder %v142, 0.0
  %vm165 = vcmp.gt.f32.partialorder %v144, 0.0
  %vm166 = vcmp.gt.f32.partialorder %v146, 0.0
  %vm167 = vcmp.gt.f32.partialorder %v148, 0.0
  %vm168 = vcmp.gt.f32.partialorder %v150, 0.0
  %vm169 = vcmp.gt.f32.partialorder %v152, 0.0
  %vm170 = vcmp.gt.f32.partialorder %v154, 0.0
  %v171 = vrcp.pop %v124
  %v172 = vmul.f32 %v124, %v171
  %v173 = vsub.f32 1.0, %v172
  %v174 = vmul.f32 %v171, %v173
  %v175 = vadd.f32 %v171, %v174
  %vm176 = vweird.f32 %v124
  %vm177 = vweird.f32 %v171
  %vm178 = vmor %vm176, %vm177
  %v179 = vsel %vm178, %v171, %v175
  %v180 = vand.u32 2147483647, %v124
  %vm181 = vcmp.eq.f32.partialorder %v180, 8.507059e+37
  %v182 = vand.u32 %v124, 2147483648
  %v183 = vor.u32 1.1754944e-38, %v182
  %v184 = vsel %vm181, %v183, %v179
  %v185 = vmul.f32 %v107, %v184
  %v186 = vrcp.pop %v126
  %v187 = vmul.f32 %v126, %v186
  %v188 = vsub.f32 1.0, %v187
  %v189 = vmul.f32 %v186, %v188
  %v190 = vadd.f32 %v186, %v189
  %vm191 = vweird.f32 %v126
  %vm192 = vweird.f32 %v186
  %vm193 = vmor %vm191, %vm192
  %v194 = vsel %vm193, %v186, %v190
  %v195 = vand.u32 2147483647, %v126
  %vm196 = vcmp.eq.f32.partialorder %v195, 8.507059e+37
  %v197 = vand.u32 %v126, 2147483648
  %v198 = vor.u32 1.1754944e-38, %v197
  %v199 = vsel %vm196, %v198, %v194
  %v200 = vmul.f32 %v108, %v199
  %v201 = vrcp.pop %v128
  %v202 = vmul.f32 %v128, %v201
  %v203 = vsub.f32 1.0, %v202
  %v204 = vmul.f32 %v201, %v203
  %v205 = vadd.f32 %v201, %v204
  %vm206 = vweird.f32 %v128
  %vm207 = vweird.f32 %v201
  %vm208 = vmor %vm206, %vm207
  %v209 = vsel %vm208, %v201, %v205
  %v210 = vand.u32 2147483647, %v128
  %vm211 = vcmp.eq.f32.partialorder %v210, 8.507059e+37
  %v212 = vand.u32 %v128, 2147483648
  %v213 = vor.u32 1.1754944e-38, %v212
  %v214 = vsel %vm211, %v213, %v209
  %v215 = vmul.f32 %v109, %v214
  %v216 = vrcp.pop %v130
  %v217 = vmul.f32 %v130, %v216
  %v218 = vsub.f32 1.0, %v217
  %v219 = vmul.f32 %v216, %v218
  %v220 = vadd.f32 %v216, %v219
  %vm221 = vweird.f32 %v130
  %vm222 = vweird.f32 %v216
  %vm223 = vmor %vm221, %vm222
  %v224 = vsel %vm223, %v216, %v220
  %v225 = vand.u32 2147483647, %v130
  %vm226 = vcmp.eq.f32.partialorder %v225, 8.507059e+37
  %v227 = vand.u32 %v130, 2147483648
  %v228 = vor.u32 1.1754944e-38, %v227
  %v229 = vsel %vm226, %v228, %v224
  %v230 = vmul.f32 %v110, %v229
  %v231 = vrcp.pop %v132
  %v232 = vmul.f32 %v132, %v231
  %v233 = vsub.f32 1.0, %v232
  %v234 = vmul.f32 %v231, %v233
  %v235 = vadd.f32 %v231, %v234
  %vm236 = vweird.f32 %v132
  %vm237 = vweird.f32 %v231
  %vm238 = vmor %vm236, %vm237
  %v239 = vsel %vm238, %v231, %v235
  %v240 = vand.u32 2147483647, %v132
  %vm241 = vcmp.eq.f32.partialorder %v240, 8.507059e+37
  %v242 = vand.u32 %v132, 2147483648
  %v243 = vor.u32 1.1754944e-38, %v242
  %v244 = vsel %vm241, %v243, %v239
  %v245 = vmul.f32 %v111, %v244
  %v246 = vrcp.pop %v134
  %v247 = vmul.f32 %v134, %v246
  %v248 = vsub.f32 1.0, %v247
  %v249 = vmul.f32 %v246, %v248
  %v250 = vadd.f32 %v246, %v249
  %vm251 = vweird.f32 %v134
  %vm252 = vweird.f32 %v246
  %vm253 = vmor %vm251, %vm252
  %v254 = vsel %vm253, %v246, %v250
  %v255 = vand.u32 2147483647, %v134
  %vm256 = vcmp.eq.f32.partialorder %v255, 8.507059e+37
  %v257 = vand.u32 %v134, 2147483648
  %v258 = vor.u32 1.1754944e-38, %v257
  %v259 = vsel %vm256, %v258, %v254
  %v260 = vmul.f32 %v112, %v259
  %v261 = vrcp.pop %v136
  %v262 = vmul.f32 %v136, %v261
  %v263 = vsub.f32 1.0, %v262
  %v264 = vmul.f32 %v261, %v263
  %v265 = vadd.f32 %v261, %v264
  %vm266 = vweird.f32 %v136
  %vm267 = vweird.f32 %v261
  %vm268 = vmor %vm266, %vm267
  %v269 = vsel %vm268, %v261, %v265
  %v270 = vand.u32 2147483647, %v136
  %vm271 = vcmp.eq.f32.partialorder %v270, 8.507059e+37
  %v272 = vand.u32 %v136, 2147483648
  %v273 = vor.u32 1.1754944e-38, %v272
  %v274 = vsel %vm271, %v273, %v269
  %v275 = vmul.f32 %v113, %v274
  %v276 = vrcp.pop %v138
  %v277 = vmul.f32 %v138, %v276
  %v278 = vsub.f32 1.0, %v277
  %v279 = vmul.f32 %v276, %v278
  %v280 = vadd.f32 %v276, %v279
  %vm281 = vweird.f32 %v138
  %vm282 = vweird.f32 %v276
  %vm283 = vmor %vm281, %vm282
  %v284 = vsel %vm283, %v276, %v280
  %v285 = vand.u32 2147483647, %v138
  %vm286 = vcmp.eq.f32.partialorder %v285, 8.507059e+37
  %v287 = vand.u32 %v138, 2147483648
  %v288 = vor.u32 1.1754944e-38, %v287
  %v289 = vsel %vm286, %v288, %v284
  %v290 = vmul.f32 %v114, %v289
  %v291 = vrcp.pop %v140
  %v292 = vmul.f32 %v140, %v291
  %v293 = vsub.f32 1.0, %v292
  %v294 = vmul.f32 %v291, %v293
  %v295 = vadd.f32 %v291, %v294
  %vm296 = vweird.f32 %v140
  %vm297 = vweird.f32 %v291
  %vm298 = vmor %vm296, %vm297
  %v299 = vsel %vm298, %v291, %v295
  %v300 = vand.u32 2147483647, %v140
  %vm301 = vcmp.eq.f32.partialorder %v300, 8.507059e+37
  %v302 = vand.u32 %v140, 2147483648
  %v303 = vor.u32 1.1754944e-38, %v302
  %v304 = vsel %vm301, %v303, %v299
  %v305 = vmul.f32 %v115, %v304
  %v306 = vrcp.pop %v142
  %v307 = vmul.f32 %v142, %v306
  %v308 = vsub.f32 1.0, %v307
  %v309 = vmul.f32 %v306, %v308
  %v310 = vadd.f32 %v306, %v309
  %vm311 = vweird.f32 %v142
  %vm312 = vweird.f32 %v306
  %vm313 = vmor %vm311, %vm312
  %v314 = vsel %vm313, %v306, %v310
  %v315 = vand.u32 2147483647, %v142
  %vm316 = vcmp.eq.f32.partialorder %v315, 8.507059e+37
  %v317 = vand.u32 %v142, 2147483648
  %v318 = vor.u32 1.1754944e-38, %v317
  %v319 = vsel %vm316, %v318, %v314
  %v320 = vmul.f32 %v116, %v319
  %v321 = vrcp.pop %v144
  %v322 = vmul.f32 %v144, %v321
  %v323 = vsub.f32 1.0, %v322
  %v324 = vmul.f32 %v321, %v323
  %v325 = vadd.f32 %v321, %v324
  %vm326 = vweird.f32 %v144
  %vm327 = vweird.f32 %v321
  %vm328 = vmor %vm326, %vm327
  %v329 = vsel %vm328, %v321, %v325
  %v330 = vand.u32 2147483647, %v144
  %vm331 = vcmp.eq.f32.partialorder %v330, 8.507059e+37
  %v332 = vand.u32 %v144, 2147483648
  %v333 = vor.u32 1.1754944e-38, %v332
  %v334 = vsel %vm331, %v333, %v329
  %v335 = vmul.f32 %v117, %v334
  %v336 = vrcp.pop %v146
  %v337 = vmul.f32 %v146, %v336
  %v338 = vsub.f32 1.0, %v337
  %v339 = vmul.f32 %v336, %v338
  %v340 = vadd.f32 %v336, %v339
  %vm341 = vweird.f32 %v146
  %vm342 = vweird.f32 %v336
  %vm343 = vmor %vm341, %vm342
  %v344 = vsel %vm343, %v336, %v340
  %v345 = vand.u32 2147483647, %v146
  %vm346 = vcmp.eq.f32.partialorder %v345, 8.507059e+37
  %v347 = vand.u32 %v146, 2147483648
  %v348 = vor.u32 1.1754944e-38, %v347
  %v349 = vsel %vm346, %v348, %v344
  %v350 = vmul.f32 %v118, %v349
  %v351 = vrcp.pop %v148
  %v352 = vmul.f32 %v148, %v351
  %v353 = vsub.f32 1.0, %v352
  %v354 = vmul.f32 %v351, %v353
  %v355 = vadd.f32 %v351, %v354
  %vm356 = vweird.f32 %v148
  %vm357 = vweird.f32 %v351
  %vm358 = vmor %vm356, %vm357
  %v359 = vsel %vm358, %v351, %v355
  %v360 = vand.u32 2147483647, %v148
  %vm361 = vcmp.eq.f32.partialorder %v360, 8.507059e+37
  %v362 = vand.u32 %v148, 2147483648
  %v363 = vor.u32 1.1754944e-38, %v362
  %v364 = vsel %vm361, %v363, %v359
  %v365 = vmul.f32 %v119, %v364
  %v366 = vrcp.pop %v150
  %v367 = vmul.f32 %v150, %v366
  %v368 = vsub.f32 1.0, %v367
  %v369 = vmul.f32 %v366, %v368
  %v370 = vadd.f32 %v366, %v369
  %vm371 = vweird.f32 %v150
  %vm372 = vweird.f32 %v366
  %vm373 = vmor %vm371, %vm372
  %v374 = vsel %vm373, %v366, %v370
  %v375 = vand.u32 2147483647, %v150
  %vm376 = vcmp.eq.f32.partialorder %v375, 8.507059e+37
  %v377 = vand.u32 %v150, 2147483648
  %v378 = vor.u32 1.1754944e-38, %v377
  %v379 = vsel %vm376, %v378, %v374
  %v380 = vmul.f32 %v120, %v379
  %v381 = vrcp.pop %v152
  %v382 = vmul.f32 %v152, %v381
  %v383 = vsub.f32 1.0, %v382
  %v384 = vmul.f32 %v381, %v383
  %v385 = vadd.f32 %v381, %v384
  %vm386 = vweird.f32 %v152
  %vm387 = vweird.f32 %v381
  %vm388 = vmor %vm386, %vm387
  %v389 = vsel %vm388, %v381, %v385
  %v390 = vand.u32 2147483647, %v152
  %vm391 = vcmp.eq.f32.partialorder %v390, 8.507059e+37
  %v392 = vand.u32 %v152, 2147483648
  %v393 = vor.u32 1.1754944e-38, %v392
  %v394 = vsel %vm391, %v393, %v389
  %v395 = vmul.f32 %v121, %v394
  %v396 = vrcp.pop %v154
  %v397 = vmul.f32 %v154, %v396
  %v398 = vsub.f32 1.0, %v397
  %v399 = vmul.f32 %v396, %v398
  %v400 = vadd.f32 %v396, %v399
  %vm401 = vweird.f32 %v154
  %vm402 = vweird.f32 %v396
  %vm403 = vmor %vm401, %vm402
  %v404 = vsel %vm403, %v396, %v400
  %v405 = vand.u32 2147483647, %v154
  %vm406 = vcmp.eq.f32.partialorder %v405, 8.507059e+37
  %v407 = vand.u32 %v154, 2147483648
  %v408 = vor.u32 1.1754944e-38, %v407
  %v409 = vsel %vm406, %v408, %v404
  %v410 = vmul.f32 %v122, %v409
  %v411 = vsel %vm155, 1, 0
  %v412 = vsel %vm156, 1, 0
  %v413 = vsel %vm157, 1, 0
  %v414 = vsel %vm158, 1, 0
  %v415 = vsel %vm159, 1, 0
  %v416 = vsel %vm160, 1, 0
  %v417 = vsel %vm161, 1, 0
  %v418 = vsel %vm162, 1, 0
  %v419 = vsel %vm163, 1, 0
  %v420 = vsel %vm164, 1, 0
  %v421 = vsel %vm165, 1, 0
  %v422 = vsel %vm166, 1, 0
  %v423 = vsel %vm167, 1, 0
  %v424 = vsel %vm168, 1, 0
  %v425 = vsel %vm169, 1, 0
  %v426 = vsel %vm170, 1, 0
  %vm427 = vcmp.eq.s32.totalorder %v411, 1
  %vm428 = vcmp.eq.s32.totalorder %v412, 1
  %vm429 = vcmp.eq.s32.totalorder %v413, 1
  %vm430 = vcmp.eq.s32.totalorder %v414, 1
  %vm431 = vcmp.eq.s32.totalorder %v415, 1
  %vm432 = vcmp.eq.s32.totalorder %v416, 1
  %vm433 = vcmp.eq.s32.totalorder %v417, 1
  %vm434 = vcmp.eq.s32.totalorder %v418, 1
  %vm435 = vcmp.eq.s32.totalorder %v419, 1
  %vm436 = vcmp.eq.s32.totalorder %v420, 1
  %vm437 = vcmp.eq.s32.totalorder %v421, 1
  %vm438 = vcmp.eq.s32.totalorder %v422, 1
  %vm439 = vcmp.eq.s32.totalorder %v423, 1
  %vm440 = vcmp.eq.s32.totalorder %v424, 1
  %vm441 = vcmp.eq.s32.totalorder %v425, 1
  %vm442 = vcmp.eq.s32.totalorder %v426, 1
  %v443 = vsel %vm427, %v185, 0.0
  %v444 = vsel %vm428, %v200, 0.0
  %v445 = vsel %vm429, %v215, 0.0
  %v446 = vsel %vm430, %v230, 0.0
  %v447 = vsel %vm431, %v245, 0.0
  %v448 = vsel %vm432, %v260, 0.0
  %v449 = vsel %vm433, %v275, 0.0
  %v450 = vsel %vm434, %v290, 0.0
  %v451 = vsel %vm435, %v305, 0.0
  %v452 = vsel %vm436, %v320, 0.0
  %v453 = vsel %vm437, %v335, 0.0
  %v454 = vsel %vm438, %v350, 0.0
  %v455 = vsel %vm439, %v365, 0.0
  %v456 = vsel %vm440, %v380, 0.0
  %v457 = vsel %vm441, %v395, 0.0
  %v458 = vsel %vm442, %v410, 0.0
  %459 = vst [vmem:[%s2] sm:$0xff] %v443
  %460 = vst [vmem:[%s2 + $0x8] sm:$0xff] %v444
  %461 = vst [vmem:[%s2 + $0x10] sm:$0xff] %v445
  %462 = vst [vmem:[%s2 + $0x18] sm:$0xff] %v446
  %463 = vst [vmem:[%s2 + $0x20] sm:$0xff] %v447
  %464 = vst [vmem:[%s2 + $0x28] sm:$0xff] %v448
  %465 = vst [vmem:[%s2 + $0x30] sm:$0xff] %v449
  %466 = vst [vmem:[%s2 + $0x38] sm:$0xff] %v450
  %467 = vst [vmem:[%s2 + $0x40] sm:$0xff] %v451
  %468 = vst [vmem:[%s2 + $0x48] sm:$0xff] %v452
  %469 = vst [vmem:[%s2 + $0x50] sm:$0xff] %v453
  %470 = vst [vmem:[%s2 + $0x58] sm:$0xff] %v454
  %471 = vst [vmem:[%s2 + $0x60] sm:$0xff] %v455
  %472 = vst [vmem:[%s2 + $0x68] sm:$0xff] %v456
  %473 = vst [vmem:[%s2 + $0x70] sm:$0xff] %v457
  %474 = vst [vmem:[%s2 + $0x78] sm:$0xff] %v458
  // Predicated region
  $region10: #{rerank_loss_forward.10} parent=0 // pred_check
    _
  $region11: #{rerank_loss_forward.10} parent=0 // pred_check_branch
    %476 = sbr.rel (0) target = $region13
  $region12: #{rerank_loss_forward.10} parent=0 // pred_region
    _
  $region13: #{rerank_loss_forward.10} parent=0 // pred_fallthru
    _
  // Predicated region
  $region14: #{rerank_loss_forward.10} parent=0 // pred_check
    _
  $region15: #{rerank_loss_forward.10} parent=0 // pred_check_branch
    %478 = sbr.rel (0) target = $region17
  $region16: #{rerank_loss_forward.10} parent=0 // pred_region
    _
  $region17: #{rerank_loss_forward.10} parent=0 // pred_fallthru
    _

// kernel: rerank_loss_forward.8
$region0: #{rerank_loss_forward.8}
  #allocation0 [shape = 'u32[]', space=smem, size = 0x4, offset = 0x4, fixed_abs, tag = 'smem constant byte address 0x4 - core index']
  #allocation1 [shape = 'u32[72,128]{1,0:T(1,128)}', space=vmem, size = 0x9000, scoped, tag = 'internal scratch']
  #allocation2 [shape = 'f32[256,256]{1,0:T(8,128)}', space=vmem, size = 0x40000, scoped, tag = 'scratch operand']
  %s0 = inlined_call_operand.vmem [shape: bf16[256,256], index: 0, kind: input, shape index: {}]
  %s1 = inlined_call_operand.vmem [shape: bf16[256,256], index: 1, kind: input, shape index: {}]
  %s2 = inlined_call_operand.vmem [shape: f32[256,256], index: 2, kind: output, shape index: {}]
  %s3 = sld [smem:[#allocation0]]
  $region26: #{rerank_loss_forward.8} parent=0
    _
  %s5 = ssub.s32 1, %s3
  %s6 = scalar_select 0, %s5, %s3
  // Predicated region
  $region2: #{rerank_loss_forward.8} parent=0 // pred_check
    _
  $region3: #{rerank_loss_forward.8} parent=0 // pred_check_branch
    %8 = sbr.rel (0) target = $region5
  $region4: #{rerank_loss_forward.8} parent=0 // pred_region
    _
  $region5: #{rerank_loss_forward.8} parent=0 // pred_fallthru
    _
  // Predicated region
  $region6: #{rerank_loss_forward.8} parent=0 // pred_check
    _
  $region7: #{rerank_loss_forward.8} parent=0 // pred_check_branch
    %10 = sbr.rel (0) target = $region9
  $region8: #{rerank_loss_forward.8} parent=0 // pred_region
    _
  $region9: #{rerank_loss_forward.8} parent=0 // pred_fallthru
    _
  %p11 = scmp.eq.s32.totalorder 0, 0
  // Predicated region
  $region10: #{rerank_loss_forward.8} parent=0 // pred_check
    %p12 = pneg %p11
  $region11: #{rerank_loss_forward.8} parent=0 // pred_check_branch
    %14 = sbr.rel (%p12) target = $region13
  $region12: #{rerank_loss_forward.8} parent=0 // pred_region
    %15 = vst [vmem:[#allocation2] sm:$0xff] 0.0
    %16 = vst [vmem:[#allocation2 + $0x8] sm:$0xff] 0.0
    %17 = vst [vmem:[#allocation2 + $0x10] sm:$0xff] 0.0
    %18 = vst [vmem:[#allocation2 + $0x18] sm:$0xff] 0.0
    %19 = vst [vmem:[#allocation2 + $0x20] sm:$0xff] 0.0
    %20 = vst [vmem:[#allocation2 + $0x28] sm:$0xff] 0.0
    %21 = vst [vmem:[#allocation2 + $0x30] sm:$0xff] 0.0
    %22 = vst [vmem:[#allocation2 + $0x38] sm:$0xff] 0.0
    %23 = vst [vmem:[#allocation2 + $0x40] sm:$0xff] 0.0
    %24 = vst [vmem:[#allocation2 + $0x48] sm:$0xff] 0.0
    %25 = vst [vmem:[#allocation2 + $0x50] sm:$0xff] 0.0
    %26 = vst [vmem:[#allocation2 + $0x58] sm:$0xff] 0.0
    %27 = vst [vmem:[#allocation2 + $0x60] sm:$0xff] 0.0
    %28 = vst [vmem:[#allocation2 + $0x68] sm:$0xff] 0.0
    %29 = vst [vmem:[#allocation2 + $0x70] sm:$0xff] 0.0
    %30 = vst [vmem:[#allocation2 + $0x78] sm:$0xff] 0.0
    %31 = vst [vmem:[#allocation2 + $0x80] sm:$0xff] 0.0
    %32 = vst [vmem:[#allocation2 + $0x88] sm:$0xff] 0.0
    %33 = vst [vmem:[#allocation2 + $0x90] sm:$0xff] 0.0
    %34 = vst [vmem:[#allocation2 + $0x98] sm:$0xff] 0.0
    %35 = vst [vmem:[#allocation2 + $0xa0] sm:$0xff] 0.0
    %36 = vst [vmem:[#allocation2 + $0xa8] sm:$0xff] 0.0
    %37 = vst [vmem:[#allocation2 + $0xb0] sm:$0xff] 0.0
    %38 = vst [vmem:[#allocation2 + $0xb8] sm:$0xff] 0.0
    %39 = vst [vmem:[#allocation2 + $0xc0] sm:$0xff] 0.0
    %40 = vst [vmem:[#allocation2 + $0xc8] sm:$0xff] 0.0
    %41 = vst [vmem:[#allocation2 + $0xd0] sm:$0xff] 0.0
    %42 = vst [vmem:[#allocation2 + $0xd8] sm:$0xff] 0.0
    %43 = vst [vmem:[#allocation2 + $0xe0] sm:$0xff] 0.0
    %44 = vst [vmem:[#allocation2 + $0xe8] sm:$0xff] 0.0
    %45 = vst [vmem:[#allocation2 + $0xf0] sm:$0xff] 0.0
    %46 = vst [vmem:[#allocation2 + $0xf8] sm:$0xff] 0.0
    %47 = vst [vmem:[#allocation2 + $0x100] sm:$0xff] 0.0
    %48 = vst [vmem:[#allocation2 + $0x108] sm:$0xff] 0.0
    %49 = vst [vmem:[#allocation2 + $0x110] sm:$0xff] 0.0
    %50 = vst [vmem:[#allocation2 + $0x118] sm:$0xff] 0.0
    %51 = vst [vmem:[#allocation2 + $0x120] sm:$0xff] 0.0
    %52 = vst [vmem:[#allocation2 + $0x128] sm:$0xff] 0.0
    %53 = vst [vmem:[#allocation2 + $0x130] sm:$0xff] 0.0
    %54 = vst [vmem:[#allocation2 + $0x138] sm:$0xff] 0.0
    %55 = vst [vmem:[#allocation2 + $0x140] sm:$0xff] 0.0
    %56 = vst [vmem:[#allocation2 + $0x148] sm:$0xff] 0.0
    %57 = vst [vmem:[#allocation2 + $0x150] sm:$0xff] 0.0
    %58 = vst [vmem:[#allocation2 + $0x158] sm:$0xff] 0.0
    %59 = vst [vmem:[#allocation2 + $0x160] sm:$0xff] 0.0
    %60 = vst [vmem:[#allocation2 + $0x168] sm:$0xff] 0.0
    %61 = vst [vmem:[#allocation2 + $0x170] sm:$0xff] 0.0
    %62 = vst [vmem:[#allocation2 + $0x178] sm:$0xff] 0.0
    %63 = vst [vmem:[#allocation2 + $0x180] sm:$0xff] 0.0
    %64 = vst [vmem:[#allocation2 + $0x188] sm:$0xff] 0.0
    %65 = vst [vmem:[#allocation2 + $0x190] sm:$0xff] 0.0
    %66 = vst [vmem:[#allocation2 + $0x198] sm:$0xff] 0.0
    %67 = vst [vmem:[#allocation2 + $0x1a0] sm:$0xff] 0.0
    %68 = vst [vmem:[#allocation2 + $0x1a8] sm:$0xff] 0.0
    %69 = vst [vmem:[#allocation2 + $0x1b0] sm:$0xff] 0.0
    %70 = vst [vmem:[#allocation2 + $0x1b8] sm:$0xff] 0.0
    %71 = vst [vmem:[#allocation2 + $0x1c0] sm:$0xff] 0.0
    %72 = vst [vmem:[#allocation2 + $0x1c8] sm:$0xff] 0.0
    %73 = vst [vmem:[#allocation2 + $0x1d0] sm:$0xff] 0.0
    %74 = vst [vmem:[#allocation2 + $0x1d8] sm:$0xff] 0.0
    %75 = vst [vmem:[#allocation2 + $0x1e0] sm:$0xff] 0.0
    %76 = vst [vmem:[#allocation2 + $0x1e8] sm:$0xff] 0.0
    %77 = vst [vmem:[#allocation2 + $0x1f0] sm:$0xff] 0.0
    %78 = vst [vmem:[#allocation2 + $0x1f8] sm:$0xff] 0.0
  $region13: #{rerank_loss_forward.8} parent=0 // pred_fallthru
    _
  %v79 = vld [vmem:[#allocation2] sm:$0xff]
  %v80 = vld [vmem:[#allocation2 + $0x8] sm:$0xff]
  %v81 = vld [vmem:[#allocation2 + $0x10] sm:$0xff]
  %v82 = vld [vmem:[#allocation2 + $0x18] sm:$0xff]
  %v83 = vld [vmem:[#allocation2 + $0x20] sm:$0xff]
  %v84 = vld [vmem:[#allocation2 + $0x28] sm:$0xff]
  %v85 = vld [vmem:[#allocation2 + $0x30] sm:$0xff]
  %v86 = vld [vmem:[#allocation2 + $0x38] sm:$0xff]
  %v87 = vld [vmem:[#allocation2 + $0x40] sm:$0xff]
  %v88 = vld [vmem:[#allocation2 + $0x48] sm:$0xff]
  %v89 = vld [vmem:[#allocation2 + $0x50] sm:$0xff]
  %v90 = vld [vmem:[#allocation2 + $0x58] sm:$0xff]
  %v91 = vld [vmem:[#allocation2 + $0x60] sm:$0xff]
  %v92 = vld [vmem:[#allocation2 + $0x68] sm:$0xff]
  %v93 = vld [vmem:[#allocation2 + $0x70] sm:$0xff]
  %v94 = vld [vmem:[#allocation2 + $0x78] sm:$0xff]
  %v95 = vld [vmem:[#allocation2 + $0x80] sm:$0xff]
  %v96 = vld [vmem:[#allocation2 + $0x88] sm:$0xff]
  %v97 = vld [vmem:[#allocation2 + $0x90] sm:$0xff]
  %v98 = vld [vmem:[#allocation2 + $0x98] sm:$0xff]
  %v99 = vld [vmem:[#allocation2 + $0xa0] sm:$0xff]
  %v100 = vld [vmem:[#allocation2 + $0xa8] sm:$0xff]
  %v101 = vld [vmem:[#allocation2 + $0xb0] sm:$0xff]
  %v102 = vld [vmem:[#allocation2 + $0xb8] sm:$0xff]
  %v103 = vld [vmem:[#allocation2 + $0xc0] sm:$0xff]
  %v104 = vld [vmem:[#allocation2 + $0xc8] sm:$0xff]
  %v105 = vld [vmem:[#allocation2 + $0xd0] sm:$0xff]
  %v106 = vld [vmem:[#allocation2 + $0xd8] sm:$0xff]
  %v107 = vld [vmem:[#allocation2 + $0xe0] sm:$0xff]
  %v108 = vld [vmem:[#allocation2 + $0xe8] sm:$0xff]
  %v109 = vld [vmem:[#allocation2 + $0xf0] sm:$0xff]
  %v110 = vld [vmem:[#allocation2 + $0xf8] sm:$0xff]
  %v111 = vld [vmem:[#allocation2 + $0x100] sm:$0xff]
  %v112 = vld [vmem:[#allocation2 + $0x108] sm:$0xff]
  %v113 = vld [vmem:[#allocation2 + $0x110] sm:$0xff]
  %v114 = vld [vmem:[#allocation2 + $0x118] sm:$0xff]
  %v115 = vld [vmem:[#allocation2 + $0x120] sm:$0xff]
  %v116 = vld [vmem:[#allocation2 + $0x128] sm:$0xff]
  %v117 = vld [vmem:[#allocation2 + $0x130] sm:$0xff]
  %v118 = vld [vmem:[#allocation2 + $0x138] sm:$0xff]
  %v119 = vld [vmem:[#allocation2 + $0x140] sm:$0xff]
  %v120 = vld [vmem:[#allocation2 + $0x148] sm:$0xff]
  %v121 = vld [vmem:[#allocation2 + $0x150] sm:$0xff]
  %v122 = vld [vmem:[#allocation2 + $0x158] sm:$0xff]
  %v123 = vld [vmem:[#allocation2 + $0x160] sm:$0xff]
  %v124 = vld [vmem:[#allocation2 + $0x168] sm:$0xff]
  %v125 = vld [vmem:[#allocation2 + $0x170] sm:$0xff]
  %v126 = vld [vmem:[#allocation2 + $0x178] sm:$0xff]
  %v127 = vld [vmem:[#allocation2 + $0x180] sm:$0xff]
  %v128 = vld [vmem:[#allocation2 + $0x188] sm:$0xff]
  %v129 = vld [vmem:[#allocation2 + $0x190] sm:$0xff]
  %v130 = vld [vmem:[#allocation2 + $0x198] sm:$0xff]
  %v131 = vld [vmem:[#allocation2 + $0x1a0] sm:$0xff]
  %v132 = vld [vmem:[#allocation2 + $0x1a8] sm:$0xff]
  %v133 = vld [vmem:[#allocation2 + $0x1b0] sm:$0xff]
  %v134 = vld [vmem:[#allocation2 + $0x1b8] sm:$0xff]
  %v135 = vld [vmem:[#allocation2 + $0x1c0] sm:$0xff]
  %v136 = vld [vmem:[#allocation2 + $0x1c8] sm:$0xff]
  %v137 = vld [vmem:[#allocation2 + $0x1d0] sm:$0xff]
  %v138 = vld [vmem:[#allocation2 + $0x1d8] sm:$0xff]
  %v139 = vld [vmem:[#allocation2 + $0x1e0] sm:$0xff]
  %v140 = vld [vmem:[#allocation2 + $0x1e8] sm:$0xff]
  %v141 = vld [vmem:[#allocation2 + $0x1f0] sm:$0xff]
  %v142 = vld [vmem:[#allocation2 + $0x1f8] sm:$0xff]
  %v143 = vld [vmem:[%s0] sm:$0xff]
  %v144 = vld [vmem:[%s0 + $0x8] sm:$0xff]
  %v145 = vld [vmem:[%s0 + $0x10] sm:$0xff]
  %v146 = vld [vmem:[%s0 + $0x18] sm:$0xff]
  %v147 = vld [vmem:[%s0 + $0x20] sm:$0xff]
  %v148 = vld [vmem:[%s0 + $0x28] sm:$0xff]
  %v149 = vld [vmem:[%s0 + $0x30] sm:$0xff]
  %v150 = vld [vmem:[%s0 + $0x38] sm:$0xff]
  %v151 = vld [vmem:[%s0 + $0x40] sm:$0xff]
  %v152 = vld [vmem:[%s0 + $0x48] sm:$0xff]
  %v153 = vld [vmem:[%s0 + $0x50] sm:$0xff]
  %v154 = vld [vmem:[%s0 + $0x58] sm:$0xff]
  %v155 = vld [vmem:[%s0 + $0x60] sm:$0xff]
  %v156 = vld [vmem:[%s0 + $0x68] sm:$0xff]
  %v157 = vld [vmem:[%s0 + $0x70] sm:$0xff]
  %v158 = vld [vmem:[%s0 + $0x78] sm:$0xff]
  %v159 = vld [vmem:[%s0 + $0x80] sm:$0xff]
  %v160 = vld [vmem:[%s0 + $0x88] sm:$0xff]
  %v161 = vld [vmem:[%s0 + $0x90] sm:$0xff]
  %v162 = vld [vmem:[%s0 + $0x98] sm:$0xff]
  %v163 = vld [vmem:[%s0 + $0xa0] sm:$0xff]
  %v164 = vld [vmem:[%s0 + $0xa8] sm:$0xff]
  %v165 = vld [vmem:[%s0 + $0xb0] sm:$0xff]
  %v166 = vld [vmem:[%s0 + $0xb8] sm:$0xff]
  %v167 = vld [vmem:[%s0 + $0xc0] sm:$0xff]
  %v168 = vld [vmem:[%s0 + $0xc8] sm:$0xff]
  %v169 = vld [vmem:[%s0 + $0xd0] sm:$0xff]
  %v170 = vld [vmem:[%s0 + $0xd8] sm:$0xff]
  %v171 = vld [vmem:[%s0 + $0xe0] sm:$0xff]
  %v172 = vld [vmem:[%s0 + $0xe8] sm:$0xff]
  %v173 = vld [vmem:[%s0 + $0xf0] sm:$0xff]
  %v174 = vld [vmem:[%s0 + $0xf8] sm:$0xff]
  %v175 = vld [vmem:[%s1] sm:$0xff]
  %v176 = vld [vmem:[%s1 + $0x8] sm:$0xff]
  %v177 = vld [vmem:[%s1 + $0x10] sm:$0xff]
  %v178 = vld [vmem:[%s1 + $0x18] sm:$0xff]
  %v179 = vld [vmem:[%s1 + $0x20] sm:$0xff]
  %v180 = vld [vmem:[%s1 + $0x28] sm:$0xff]
  %v181 = vld [vmem:[%s1 + $0x30] sm:$0xff]
  %v182 = vld [vmem:[%s1 + $0x38] sm:$0xff]
  %v183 = vld [vmem:[%s1 + $0x40] sm:$0xff]
  %v184 = vld [vmem:[%s1 + $0x48] sm:$0xff]
  %v185 = vld [vmem:[%s1 + $0x50] sm:$0xff]
  %v186 = vld [vmem:[%s1 + $0x58] sm:$0xff]
  %v187 = vld [vmem:[%s1 + $0x60] sm:$0xff]
  %v188 = vld [vmem:[%s1 + $0x68] sm:$0xff]
  %v189 = vld [vmem:[%s1 + $0x70] sm:$0xff]
  %v190 = vld [vmem:[%s1 + $0x78] sm:$0xff]
  %v191 = vld [vmem:[%s1 + $0x80] sm:$0xff]
  %v192 = vld [vmem:[%s1 + $0x88] sm:$0xff]
  %v193 = vld [vmem:[%s1 + $0x90] sm:$0xff]
  %v194 = vld [vmem:[%s1 + $0x98] sm:$0xff]
  %v195 = vld [vmem:[%s1 + $0xa0] sm:$0xff]
  %v196 = vld [vmem:[%s1 + $0xa8] sm:$0xff]
  %v197 = vld [vmem:[%s1 + $0xb0] sm:$0xff]
  %v198 = vld [vmem:[%s1 + $0xb8] sm:$0xff]
  %v199 = vld [vmem:[%s1 + $0xc0] sm:$0xff]
  %v200 = vld [vmem:[%s1 + $0xc8] sm:$0xff]
  %v201 = vld [vmem:[%s1 + $0xd0] sm:$0xff]
  %v202 = vld [vmem:[%s1 + $0xd8] sm:$0xff]
  %v203 = vld [vmem:[%s1 + $0xe0] sm:$0xff]
  %v204 = vld [vmem:[%s1 + $0xe8] sm:$0xff]
  %v205 = vld [vmem:[%s1 + $0xf0] sm:$0xff]
  %v206 = vld [vmem:[%s1 + $0xf8] sm:$0xff]
  %v239 = vunpack.c.l.b16 %v143
  %v240 = vunpack.c.h.b16 %v143
  %v241 = vunpack.c.l.b16 %v144
  %v242 = vunpack.c.h.b16 %v144
  %v243 = vunpack.c.l.b16 %v145
  %v244 = vunpack.c.h.b16 %v145
  %v245 = vunpack.c.l.b16 %v146
  %v246 = vunpack.c.h.b16 %v146
  %v247 = vunpack.c.l.b16 %v147
  %v248 = vunpack.c.h.b16 %v147
  %v249 = vunpack.c.l.b16 %v148
  %v250 = vunpack.c.h.b16 %v148
  %v251 = vunpack.c.l.b16 %v149
  %v252 = vunpack.c.h.b16 %v149
  %v253 = vunpack.c.l.b16 %v150
  %v254 = vunpack.c.h.b16 %v150
  %v255 = vunpack.c.l.b16 %v151
  %v256 = vunpack.c.h.b16 %v151
  %v257 = vunpack.c.l.b16 %v152
  %v258 = vunpack.c.h.b16 %v152
  %v259 = vunpack.c.l.b16 %v153
  %v260 = vunpack.c.h.b16 %v153
  %v261 = vunpack.c.l.b16 %v154
  %v262 = vunpack.c.h.b16 %v154
  %v263 = vunpack.c.l.b16 %v155
  %v264 = vunpack.c.h.b16 %v155
  %v265 = vunpack.c.l.b16 %v156
  %v266 = vunpack.c.h.b16 %v156
  %v267 = vunpack.c.l.b16 %v157
  %v268 = vunpack.c.h.b16 %v157
  %v269 = vunpack.c.l.b16 %v158
  %v270 = vunpack.c.h.b16 %v158
  %v271 = vunpack.c.l.b16 %v159
  %v272 = vunpack.c.h.b16 %v159
  %v273 = vunpack.c.l.b16 %v160
  %v274 = vunpack.c.h.b16 %v160
  %v275 = vunpack.c.l.b16 %v161
  %v276 = vunpack.c.h.b16 %v161
  %v277 = vunpack.c.l.b16 %v162
  %v278 = vunpack.c.h.b16 %v162
  %v279 = vunpack.c.l.b16 %v163
  %v280 = vunpack.c.h.b16 %v163
  %v281 = vunpack.c.l.b16 %v164
  %v282 = vunpack.c.h.b16 %v164
  %v283 = vunpack.c.l.b16 %v165
  %v284 = vunpack.c.h.b16 %v165
  %v285 = vunpack.c.l.b16 %v166
  %v286 = vunpack.c.h.b16 %v166
  %v287 = vunpack.c.l.b16 %v167
  %v288 = vunpack.c.h.b16 %v167
  %v289 = vunpack.c.l.b16 %v168
  %v290 = vunpack.c.h.b16 %v168
  %v291 = vunpack.c.l.b16 %v169
  %v292 = vunpack.c.h.b16 %v169
  %v293 = vunpack.c.l.b16 %v170
  %v294 = vunpack.c.h.b16 %v170
  %v295 = vunpack.c.l.b16 %v171
  %v296 = vunpack.c.h.b16 %v171
  %v297 = vunpack.c.l.b16 %v172
  %v298 = vunpack.c.h.b16 %v172
  %v299 = vunpack.c.l.b16 %v173
  %v300 = vunpack.c.h.b16 %v173
  %v301 = vunpack.c.l.b16 %v174
  %v302 = vunpack.c.h.b16 %v174
  %v303 = vpack.c.b16 %v241, %v239
  %v304 = vpack.c.b16 %v242, %v240
  %v305 = vpack.c.b16 %v245, %v243
  %v306 = vpack.c.b16 %v246, %v244
  %v307 = vpack.c.b16 %v249, %v247
  %v308 = vpack.c.b16 %v250, %v248
  %v309 = vpack.c.b16 %v253, %v251
  %v310 = vpack.c.b16 %v254, %v252
  %v311 = vpack.c.b16 %v257, %v255
  %v312 = vpack.c.b16 %v258, %v256
  %v313 = vpack.c.b16 %v261, %v259
  %v314 = vpack.c.b16 %v262, %v260
  %v315 = vpack.c.b16 %v265, %v263
  %v316 = vpack.c.b16 %v266, %v264
  %v317 = vpack.c.b16 %v269, %v267
  %v318 = vpack.c.b16 %v270, %v268
  %v319 = vpack.c.b16 %v273, %v271
  %v320 = vpack.c.b16 %v274, %v272
  %v321 = vpack.c.b16 %v277, %v275
  %v322 = vpack.c.b16 %v278, %v276
  %v323 = vpack.c.b16 %v281, %v279
  %v324 = vpack.c.b16 %v282, %v280
  %v325 = vpack.c.b16 %v285, %v283
  %v326 = vpack.c.b16 %v286, %v284
  %v327 = vpack.c.b16 %v289, %v287
  %v328 = vpack.c.b16 %v290, %v288
  %v329 = vpack.c.b16 %v293, %v291
  %v330 = vpack.c.b16 %v294, %v292
  %v331 = vpack.c.b16 %v297, %v295
  %v332 = vpack.c.b16 %v298, %v296
  %v333 = vpack.c.b16 %v301, %v299
  %v334 = vpack.c.b16 %v302, %v300
  %v399 = vunpack.c.l.b16 %v175
  %v400 = vunpack.c.h.b16 %v175
  %v401 = vunpack.c.l.b16 %v176
  %v402 = vunpack.c.h.b16 %v176
  %v403 = vunpack.c.l.b16 %v177
  %v404 = vunpack.c.h.b16 %v177
  %v405 = vunpack.c.l.b16 %v178
  %v406 = vunpack.c.h.b16 %v178
  %v407 = vunpack.c.l.b16 %v179
  %v408 = vunpack.c.h.b16 %v179
  %v409 = vunpack.c.l.b16 %v180
  %v410 = vunpack.c.h.b16 %v180
  %v411 = vunpack.c.l.b16 %v181
  %v412 = vunpack.c.h.b16 %v181
  %v413 = vunpack.c.l.b16 %v182
  %v414 = vunpack.c.h.b16 %v182
  %v415 = vunpack.c.l.b16 %v183
  %v416 = vunpack.c.h.b16 %v183
  %v417 = vunpack.c.l.b16 %v184
  %v418 = vunpack.c.h.b16 %v184
  %v419 = vunpack.c.l.b16 %v185
  %v420 = vunpack.c.h.b16 %v185
  %v421 = vunpack.c.l.b16 %v186
  %v422 = vunpack.c.h.b16 %v186
  %v423 = vunpack.c.l.b16 %v187
  %v424 = vunpack.c.h.b16 %v187
  %v425 = vunpack.c.l.b16 %v188
  %v426 = vunpack.c.h.b16 %v188
  %v427 = vunpack.c.l.b16 %v189
  %v428 = vunpack.c.h.b16 %v189
  %v429 = vunpack.c.l.b16 %v190
  %v430 = vunpack.c.h.b16 %v190
  %v431 = vunpack.c.l.b16 %v191
  %v432 = vunpack.c.h.b16 %v191
  %v433 = vunpack.c.l.b16 %v192
  %v434 = vunpack.c.h.b16 %v192
  %v435 = vunpack.c.l.b16 %v193
  %v436 = vunpack.c.h.b16 %v193
  %v437 = vunpack.c.l.b16 %v194
  %v438 = vunpack.c.h.b16 %v194
  %v439 = vunpack.c.l.b16 %v195
  %v440 = vunpack.c.h.b16 %v195
  %v441 = vunpack.c.l.b16 %v196
  %v442 = vunpack.c.h.b16 %v196
  %v443 = vunpack.c.l.b16 %v197
  %v444 = vunpack.c.h.b16 %v197
  %v445 = vunpack.c.l.b16 %v198
  %v446 = vunpack.c.h.b16 %v198
  %v447 = vunpack.c.l.b16 %v199
  %v448 = vunpack.c.h.b16 %v199
  %v449 = vunpack.c.l.b16 %v200
  %v450 = vunpack.c.h.b16 %v200
  %v451 = vunpack.c.l.b16 %v201
  %v452 = vunpack.c.h.b16 %v201
  %v453 = vunpack.c.l.b16 %v202
  %v454 = vunpack.c.h.b16 %v202
  %v455 = vunpack.c.l.b16 %v203
  %v456 = vunpack.c.h.b16 %v203
  %v457 = vunpack.c.l.b16 %v204
  %v458 = vunpack.c.h.b16 %v204
  %v459 = vunpack.c.l.b16 %v205
  %v460 = vunpack.c.h.b16 %v205
  %v461 = vunpack.c.l.b16 %v206
  %v462 = vunpack.c.h.b16 %v206
  %v463 = vpack.c.b16 %v401, %v399
  %v464 = vpack.c.b16 %v402, %v400
  %v465 = vpack.c.b16 %v405, %v403
  %v466 = vpack.c.b16 %v406, %v404
  %v467 = vpack.c.b16 %v409, %v407
  %v468 = vpack.c.b16 %v410, %v408
  %v469 = vpack.c.b16 %v413, %v411
  %v470 = vpack.c.b16 %v414, %v412
  %v471 = vpack.c.b16 %v417, %v415
  %v472 = vpack.c.b16 %v418, %v416
  %v473 = vpack.c.b16 %v421, %v419
  %v474 = vpack.c.b16 %v422, %v420
  %v475 = vpack.c.b16 %v425, %v423
  %v476 = vpack.c.b16 %v426, %v424
  %v477 = vpack.c.b16 %v429, %v427
  %v478 = vpack.c.b16 %v430, %v428
  %v479 = vpack.c.b16 %v433, %v431
  %v480 = vpack.c.b16 %v434, %v432
  %v481 = vpack.c.b16 %v437, %v435
  %v482 = vpack.c.b16 %v438, %v436
  %v483 = vpack.c.b16 %v441, %v439
  %v484 = vpack.c.b16 %v442, %v440
  %v485 = vpack.c.b16 %v445, %v443
  %v486 = vpack.c.b16 %v446, %v444
  %v487 = vpack.c.b16 %v449, %v447
  %v488 = vpack.c.b16 %v450, %v448
  %v489 = vpack.c.b16 %v453, %v451
  %v490 = vpack.c.b16 %v454, %v452
  %v491 = vpack.c.b16 %v457, %v455
  %v492 = vpack.c.b16 %v458, %v456
  %v493 = vpack.c.b16 %v461, %v459
  %v494 = vpack.c.b16 %v462, %v460
  %527 = vmatpush.bf16.msra.mxu0 %v477
  %528 = vmatpush.bf16.msra.mxu0 %v475
  %529 = vmatpush.bf16.msra.mxu0 %v473
  %530 = vmatpush.bf16.msra.mxu0 %v471
  %531 = vmatpush.bf16.msra.mxu0 %v469
  %532 = vmatpush.bf16.msra.mxu0 %v467
  %533 = vmatpush.bf16.msra.mxu0 %v465
  %534 = vmatpush.bf16.msra.mxu0 %v463
  %535 = vmatmul.bf16.gmra.mxu0 %v303
  %v536 = vpop.f32.mrf.mxu0
  %v537 = vadd.f32 0.0, %v536
  %v538 = vpop.f32.mrf.mxu0
  %v539 = vadd.f32 0.0, %v538
  %540 = vmatmul.bf16.gmra.mxu0 %v305
  %v541 = vpop.f32.mrf.mxu0
  %v542 = vadd.f32 0.0, %v541
  %v543 = vpop.f32.mrf.mxu0
  %v544 = vadd.f32 0.0, %v543
  %545 = vmatmul.bf16.gmra.mxu0 %v307
  %v546 = vpop.f32.mrf.mxu0
  %v547 = vadd.f32 0.0, %v546
  %v548 = vpop.f32.mrf.mxu0
  %v549 = vadd.f32 0.0, %v548
  %550 = vmatmul.bf16.gmra.mxu0 %v309
  %v551 = vpop.f32.mrf.mxu0
  %v552 = vadd.f32 0.0, %v551
  %v553 = vpop.f32.mrf.mxu0
  %v554 = vadd.f32 0.0, %v553
  %555 = vmatmul.bf16.gmra.mxu0 %v311
  %v556 = vpop.f32.mrf.mxu0
  %v557 = vadd.f32 0.0, %v556
  %v558 = vpop.f32.mrf.mxu0
  %v559 = vadd.f32 0.0, %v558
  %560 = vmatmul.bf16.gmra.mxu0 %v313
  %v561 = vpop.f32.mrf.mxu0
  %v562 = vadd.f32 0.0, %v561
  %v563 = vpop.f32.mrf.mxu0
  %v564 = vadd.f32 0.0, %v563
  %565 = vmatmul.bf16.gmra.mxu0 %v315
  %v566 = vpop.f32.mrf.mxu0
  %v567 = vadd.f32 0.0, %v566
  %v568 = vpop.f32.mrf.mxu0
  %v569 = vadd.f32 0.0, %v568
  %570 = vmatmul.bf16.gmra.mxu0 %v317
  %v571 = vpop.f32.mrf.mxu0
  %v572 = vadd.f32 0.0, %v571
  %v573 = vpop.f32.mrf.mxu0
  %v574 = vadd.f32 0.0, %v573
  %575 = vmatmul.bf16.gmra.mxu0 %v319
  %v576 = vpop.f32.mrf.mxu0
  %v577 = vadd.f32 0.0, %v576
  %v578 = vpop.f32.mrf.mxu0
  %v579 = vadd.f32 0.0, %v578
  %580 = vmatmul.bf16.gmra.mxu0 %v321
  %v581 = vpop.f32.mrf.mxu0
  %v582 = vadd.f32 0.0, %v581
  %v583 = vpop.f32.mrf.mxu0
  %v584 = vadd.f32 0.0, %v583
  %585 = vmatmul.bf16.gmra.mxu0 %v323
  %v586 = vpop.f32.mrf.mxu0
  %v587 = vadd.f32 0.0, %v586
  %v588 = vpop.f32.mrf.mxu0
  %v589 = vadd.f32 0.0, %v588
  %590 = vmatmul.bf16.gmra.mxu0 %v325
  %v591 = vpop.f32.mrf.mxu0
  %v592 = vadd.f32 0.0, %v591
  %v593 = vpop.f32.mrf.mxu0
  %v594 = vadd.f32 0.0, %v593
  %595 = vmatmul.bf16.gmra.mxu0 %v327
  %v596 = vpop.f32.mrf.mxu0
  %v597 = vadd.f32 0.0, %v596
  %v598 = vpop.f32.mrf.mxu0
  %v599 = vadd.f32 0.0, %v598
  %600 = vmatmul.bf16.gmra.mxu0 %v329
  %v601 = vpop.f32.mrf.mxu0
  %v602 = vadd.f32 0.0, %v601
  %v603 = vpop.f32.mrf.mxu0
  %v604 = vadd.f32 0.0, %v603
  %605 = vmatmul.bf16.gmra.mxu0 %v331
  %v606 = vpop.f32.mrf.mxu0
  %v607 = vadd.f32 0.0, %v606
  %v608 = vpop.f32.mrf.mxu0
  %v609 = vadd.f32 0.0, %v608
  %610 = vmatmul.bf16.gmra.mxu0 %v333
  %v611 = vpop.f32.mrf.mxu0
  %v612 = vadd.f32 0.0, %v611
  %v613 = vpop.f32.mrf.mxu0
  %v614 = vadd.f32 0.0, %v613
  %615 = vdwg.mxu0
  %616 = vmatpush.bf16.msra.mxu0 %v493
  %617 = vmatpush.bf16.msra.mxu0 %v491
  %618 = vmatpush.bf16.msra.mxu0 %v489
  %619 = vmatpush.bf16.msra.mxu0 %v487
  %620 = vmatpush.bf16.msra.mxu0 %v485
  %621 = vmatpush.bf16.msra.mxu0 %v483
  %622 = vmatpush.bf16.msra.mxu0 %v481
  %623 = vmatpush.bf16.msra.mxu0 %v479
  %624 = vmatmul.bf16.gmra.mxu0 %v304
  %v625 = vpop.f32.mrf.mxu0
  %v626 = vadd.f32 %v537, %v625
  %v627 = vpop.f32.mrf.mxu0
  %v628 = vadd.f32 %v539, %v627
  %629 = vmatmul.bf16.gmra.mxu0 %v306
  %v630 = vpop.f32.mrf.mxu0
  %v631 = vadd.f32 %v542, %v630
  %v632 = vpop.f32.mrf.mxu0
  %v633 = vadd.f32 %v544, %v632
  %634 = vmatmul.bf16.gmra.mxu0 %v308
  %v635 = vpop.f32.mrf.mxu0
  %v636 = vadd.f32 %v547, %v635
  %v637 = vpop.f32.mrf.mxu0
  %v638 = vadd.f32 %v549, %v637
  %639 = vmatmul.bf16.gmra.mxu0 %v310
  %v640 = vpop.f32.mrf.mxu0
  %v641 = vadd.f32 %v552, %v640
  %v642 = vpop.f32.mrf.mxu0
  %v643 = vadd.f32 %v554, %v642
  %644 = vmatmul.bf16.gmra.mxu0 %v312
  %v645 = vpop.f32.mrf.mxu0
  %v646 = vadd.f32 %v557, %v645
  %v647 = vpop.f32.mrf.mxu0
  %v648 = vadd.f32 %v559, %v647
  %649 = vmatmul.bf16.gmra.mxu0 %v314
  %v650 = vpop.f32.mrf.mxu0
  %v651 = vadd.f32 %v562, %v650
  %v652 = vpop.f32.mrf.mxu0
  %v653 = vadd.f32 %v564, %v652
  %654 = vmatmul.bf16.gmra.mxu0 %v316
  %v655 = vpop.f32.mrf.mxu0
  %v656 = vadd.f32 %v567, %v655
  %v657 = vpop.f32.mrf.mxu0
  %v658 = vadd.f32 %v569, %v657
  %659 = vmatmul.bf16.gmra.mxu0 %v318
  %v660 = vpop.f32.mrf.mxu0
  %v661 = vadd.f32 %v572, %v660
  %v662 = vpop.f32.mrf.mxu0
  %v663 = vadd.f32 %v574, %v662
  %664 = vmatmul.bf16.gmra.mxu0 %v320
  %v665 = vpop.f32.mrf.mxu0
  %v666 = vadd.f32 %v577, %v665
  %v667 = vpop.f32.mrf.mxu0
  %v668 = vadd.f32 %v579, %v667
  %669 = vmatmul.bf16.gmra.mxu0 %v322
  %v670 = vpop.f32.mrf.mxu0
  %v671 = vadd.f32 %v582, %v670
  %v672 = vpop.f32.mrf.mxu0
  %v673 = vadd.f32 %v584, %v672
  %674 = vmatmul.bf16.gmra.mxu0 %v324
  %v675 = vpop.f32.mrf.mxu0
  %v676 = vadd.f32 %v587, %v675
  %v677 = vpop.f32.mrf.mxu0
  %v678 = vadd.f32 %v589, %v677
  %679 = vmatmul.bf16.gmra.mxu0 %v326
  %v680 = vpop.f32.mrf.mxu0
  %v681 = vadd.f32 %v592, %v680
  %v682 = vpop.f32.mrf.mxu0
  %v683 = vadd.f32 %v594, %v682
  %684 = vmatmul.bf16.gmra.mxu0 %v328
  %v685 = vpop.f32.mrf.mxu0
  %v686 = vadd.f32 %v597, %v685
  %v687 = vpop.f32.mrf.mxu0
  %v688 = vadd.f32 %v599, %v687
  %689 = vmatmul.bf16.gmra.mxu0 %v330
  %v690 = vpop.f32.mrf.mxu0
  %v691 = vadd.f32 %v602, %v690
  %v692 = vpop.f32.mrf.mxu0
  %v693 = vadd.f32 %v604, %v692
  %694 = vmatmul.bf16.gmra.mxu0 %v332
  %v695 = vpop.f32.mrf.mxu0
  %v696 = vadd.f32 %v607, %v695
  %v697 = vpop.f32.mrf.mxu0
  %v698 = vadd.f32 %v609, %v697
  %699 = vmatmul.bf16.gmra.mxu0 %v334
  %v700 = vpop.f32.mrf.mxu0
  %v701 = vadd.f32 %v612, %v700
  %v702 = vpop.f32.mrf.mxu0
  %v703 = vadd.f32 %v614, %v702
  %704 = vdwg.mxu0
  %705 = vmatpush.bf16.msra.mxu0 %v478
  %706 = vmatpush.bf16.msra.mxu0 %v476
  %707 = vmatpush.bf16.msra.mxu0 %v474
  %708 = vmatpush.bf16.msra.mxu0 %v472
  %709 = vmatpush.bf16.msra.mxu0 %v470
  %710 = vmatpush.bf16.msra.mxu0 %v468
  %711 = vmatpush.bf16.msra.mxu0 %v466
  %712 = vmatpush.bf16.msra.mxu0 %v464
  %713 = vmatmul.bf16.gmra.mxu0 %v303
  %v714 = vpop.f32.mrf.mxu0
  %v715 = vadd.f32 0.0, %v714
  %v716 = vpop.f32.mrf.mxu0
  %v717 = vadd.f32 0.0, %v716
  %718 = vmatmul.bf16.gmra.mxu0 %v305
  %v719 = vpop.f32.mrf.mxu0
  %v720 = vadd.f32 0.0, %v719
  %v721 = vpop.f32.mrf.mxu0
  %v722 = vadd.f32 0.0, %v721
  %723 = vmatmul.bf16.gmra.mxu0 %v307
  %v724 = vpop.f32.mrf.mxu0
  %v725 = vadd.f32 0.0, %v724
  %v726 = vpop.f32.mrf.mxu0
  %v727 = vadd.f32 0.0, %v726
  %728 = vmatmul.bf16.gmra.mxu0 %v309
  %v729 = vpop.f32.mrf.mxu0
  %v730 = vadd.f32 0.0, %v729
  %v731 = vpop.f32.mrf.mxu0
  %v732 = vadd.f32 0.0, %v731
  %733 = vmatmul.bf16.gmra.mxu0 %v311
  %v734 = vpop.f32.mrf.mxu0
  %v735 = vadd.f32 0.0, %v734
  %v736 = vpop.f32.mrf.mxu0
  %v737 = vadd.f32 0.0, %v736
  %738 = vmatmul.bf16.gmra.mxu0 %v313
  %v739 = vpop.f32.mrf.mxu0
  %v740 = vadd.f32 0.0, %v739
  %v741 = vpop.f32.mrf.mxu0
  %v742 = vadd.f32 0.0, %v741
  %743 = vmatmul.bf16.gmra.mxu0 %v315
  %v744 = vpop.f32.mrf.mxu0
  %v745 = vadd.f32 0.0, %v744
  %v746 = vpop.f32.mrf.mxu0
  %v747 = vadd.f32 0.0, %v746
  %748 = vmatmul.bf16.gmra.mxu0 %v317
  %v749 = vpop.f32.mrf.mxu0
  %v750 = vadd.f32 0.0, %v749
  %v751 = vpop.f32.mrf.mxu0
  %v752 = vadd.f32 0.0, %v751
  %753 = vmatmul.bf16.gmra.mxu0 %v319
  %v754 = vpop.f32.mrf.mxu0
  %v755 = vadd.f32 0.0, %v754
  %v756 = vpop.f32.mrf.mxu0
  %v757 = vadd.f32 0.0, %v756
  %758 = vmatmul.bf16.gmra.mxu0 %v321
  %v759 = vpop.f32.mrf.mxu0
  %v760 = vadd.f32 0.0, %v759
  %v761 = vpop.f32.mrf.mxu0
  %v762 = vadd.f32 0.0, %v761
  %763 = vmatmul.bf16.gmra.mxu0 %v323
  %v764 = vpop.f32.mrf.mxu0
  %v765 = vadd.f32 0.0, %v764
  %v766 = vpop.f32.mrf.mxu0
  %v767 = vadd.f32 0.0, %v766
  %768 = vmatmul.bf16.gmra.mxu0 %v325
  %v769 = vpop.f32.mrf.mxu0
  %v770 = vadd.f32 0.0, %v769
  %v771 = vpop.f32.mrf.mxu0
  %v772 = vadd.f32 0.0, %v771
  %773 = vmatmul.bf16.gmra.mxu0 %v327
  %v774 = vpop.f32.mrf.mxu0
  %v775 = vadd.f32 0.0, %v774
  %v776 = vpop.f32.mrf.mxu0
  %v777 = vadd.f32 0.0, %v776
  %778 = vmatmul.bf16.gmra.mxu0 %v329
  %v779 = vpop.f32.mrf.mxu0
  %v780 = vadd.f32 0.0, %v779
  %v781 = vpop.f32.mrf.mxu0
  %v782 = vadd.f32 0.0, %v781
  %783 = vmatmul.bf16.gmra.mxu0 %v331
  %v784 = vpop.f32.mrf.mxu0
  %v785 = vadd.f32 0.0, %v784
  %v786 = vpop.f32.mrf.mxu0
  %v787 = vadd.f32 0.0, %v786
  %788 = vmatmul.bf16.gmra.mxu0 %v333
  %v789 = vpop.f32.mrf.mxu0
  %v790 = vadd.f32 0.0, %v789
  %v791 = vpop.f32.mrf.mxu0
  %v792 = vadd.f32 0.0, %v791
  %793 = vdwg.mxu0
  %794 = vmatpush.bf16.msra.mxu0 %v494
  %795 = vmatpush.bf16.msra.mxu0 %v492
  %796 = vmatpush.bf16.msra.mxu0 %v490
  %797 = vmatpush.bf16.msra.mxu0 %v488
  %798 = vmatpush.bf16.msra.mxu0 %v486
  %799 = vmatpush.bf16.msra.mxu0 %v484
  %800 = vmatpush.bf16.msra.mxu0 %v482
  %801 = vmatpush.bf16.msra.mxu0 %v480
  %802 = vmatmul.bf16.gmra.mxu0 %v304
  %v803 = vpop.f32.mrf.mxu0
  %v804 = vadd.f32 %v715, %v803
  %v805 = vpop.f32.mrf.mxu0
  %v806 = vadd.f32 %v717, %v805
  %807 = vmatmul.bf16.gmra.mxu0 %v306
  %v808 = vpop.f32.mrf.mxu0
  %v809 = vadd.f32 %v720, %v808
  %v810 = vpop.f32.mrf.mxu0
  %v811 = vadd.f32 %v722, %v810
  %812 = vmatmul.bf16.gmra.mxu0 %v308
  %v813 = vpop.f32.mrf.mxu0
  %v814 = vadd.f32 %v725, %v813
  %v815 = vpop.f32.mrf.mxu0
  %v816 = vadd.f32 %v727, %v815
  %817 = vmatmul.bf16.gmra.mxu0 %v310
  %v818 = vpop.f32.mrf.mxu0
  %v819 = vadd.f32 %v730, %v818
  %v820 = vpop.f32.mrf.mxu0
  %v821 = vadd.f32 %v732, %v820
  %822 = vmatmul.bf16.gmra.mxu0 %v312
  %v823 = vpop.f32.mrf.mxu0
  %v824 = vadd.f32 %v735, %v823
  %v825 = vpop.f32.mrf.mxu0
  %v826 = vadd.f32 %v737, %v825
  %827 = vmatmul.bf16.gmra.mxu0 %v314
  %v828 = vpop.f32.mrf.mxu0
  %v829 = vadd.f32 %v740, %v828
  %v830 = vpop.f32.mrf.mxu0
  %v831 = vadd.f32 %v742, %v830
  %832 = vmatmul.bf16.gmra.mxu0 %v316
  %v833 = vpop.f32.mrf.mxu0
  %v834 = vadd.f32 %v745, %v833
  %v835 = vpop.f32.mrf.mxu0
  %v836 = vadd.f32 %v747, %v835
  %837 = vmatmul.bf16.gmra.mxu0 %v318
  %v838 = vpop.f32.mrf.mxu0
  %v839 = vadd.f32 %v750, %v838
  %v840 = vpop.f32.mrf.mxu0
  %v841 = vadd.f32 %v752, %v840
  %842 = vmatmul.bf16.gmra.mxu0 %v320
  %v843 = vpop.f32.mrf.mxu0
  %v844 = vadd.f32 %v755, %v843
  %v845 = vpop.f32.mrf.mxu0
  %v846 = vadd.f32 %v757, %v845
  %847 = vmatmul.bf16.gmra.mxu0 %v322
  %v848 = vpop.f32.mrf.mxu0
  %v849 = vadd.f32 %v760, %v848
  %v850 = vpop.f32.mrf.mxu0
  %v851 = vadd.f32 %v762, %v850
  %852 = vmatmul.bf16.gmra.mxu0 %v324
  %v853 = vpop.f32.mrf.mxu0
  %v854 = vadd.f32 %v765, %v853
  %v855 = vpop.f32.mrf.mxu0
  %v856 = vadd.f32 %v767, %v855
  %857 = vmatmul.bf16.gmra.mxu0 %v326
  %v858 = vpop.f32.mrf.mxu0
  %v859 = vadd.f32 %v770, %v858
  %v860 = vpop.f32.mrf.mxu0
  %v861 = vadd.f32 %v772, %v860
  %862 = vmatmul.bf16.gmra.mxu0 %v328
  %v863 = vpop.f32.mrf.mxu0
  %v864 = vadd.f32 %v775, %v863
  %v865 = vpop.f32.mrf.mxu0
  %v866 = vadd.f32 %v777, %v865
  %867 = vmatmul.bf16.gmra.mxu0 %v330
  %v868 = vpop.f32.mrf.mxu0
  %v869 = vadd.f32 %v780, %v868
  %v870 = vpop.f32.mrf.mxu0
  %v871 = vadd.f32 %v782, %v870
  %872 = vmatmul.bf16.gmra.mxu0 %v332
  %v873 = vpop.f32.mrf.mxu0
  %v874 = vadd.f32 %v785, %v873
  %v875 = vpop.f32.mrf.mxu0
  %v876 = vadd.f32 %v787, %v875
  %877 = vmatmul.bf16.gmra.mxu0 %v334
  %v878 = vpop.f32.mrf.mxu0
  %v879 = vadd.f32 %v790, %v878
  %v880 = vpop.f32.mrf.mxu0
  %v881 = vadd.f32 %v792, %v880
  %882 = vdwg.mxu0
  %v883 = vadd.f32 %v79, %v626
  %v884 = vadd.f32 %v80, %v804
  %v885 = vadd.f32 %v81, %v628
  %v886 = vadd.f32 %v82, %v806
  %v887 = vadd.f32 %v83, %v631
  %v888 = vadd.f32 %v84, %v809
  %v889 = vadd.f32 %v85, %v633
  %v890 = vadd.f32 %v86, %v811
  %v891 = vadd.f32 %v87, %v636
  %v892 = vadd.f32 %v88, %v814
  %v893 = vadd.f32 %v89, %v638
  %v894 = vadd.f32 %v90, %v816
  %v895 = vadd.f32 %v91, %v641
  %v896 = vadd.f32 %v92, %v819
  %v897 = vadd.f32 %v93, %v643
  %v898 = vadd.f32 %v94, %v821
  %v899 = vadd.f32 %v95, %v646
  %v900 = vadd.f32 %v96, %v824
  %v901 = vadd.f32 %v97, %v648
  %v902 = vadd.f32 %v98, %v826
  %v903 = vadd.f32 %v99, %v651
  %v904 = vadd.f32 %v100, %v829
  %v905 = vadd.f32 %v101, %v653
  %v906 = vadd.f32 %v102, %v831
  %v907 = vadd.f32 %v103, %v656
  %v908 = vadd.f32 %v104, %v834
  %v909 = vadd.f32 %v105, %v658
  %v910 = vadd.f32 %v106, %v836
  %v911 = vadd.f32 %v107, %v661
  %v912 = vadd.f32 %v108, %v839
  %v913 = vadd.f32 %v109, %v663
  %v914 = vadd.f32 %v110, %v841
  %v915 = vadd.f32 %v111, %v666
  %v916 = vadd.f32 %v112, %v844
  %v917 = vadd.f32 %v113, %v668
  %v918 = vadd.f32 %v114, %v846
  %v919 = vadd.f32 %v115, %v671
  %v920 = vadd.f32 %v116, %v849
  %v921 = vadd.f32 %v117, %v673
  %v922 = vadd.f32 %v118, %v851
  %v923 = vadd.f32 %v119, %v676
  %v924 = vadd.f32 %v120, %v854
  %v925 = vadd.f32 %v121, %v678
  %v926 = vadd.f32 %v122, %v856
  %v927 = vadd.f32 %v123, %v681
  %v928 = vadd.f32 %v124, %v859
  %v929 = vadd.f32 %v125, %v683
  %v930 = vadd.f32 %v126, %v861
  %v931 = vadd.f32 %v127, %v686
  %v932 = vadd.f32 %v128, %v864
  %v933 = vadd.f32 %v129, %v688
  %v934 = vadd.f32 %v130, %v866
  %v935 = vadd.f32 %v131, %v691
  %v936 = vadd.f32 %v132, %v869
  %v937 = vadd.f32 %v133, %v693
  %v938 = vadd.f32 %v134, %v871
  %v939 = vadd.f32 %v135, %v696
  %v940 = vadd.f32 %v136, %v874
  %v941 = vadd.f32 %v137, %v698
  %v942 = vadd.f32 %v138, %v876
  %v943 = vadd.f32 %v139, %v701
  %v944 = vadd.f32 %v140, %v879
  %v945 = vadd.f32 %v141, %v703
  %v946 = vadd.f32 %v142, %v881
  %947 = vst [vmem:[#allocation2] sm:$0xff] %v883
  %948 = vst [vmem:[#allocation2 + $0x8] sm:$0xff] %v884
  %949 = vst [vmem:[#allocation2 + $0x10] sm:$0xff] %v885
  %950 = vst [vmem:[#allocation2 + $0x18] sm:$0xff] %v886
  %951 = vst [vmem:[#allocation2 + $0x20] sm:$0xff] %v887
  %952 = vst [vmem:[#allocation2 + $0x28] sm:$0xff] %v888
  %953 = vst [vmem:[#allocation2 + $0x30] sm:$0xff] %v889
  %954 = vst [vmem:[#allocation2 + $0x38] sm:$0xff] %v890
  %955 = vst [vmem:[#allocation2 + $0x40] sm:$0xff] %v891
  %956 = vst [vmem:[#allocation2 + $0x48] sm:$0xff] %v892
  %957 = vst [vmem:[#allocation2 + $0x50] sm:$0xff] %v893
  %958 = vst [vmem:[#allocation2 + $0x58] sm:$0xff] %v894
  %959 = vst [vmem:[#allocation2 + $0x60] sm:$0xff] %v895
  %960 = vst [vmem:[#allocation2 + $0x68] sm:$0xff] %v896
  %961 = vst [vmem:[#allocation2 + $0x70] sm:$0xff] %v897
  %962 = vst [vmem:[#allocation2 + $0x78] sm:$0xff] %v898
  %963 = vst [vmem:[#allocation2 + $0x80] sm:$0xff] %v899
  %964 = vst [vmem:[#allocation2 + $0x88] sm:$0xff] %v900
  %965 = vst [vmem:[#allocation2 + $0x90] sm:$0xff] %v901
  %966 = vst [vmem:[#allocation2 + $0x98] sm:$0xff] %v902
  %967 = vst [vmem:[#allocation2 + $0xa0] sm:$0xff] %v903
  %968 = vst [vmem:[#allocation2 + $0xa8] sm:$0xff] %v904
  %969 = vst [vmem:[#allocation2 + $0xb0] sm:$0xff] %v905
  %970 = vst [vmem:[#allocation2 + $0xb8] sm:$0xff] %v906
  %971 = vst [vmem:[#allocation2 + $0xc0] sm:$0xff] %v907
  %972 = vst [vmem:[#allocation2 + $0xc8] sm:$0xff] %v908
  %973 = vst [vmem:[#allocation2 + $0xd0] sm:$0xff] %v909
  %974 = vst [vmem:[#allocation2 + $0xd8] sm:$0xff] %v910
  %975 = vst [vmem:[#allocation2 + $0xe0] sm:$0xff] %v911
  %976 = vst [vmem:[#allocation2 + $0xe8] sm:$0xff] %v912
  %977 = vst [vmem:[#allocation2 + $0xf0] sm:$0xff] %v913
  %978 = vst [vmem:[#allocation2 + $0xf8] sm:$0xff] %v914
  %979 = vst [vmem:[#allocation2 + $0x100] sm:$0xff] %v915
  %980 = vst [vmem:[#allocation2 + $0x108] sm:$0xff] %v916
  %981 = vst [vmem:[#allocation2 + $0x110] sm:$0xff] %v917
  %982 = vst [vmem:[#allocation2 + $0x118] sm:$0xff] %v918
  %983 = vst [vmem:[#allocation2 + $0x120] sm:$0xff] %v919
  %984 = vst [vmem:[#allocation2 + $0x128] sm:$0xff] %v920
  %985 = vst [vmem:[#allocation2 + $0x130] sm:$0xff] %v921
  %986 = vst [vmem:[#allocation2 + $0x138] sm:$0xff] %v922
  %987 = vst [vmem:[#allocation2 + $0x140] sm:$0xff] %v923
  %988 = vst [vmem:[#allocation2 + $0x148] sm:$0xff] %v924
  %989 = vst [vmem:[#allocation2 + $0x150] sm:$0xff] %v925
  %990 = vst [vmem:[#allocation2 + $0x158] sm:$0xff] %v926
  %991 = vst [vmem:[#allocation2 + $0x160] sm:$0xff] %v927
  %992 = vst [vmem:[#allocation2 + $0x168] sm:$0xff] %v928
  %993 = vst [vmem:[#allocation2 + $0x170] sm:$0xff] %v929
  %994 = vst [vmem:[#allocation2 + $0x178] sm:$0xff] %v930
  %995 = vst [vmem:[#allocation2 + $0x180] sm:$0xff] %v931
  %996 = vst [vmem:[#allocation2 + $0x188] sm:$0xff] %v932
  %997 = vst [vmem:[#allocation2 + $0x190] sm:$0xff] %v933
  %998 = vst [vmem:[#allocation2 + $0x198] sm:$0xff] %v934
  %999 = vst [vmem:[#allocation2 + $0x1a0] sm:$0xff] %v935
  %1000 = vst [vmem:[#allocation2 + $0x1a8] sm:$0xff] %v936
  %1001 = vst [vmem:[#allocation2 + $0x1b0] sm:$0xff] %v937
  %1002 = vst [vmem:[#allocation2 + $0x1b8] sm:$0xff] %v938
  %1003 = vst [vmem:[#allocation2 + $0x1c0] sm:$0xff] %v939
  %1004 = vst [vmem:[#allocation2 + $0x1c8] sm:$0xff] %v940
  %1005 = vst [vmem:[#allocation2 + $0x1d0] sm:$0xff] %v941
  %1006 = vst [vmem:[#allocation2 + $0x1d8] sm:$0xff] %v942
  %1007 = vst [vmem:[#allocation2 + $0x1e0] sm:$0xff] %v943
  %1008 = vst [vmem:[#allocation2 + $0x1e8] sm:$0xff] %v944
  %1009 = vst [vmem:[#allocation2 + $0x1f0] sm:$0xff] %v945
  %1010 = vst [vmem:[#allocation2 + $0x1f8] sm:$0xff] %v946
  // Predicated region
  $region14: #{rerank_loss_forward.8} parent=0 // pred_check
    %p1011 = pneg %p11
  $region15: #{rerank_loss_forward.8} parent=0 // pred_check_branch
    %1013 = sbr.rel (%p1011) target = $region17
  $region16: #{rerank_loss_forward.8} parent=0 // pred_region
    %v1014 = vld [vmem:[#allocation2] sm:$0xff]
    %v1015 = vld [vmem:[#allocation2 + $0x8] sm:$0xff]
    %v1016 = vld [vmem:[#allocation2 + $0x10] sm:$0xff]
    %v1017 = vld [vmem:[#allocation2 + $0x18] sm:$0xff]
    %v1018 = vld [vmem:[#allocation2 + $0x20] sm:$0xff]
    %v1019 = vld [vmem:[#allocation2 + $0x28] sm:$0xff]
    %v1020 = vld [vmem:[#allocation2 + $0x30] sm:$0xff]
    %v1021 = vld [vmem:[#allocation2 + $0x38] sm:$0xff]
    %v1022 = vld [vmem:[#allocation2 + $0x40] sm:$0xff]
    %v1023 = vld [vmem:[#allocation2 + $0x48] sm:$0xff]
    %v1024 = vld [vmem:[#allocation2 + $0x50] sm:$0xff]
    %v1025 = vld [vmem:[#allocation2 + $0x58] sm:$0xff]
    %v1026 = vld [vmem:[#allocation2 + $0x60] sm:$0xff]
    %v1027 = vld [vmem:[#allocation2 + $0x68] sm:$0xff]
    %v1028 = vld [vmem:[#allocation2 + $0x70] sm:$0xff]
    %v1029 = vld [vmem:[#allocation2 + $0x78] sm:$0xff]
    %v1030 = vld [vmem:[#allocation2 + $0x80] sm:$0xff]
    %v1031 = vld [vmem:[#allocation2 + $0x88] sm:$0xff]
    %v1032 = vld [vmem:[#allocation2 + $0x90] sm:$0xff]
    %v1033 = vld [vmem:[#allocation2 + $0x98] sm:$0xff]
    %v1034 = vld [vmem:[#allocation2 + $0xa0] sm:$0xff]
    %v1035 = vld [vmem:[#allocation2 + $0xa8] sm:$0xff]
    %v1036 = vld [vmem:[#allocation2 + $0xb0] sm:$0xff]
    %v1037 = vld [vmem:[#allocation2 + $0xb8] sm:$0xff]
    %v1038 = vld [vmem:[#allocation2 + $0xc0] sm:$0xff]
    %v1039 = vld [vmem:[#allocation2 + $0xc8] sm:$0xff]
    %v1040 = vld [vmem:[#allocation2 + $0xd0] sm:$0xff]
    %v1041 = vld [vmem:[#allocation2 + $0xd8] sm:$0xff]
    %v1042 = vld [vmem:[#allocation2 + $0xe0] sm:$0xff]
    %v1043 = vld [vmem:[#allocation2 + $0xe8] sm:$0xff]
    %v1044 = vld [vmem:[#allocation2 + $0xf0] sm:$0xff]
    %v1045 = vld [vmem:[#allocation2 + $0xf8] sm:$0xff]
    %v1046 = vld [vmem:[#allocation2 + $0x100] sm:$0xff]
    %v1047 = vld [vmem:[#allocation2 + $0x108] sm:$0xff]
    %v1048 = vld [vmem:[#allocation2 + $0x110] sm:$0xff]
    %v1049 = vld [vmem:[#allocation2 + $0x118] sm:$0xff]
    %v1050 = vld [vmem:[#allocation2 + $0x120] sm:$0xff]
    %v1051 = vld [vmem:[#allocation2 + $0x128] sm:$0xff]
    %v1052 = vld [vmem:[#allocation2 + $0x130] sm:$0xff]
    %v1053 = vld [vmem:[#allocation2 + $0x138] sm:$0xff]
    %v1054 = vld [vmem:[#allocation2 + $0x140] sm:$0xff]
    %v1055 = vld [vmem:[#allocation2 + $0x148] sm:$0xff]
    %v1056 = vld [vmem:[#allocation2 + $0x150] sm:$0xff]
    %v1057 = vld [vmem:[#allocation2 + $0x158] sm:$0xff]
    %v1058 = vld [vmem:[#allocation2 + $0x160] sm:$0xff]
    %v1059 = vld [vmem:[#allocation2 + $0x168] sm:$0xff]
    %v1060 = vld [vmem:[#allocation2 + $0x170] sm:$0xff]
    %v1061 = vld [vmem:[#allocation2 + $0x178] sm:$0xff]
    %v1062 = vld [vmem:[#allocation2 + $0x180] sm:$0xff]
    %v1063 = vld [vmem:[#allocation2 + $0x188] sm:$0xff]
    %v1064 = vld [vmem:[#allocation2 + $0x190] sm:$0xff]
    %v1065 = vld [vmem:[#allocation2 + $0x198] sm:$0xff]
    %v1066 = vld [vmem:[#allocation2 + $0x1a0] sm:$0xff]
    %v1067 = vld [vmem:[#allocation2 + $0x1a8] sm:$0xff]
    %v1068 = vld [vmem:[#allocation2 + $0x1b0] sm:$0xff]
    %v1069 = vld [vmem:[#allocation2 + $0x1b8] sm:$0xff]
    %v1070 = vld [vmem:[#allocation2 + $0x1c0] sm:$0xff]
    %v1071 = vld [vmem:[#allocation2 + $0x1c8] sm:$0xff]
    %v1072 = vld [vmem:[#allocation2 + $0x1d0] sm:$0xff]
    %v1073 = vld [vmem:[#allocation2 + $0x1d8] sm:$0xff]
    %v1074 = vld [vmem:[#allocation2 + $0x1e0] sm:$0xff]
    %v1075 = vld [vmem:[#allocation2 + $0x1e8] sm:$0xff]
    %v1076 = vld [vmem:[#allocation2 + $0x1f0] sm:$0xff]
    %v1077 = vld [vmem:[#allocation2 + $0x1f8] sm:$0xff]
    %1078 = vst [vmem:[%s2] sm:$0xff] %v1014
    %1079 = vst [vmem:[%s2 + $0x8] sm:$0xff] %v1015
    %1080 = vst [vmem:[%s2 + $0x10] sm:$0xff] %v1016
    %1081 = vst [vmem:[%s2 + $0x18] sm:$0xff] %v1017
    %1082 = vst [vmem:[%s2 + $0x20] sm:$0xff] %v1018
    %1083 = vst [vmem:[%s2 + $0x28] sm:$0xff] %v1019
    %1084 = vst [vmem:[%s2 + $0x30] sm:$0xff] %v1020
    %1085 = vst [vmem:[%s2 + $0x38] sm:$0xff] %v1021
    %1086 = vst [vmem:[%s2 + $0x40] sm:$0xff] %v1022
    %1087 = vst [vmem:[%s2 + $0x48] sm:$0xff] %v1023
    %1088 = vst [vmem:[%s2 + $0x50] sm:$0xff] %v1024
    %1089 = vst [vmem:[%s2 + $0x58] sm:$0xff] %v1025
    %1090 = vst [vmem:[%s2 + $0x60] sm:$0xff] %v1026
    %1091 = vst [vmem:[%s2 + $0x68] sm:$0xff] %v1027
    %1092 = vst [vmem:[%s2 + $0x70] sm:$0xff] %v1028
    %1093 = vst [vmem:[%s2 + $0x78] sm:$0xff] %v1029
    %1094 = vst [vmem:[%s2 + $0x80] sm:$0xff] %v1030
    %1095 = vst [vmem:[%s2 + $0x88] sm:$0xff] %v1031
    %1096 = vst [vmem:[%s2 + $0x90] sm:$0xff] %v1032
    %1097 = vst [vmem:[%s2 + $0x98] sm:$0xff] %v1033
    %1098 = vst [vmem:[%s2 + $0xa0] sm:$0xff] %v1034
    %1099 = vst [vmem:[%s2 + $0xa8] sm:$0xff] %v1035
    %1100 = vst [vmem:[%s2 + $0xb0] sm:$0xff] %v1036
    %1101 = vst [vmem:[%s2 + $0xb8] sm:$0xff] %v1037
    %1102 = vst [vmem:[%s2 + $0xc0] sm:$0xff] %v1038
    %1103 = vst [vmem:[%s2 + $0xc8] sm:$0xff] %v1039
    %1104 = vst [vmem:[%s2 + $0xd0] sm:$0xff] %v1040
    %1105 = vst [vmem:[%s2 + $0xd8] sm:$0xff] %v1041
    %1106 = vst [vmem:[%s2 + $0xe0] sm:$0xff] %v1042
    %1107 = vst [vmem:[%s2 + $0xe8] sm:$0xff] %v1043
    %1108 = vst [vmem:[%s2 + $0xf0] sm:$0xff] %v1044
    %1109 = vst [vmem:[%s2 + $0xf8] sm:$0xff] %v1045
    %1110 = vst [vmem:[%s2 + $0x100] sm:$0xff] %v1046
    %1111 = vst [vmem:[%s2 + $0x108] sm:$0xff] %v1047
    %1112 = vst [vmem:[%s2 + $0x110] sm:$0xff] %v1048
    %1113 = vst [vmem:[%s2 + $0x118] sm:$0xff] %v1049
    %1114 = vst [vmem:[%s2 + $0x120] sm:$0xff] %v1050
    %1115 = vst [vmem:[%s2 + $0x128] sm:$0xff] %v1051
    %1116 = vst [vmem:[%s2 + $0x130] sm:$0xff] %v1052
    %1117 = vst [vmem:[%s2 + $0x138] sm:$0xff] %v1053
    %1118 = vst [vmem:[%s2 + $0x140] sm:$0xff] %v1054
    %1119 = vst [vmem:[%s2 + $0x148] sm:$0xff] %v1055
    %1120 = vst [vmem:[%s2 + $0x150] sm:$0xff] %v1056
    %1121 = vst [vmem:[%s2 + $0x158] sm:$0xff] %v1057
    %1122 = vst [vmem:[%s2 + $0x160] sm:$0xff] %v1058
    %1123 = vst [vmem:[%s2 + $0x168] sm:$0xff] %v1059
    %1124 = vst [vmem:[%s2 + $0x170] sm:$0xff] %v1060
    %1125 = vst [vmem:[%s2 + $0x178] sm:$0xff] %v1061
    %1126 = vst [vmem:[%s2 + $0x180] sm:$0xff] %v1062
    %1127 = vst [vmem:[%s2 + $0x188] sm:$0xff] %v1063
    %1128 = vst [vmem:[%s2 + $0x190] sm:$0xff] %v1064
    %1129 = vst [vmem:[%s2 + $0x198] sm:$0xff] %v1065
    %1130 = vst [vmem:[%s2 + $0x1a0] sm:$0xff] %v1066
    %1131 = vst [vmem:[%s2 + $0x1a8] sm:$0xff] %v1067
    %1132 = vst [vmem:[%s2 + $0x1b0] sm:$0xff] %v1068
    %1133 = vst [vmem:[%s2 + $0x1b8] sm:$0xff] %v1069
    %1134 = vst [vmem:[%s2 + $0x1c0] sm:$0xff] %v1070
    %1135 = vst [vmem:[%s2 + $0x1c8] sm:$0xff] %v1071
    %1136 = vst [vmem:[%s2 + $0x1d0] sm:$0xff] %v1072
    %1137 = vst [vmem:[%s2 + $0x1d8] sm:$0xff] %v1073
    %1138 = vst [vmem:[%s2 + $0x1e0] sm:$0xff] %v1074
    %1139 = vst [vmem:[%s2 + $0x1e8] sm:$0xff] %v1075
    %1140 = vst [vmem:[%s2 + $0x1f0] sm:$0xff] %v1076
    %1141 = vst [vmem:[%s2 + $0x1f8] sm:$0xff] %v1077
  $region17: #{rerank_loss_forward.8} parent=0 // pred_fallthru
    _
  // Predicated region
  $region18: #{rerank_loss_forward.8} parent=0 // pred_check
    _
  $region19: #{rerank_loss_forward.8} parent=0 // pred_check_branch
    %1143 = sbr.rel (0) target = $region21
  $region20: #{rerank_loss_forward.8} parent=0 // pred_region
    _
  $region21: #{rerank_loss_forward.8} parent=0 // pred_fallthru
    _
  // Predicated region
  $region22: #{rerank_loss_forward.8} parent=0 // pred_check
    _
  $region23: #{rerank_loss_forward.8} parent=0 // pred_check_branch
    %1145 = sbr.rel (0) target = $region25
  $region24: #{rerank_loss_forward.8} parent=0 // pred_region
    _
  $region25: #{rerank_loss_forward.8} parent=0 // pred_fallthru
    _

// kernel: rerank_loss_forward.7
$region0: #{rerank_loss_forward.7}
  #allocation0 [shape = 'u32[]', space=smem, size = 0x4, offset = 0x4, fixed_abs, tag = 'smem constant byte address 0x4 - core index']
  #allocation1 [shape = 'u32[72,128]{1,0:T(1,128)}', space=vmem, size = 0x9000, scoped, tag = 'internal scratch']
  #allocation2 [shape = 'f32[256,256]{1,0:T(8,128)}', space=vmem, size = 0x40000, scoped, tag = 'scratch operand']
  %s0 = inlined_call_operand.vmem [shape: f32[256,128], index: 0, kind: input, shape index: {}]
  %s1 = inlined_call_operand.vmem [shape: f32[128,256], index: 1, kind: input, shape index: {}]
  %s2 = inlined_call_operand.vmem [shape: f32[256,1], index: 2, kind: input, shape index: {}]
  %s3 = inlined_call_operand.vmem [shape: f32[1,256], index: 3, kind: input, shape index: {}]
  %s4 = inlined_call_operand.vmem [shape: f32[256,256], index: 4, kind: output, shape index: {}]
  %s5 = sld [smem:[#allocation0]]
  $region34: #{rerank_loss_forward.7} parent=0
    _
  %s7 = ssub.s32 1, %s5
  %s8 = scalar_select 0, %s7, %s5
  // Predicated region
  $region2: #{rerank_loss_forward.7} parent=0 // pred_check
    _
  $region3: #{rerank_loss_forward.7} parent=0 // pred_check_branch
    %10 = sbr.rel (0) target = $region5
  $region4: #{rerank_loss_forward.7} parent=0 // pred_region
    _
  $region5: #{rerank_loss_forward.7} parent=0 // pred_fallthru
    _
  // Predicated region
  $region6: #{rerank_loss_forward.7} parent=0 // pred_check
    _
  $region7: #{rerank_loss_forward.7} parent=0 // pred_check_branch
    %12 = sbr.rel (0) target = $region9
  $region8: #{rerank_loss_forward.7} parent=0 // pred_region
    _
  $region9: #{rerank_loss_forward.7} parent=0 // pred_fallthru
    _
  // Predicated region
  $region10: #{rerank_loss_forward.7} parent=0 // pred_check
    _
  $region11: #{rerank_loss_forward.7} parent=0 // pred_check_branch
    %14 = sbr.rel (0) target = $region13
  $region12: #{rerank_loss_forward.7} parent=0 // pred_region
    _
  $region13: #{rerank_loss_forward.7} parent=0 // pred_fallthru
    _
  // Predicated region
  $region14: #{rerank_loss_forward.7} parent=0 // pred_check
    _
  $region15: #{rerank_loss_forward.7} parent=0 // pred_check_branch
    %16 = sbr.rel (0) target = $region17
  $region16: #{rerank_loss_forward.7} parent=0 // pred_region
    _
  $region17: #{rerank_loss_forward.7} parent=0 // pred_fallthru
    _
  %p17 = scmp.eq.s32.totalorder 0, 0
  // Predicated region
  $region18: #{rerank_loss_forward.7} parent=0 // pred_check
    %p18 = pneg %p17
  $region19: #{rerank_loss_forward.7} parent=0 // pred_check_branch
    %20 = sbr.rel (%p18) target = $region21
  $region20: #{rerank_loss_forward.7} parent=0 // pred_region
    %21 = vst [vmem:[#allocation2] sm:$0xff] 0.0
    %22 = vst [vmem:[#allocation2 + $0x8] sm:$0xff] 0.0
    %23 = vst [vmem:[#allocation2 + $0x10] sm:$0xff] 0.0
    %24 = vst [vmem:[#allocation2 + $0x18] sm:$0xff] 0.0
    %25 = vst [vmem:[#allocation2 + $0x20] sm:$0xff] 0.0
    %26 = vst [vmem:[#allocation2 + $0x28] sm:$0xff] 0.0
    %27 = vst [vmem:[#allocation2 + $0x30] sm:$0xff] 0.0
    %28 = vst [vmem:[#allocation2 + $0x38] sm:$0xff] 0.0
    %29 = vst [vmem:[#allocation2 + $0x40] sm:$0xff] 0.0
    %30 = vst [vmem:[#allocation2 + $0x48] sm:$0xff] 0.0
    %31 = vst [vmem:[#allocation2 + $0x50] sm:$0xff] 0.0
    %32 = vst [vmem:[#allocation2 + $0x58] sm:$0xff] 0.0
    %33 = vst [vmem:[#allocation2 + $0x60] sm:$0xff] 0.0
    %34 = vst [vmem:[#allocation2 + $0x68] sm:$0xff] 0.0
    %35 = vst [vmem:[#allocation2 + $0x70] sm:$0xff] 0.0
    %36 = vst [vmem:[#allocation2 + $0x78] sm:$0xff] 0.0
    %37 = vst [vmem:[#allocation2 + $0x80] sm:$0xff] 0.0
    %38 = vst [vmem:[#allocation2 + $0x88] sm:$0xff] 0.0
    %39 = vst [vmem:[#allocation2 + $0x90] sm:$0xff] 0.0
    %40 = vst [vmem:[#allocation2 + $0x98] sm:$0xff] 0.0
    %41 = vst [vmem:[#allocation2 + $0xa0] sm:$0xff] 0.0
    %42 = vst [vmem:[#allocation2 + $0xa8] sm:$0xff] 0.0
    %43 = vst [vmem:[#allocation2 + $0xb0] sm:$0xff] 0.0
    %44 = vst [vmem:[#allocation2 + $0xb8] sm:$0xff] 0.0
    %45 = vst [vmem:[#allocation2 + $0xc0] sm:$0xff] 0.0
    %46 = vst [vmem:[#allocation2 + $0xc8] sm:$0xff] 0.0
    %47 = vst [vmem:[#allocation2 + $0xd0] sm:$0xff] 0.0
    %48 = vst [vmem:[#allocation2 + $0xd8] sm:$0xff] 0.0
    %49 = vst [vmem:[#allocation2 + $0xe0] sm:$0xff] 0.0
    %50 = vst [vmem:[#allocation2 + $0xe8] sm:$0xff] 0.0
    %51 = vst [vmem:[#allocation2 + $0xf0] sm:$0xff] 0.0
    %52 = vst [vmem:[#allocation2 + $0xf8] sm:$0xff] 0.0
    %53 = vst [vmem:[#allocation2 + $0x100] sm:$0xff] 0.0
    %54 = vst [vmem:[#allocation2 + $0x108] sm:$0xff] 0.0
    %55 = vst [vmem:[#allocation2 + $0x110] sm:$0xff] 0.0
    %56 = vst [vmem:[#allocation2 + $0x118] sm:$0xff] 0.0
    %57 = vst [vmem:[#allocation2 + $0x120] sm:$0xff] 0.0
    %58 = vst [vmem:[#allocation2 + $0x128] sm:$0xff] 0.0
    %59 = vst [vmem:[#allocation2 + $0x130] sm:$0xff] 0.0
    %60 = vst [vmem:[#allocation2 + $0x138] sm:$0xff] 0.0
    %61 = vst [vmem:[#allocation2 + $0x140] sm:$0xff] 0.0
    %62 = vst [vmem:[#allocation2 + $0x148] sm:$0xff] 0.0
    %63 = vst [vmem:[#allocation2 + $0x150] sm:$0xff] 0.0
    %64 = vst [vmem:[#allocation2 + $0x158] sm:$0xff] 0.0
    %65 = vst [vmem:[#allocation2 + $0x160] sm:$0xff] 0.0
    %66 = vst [vmem:[#allocation2 + $0x168] sm:$0xff] 0.0
    %67 = vst [vmem:[#allocation2 + $0x170] sm:$0xff] 0.0
    %68 = vst [vmem:[#allocation2 + $0x178] sm:$0xff] 0.0
    %69 = vst [vmem:[#allocation2 + $0x180] sm:$0xff] 0.0
    %70 = vst [vmem:[#allocation2 + $0x188] sm:$0xff] 0.0
    %71 = vst [vmem:[#allocation2 + $0x190] sm:$0xff] 0.0
    %72 = vst [vmem:[#allocation2 + $0x198] sm:$0xff] 0.0
    %73 = vst [vmem:[#allocation2 + $0x1a0] sm:$0xff] 0.0
    %74 = vst [vmem:[#allocation2 + $0x1a8] sm:$0xff] 0.0
    %75 = vst [vmem:[#allocation2 + $0x1b0] sm:$0xff] 0.0
    %76 = vst [vmem:[#allocation2 + $0x1b8] sm:$0xff] 0.0
    %77 = vst [vmem:[#allocation2 + $0x1c0] sm:$0xff] 0.0
    %78 = vst [vmem:[#allocation2 + $0x1c8] sm:$0xff] 0.0
    %79 = vst [vmem:[#allocation2 + $0x1d0] sm:$0xff] 0.0
    %80 = vst [vmem:[#allocation2 + $0x1d8] sm:$0xff] 0.0
    %81 = vst [vmem:[#allocation2 + $0x1e0] sm:$0xff] 0.0
    %82 = vst [vmem:[#allocation2 + $0x1e8] sm:$0xff] 0.0
    %83 = vst [vmem:[#allocation2 + $0x1f0] sm:$0xff] 0.0
    %84 = vst [vmem:[#allocation2 + $0x1f8] sm:$0xff] 0.0
  $region21: #{rerank_loss_forward.7} parent=0 // pred_fallthru
    _
  %v85 = vld [vmem:[#allocation2] sm:$0xff]
  %v86 = vld [vmem:[#allocation2 + $0x8] sm:$0xff]
  %v87 = vld [vmem:[#allocation2 + $0x10] sm:$0xff]
  %v88 = vld [vmem:[#allocation2 + $0x18] sm:$0xff]
  %v89 = vld [vmem:[#allocation2 + $0x20] sm:$0xff]
  %v90 = vld [vmem:[#allocation2 + $0x28] sm:$0xff]
  %v91 = vld [vmem:[#allocation2 + $0x30] sm:$0xff]
  %v92 = vld [vmem:[#allocation2 + $0x38] sm:$0xff]
  %v93 = vld [vmem:[#allocation2 + $0x40] sm:$0xff]
  %v94 = vld [vmem:[#allocation2 + $0x48] sm:$0xff]
  %v95 = vld [vmem:[#allocation2 + $0x50] sm:$0xff]
  %v96 = vld [vmem:[#allocation2 + $0x58] sm:$0xff]
  %v97 = vld [vmem:[#allocation2 + $0x60] sm:$0xff]
  %v98 = vld [vmem:[#allocation2 + $0x68] sm:$0xff]
  %v99 = vld [vmem:[#allocation2 + $0x70] sm:$0xff]
  %v100 = vld [vmem:[#allocation2 + $0x78] sm:$0xff]
  %v101 = vld [vmem:[#allocation2 + $0x80] sm:$0xff]
  %v102 = vld [vmem:[#allocation2 + $0x88] sm:$0xff]
  %v103 = vld [vmem:[#allocation2 + $0x90] sm:$0xff]
  %v104 = vld [vmem:[#allocation2 + $0x98] sm:$0xff]
  %v105 = vld [vmem:[#allocation2 + $0xa0] sm:$0xff]
  %v106 = vld [vmem:[#allocation2 + $0xa8] sm:$0xff]
  %v107 = vld [vmem:[#allocation2 + $0xb0] sm:$0xff]
  %v108 = vld [vmem:[#allocation2 + $0xb8] sm:$0xff]
  %v109 = vld [vmem:[#allocation2 + $0xc0] sm:$0xff]
  %v110 = vld [vmem:[#allocation2 + $0xc8] sm:$0xff]
  %v111 = vld [vmem:[#allocation2 + $0xd0] sm:$0xff]
  %v112 = vld [vmem:[#allocation2 + $0xd8] sm:$0xff]
  %v113 = vld [vmem:[#allocation2 + $0xe0] sm:$0xff]
  %v114 = vld [vmem:[#allocation2 + $0xe8] sm:$0xff]
  %v115 = vld [vmem:[#allocation2 + $0xf0] sm:$0xff]
  %v116 = vld [vmem:[#allocation2 + $0xf8] sm:$0xff]
  %v117 = vld [vmem:[#allocation2 + $0x100] sm:$0xff]
  %v118 = vld [vmem:[#allocation2 + $0x108] sm:$0xff]
  %v119 = vld [vmem:[#allocation2 + $0x110] sm:$0xff]
  %v120 = vld [vmem:[#allocation2 + $0x118] sm:$0xff]
  %v121 = vld [vmem:[#allocation2 + $0x120] sm:$0xff]
  %v122 = vld [vmem:[#allocation2 + $0x128] sm:$0xff]
  %v123 = vld [vmem:[#allocation2 + $0x130] sm:$0xff]
  %v124 = vld [vmem:[#allocation2 + $0x138] sm:$0xff]
  %v125 = vld [vmem:[#allocation2 + $0x140] sm:$0xff]
  %v126 = vld [vmem:[#allocation2 + $0x148] sm:$0xff]
  %v127 = vld [vmem:[#allocation2 + $0x150] sm:$0xff]
  %v128 = vld [vmem:[#allocation2 + $0x158] sm:$0xff]
  %v129 = vld [vmem:[#allocation2 + $0x160] sm:$0xff]
  %v130 = vld [vmem:[#allocation2 + $0x168] sm:$0xff]
  %v131 = vld [vmem:[#allocation2 + $0x170] sm:$0xff]
  %v132 = vld [vmem:[#allocation2 + $0x178] sm:$0xff]
  %v133 = vld [vmem:[#allocation2 + $0x180] sm:$0xff]
  %v134 = vld [vmem:[#allocation2 + $0x188] sm:$0xff]
  %v135 = vld [vmem:[#allocation2 + $0x190] sm:$0xff]
  %v136 = vld [vmem:[#allocation2 + $0x198] sm:$0xff]
  %v137 = vld [vmem:[#allocation2 + $0x1a0] sm:$0xff]
  %v138 = vld [vmem:[#allocation2 + $0x1a8] sm:$0xff]
  %v139 = vld [vmem:[#allocation2 + $0x1b0] sm:$0xff]
  %v140 = vld [vmem:[#allocation2 + $0x1b8] sm:$0xff]
  %v141 = vld [vmem:[#allocation2 + $0x1c0] sm:$0xff]
  %v142 = vld [vmem:[#allocation2 + $0x1c8] sm:$0xff]
  %v143 = vld [vmem:[#allocation2 + $0x1d0] sm:$0xff]
  %v144 = vld [vmem:[#allocation2 + $0x1d8] sm:$0xff]
  %v145 = vld [vmem:[#allocation2 + $0x1e0] sm:$0xff]
  %v146 = vld [vmem:[#allocation2 + $0x1e8] sm:$0xff]
  %v147 = vld [vmem:[#allocation2 + $0x1f0] sm:$0xff]
  %v148 = vld [vmem:[#allocation2 + $0x1f8] sm:$0xff]
  %v149 = vld [vmem:[%s0] sm:$0xff]
  %v150 = vld [vmem:[%s0 + $0x8] sm:$0xff]
  %v151 = vld [vmem:[%s0 + $0x10] sm:$0xff]
  %v152 = vld [vmem:[%s0 + $0x18] sm:$0xff]
  %v153 = vld [vmem:[%s0 + $0x20] sm:$0xff]
  %v154 = vld [vmem:[%s0 + $0x28] sm:$0xff]
  %v155 = vld [vmem:[%s0 + $0x30] sm:$0xff]
  %v156 = vld [vmem:[%s0 + $0x38] sm:$0xff]
  %v157 = vld [vmem:[%s0 + $0x40] sm:$0xff]
  %v158 = vld [vmem:[%s0 + $0x48] sm:$0xff]
  %v159 = vld [vmem:[%s0 + $0x50] sm:$0xff]
  %v160 = vld [vmem:[%s0 + $0x58] sm:$0xff]
  %v161 = vld [vmem:[%s0 + $0x60] sm:$0xff]
  %v162 = vld [vmem:[%s0 + $0x68] sm:$0xff]
  %v163 = vld [vmem:[%s0 + $0x70] sm:$0xff]
  %v164 = vld [vmem:[%s0 + $0x78] sm:$0xff]
  %v165 = vld [vmem:[%s0 + $0x80] sm:$0xff]
  %v166 = vld [vmem:[%s0 + $0x88] sm:$0xff]
  %v167 = vld [vmem:[%s0 + $0x90] sm:$0xff]
  %v168 = vld [vmem:[%s0 + $0x98] sm:$0xff]
  %v169 = vld [vmem:[%s0 + $0xa0] sm:$0xff]
  %v170 = vld [vmem:[%s0 + $0xa8] sm:$0xff]
  %v171 = vld [vmem:[%s0 + $0xb0] sm:$0xff]
  %v172 = vld [vmem:[%s0 + $0xb8] sm:$0xff]
  %v173 = vld [vmem:[%s0 + $0xc0] sm:$0xff]
  %v174 = vld [vmem:[%s0 + $0xc8] sm:$0xff]
  %v175 = vld [vmem:[%s0 + $0xd0] sm:$0xff]
  %v176 = vld [vmem:[%s0 + $0xd8] sm:$0xff]
  %v177 = vld [vmem:[%s0 + $0xe0] sm:$0xff]
  %v178 = vld [vmem:[%s0 + $0xe8] sm:$0xff]
  %v179 = vld [vmem:[%s0 + $0xf0] sm:$0xff]
  %v180 = vld [vmem:[%s0 + $0xf8] sm:$0xff]
  %v181 = vld [vmem:[%s1] sm:$0xff]
  %v182 = vld [vmem:[%s1 + $0x8] sm:$0xff]
  %v183 = vld [vmem:[%s1 + $0x10] sm:$0xff]
  %v184 = vld [vmem:[%s1 + $0x18] sm:$0xff]
  %v185 = vld [vmem:[%s1 + $0x20] sm:$0xff]
  %v186 = vld [vmem:[%s1 + $0x28] sm:$0xff]
  %v187 = vld [vmem:[%s1 + $0x30] sm:$0xff]
  %v188 = vld [vmem:[%s1 + $0x38] sm:$0xff]
  %v189 = vld [vmem:[%s1 + $0x40] sm:$0xff]
  %v190 = vld [vmem:[%s1 + $0x48] sm:$0xff]
  %v191 = vld [vmem:[%s1 + $0x50] sm:$0xff]
  %v192 = vld [vmem:[%s1 + $0x58] sm:$0xff]
  %v193 = vld [vmem:[%s1 + $0x60] sm:$0xff]
  %v194 = vld [vmem:[%s1 + $0x68] sm:$0xff]
  %v195 = vld [vmem:[%s1 + $0x70] sm:$0xff]
  %v196 = vld [vmem:[%s1 + $0x78] sm:$0xff]
  %v197 = vld [vmem:[%s1 + $0x80] sm:$0xff]
  %v198 = vld [vmem:[%s1 + $0x88] sm:$0xff]
  %v199 = vld [vmem:[%s1 + $0x90] sm:$0xff]
  %v200 = vld [vmem:[%s1 + $0x98] sm:$0xff]
  %v201 = vld [vmem:[%s1 + $0xa0] sm:$0xff]
  %v202 = vld [vmem:[%s1 + $0xa8] sm:$0xff]
  %v203 = vld [vmem:[%s1 + $0xb0] sm:$0xff]
  %v204 = vld [vmem:[%s1 + $0xb8] sm:$0xff]
  %v205 = vld [vmem:[%s1 + $0xc0] sm:$0xff]
  %v206 = vld [vmem:[%s1 + $0xc8] sm:$0xff]
  %v207 = vld [vmem:[%s1 + $0xd0] sm:$0xff]
  %v208 = vld [vmem:[%s1 + $0xd8] sm:$0xff]
  %v209 = vld [vmem:[%s1 + $0xe0] sm:$0xff]
  %v210 = vld [vmem:[%s1 + $0xe8] sm:$0xff]
  %v211 = vld [vmem:[%s1 + $0xf0] sm:$0xff]
  %v212 = vld [vmem:[%s1 + $0xf8] sm:$0xff]
  %213 = vmatpush.msra.mxu0 %v211
  %214 = vmatpush.msra.mxu0 %v209
  %215 = vmatpush.msra.mxu0 %v207
  %216 = vmatpush.msra.mxu0 %v205
  %217 = vmatpush.msra.mxu0 %v203
  %218 = vmatpush.msra.mxu0 %v201
  %219 = vmatpush.msra.mxu0 %v199
  %220 = vmatpush.msra.mxu0 %v197
  %221 = vmatpush.msra.mxu0 %v195
  %222 = vmatpush.msra.mxu0 %v193
  %223 = vmatpush.msra.mxu0 %v191
  %224 = vmatpush.msra.mxu0 %v189
  %225 = vmatpush.msra.mxu0 %v187
  %226 = vmatpush.msra.mxu0 %v185
  %227 = vmatpush.msra.mxu0 %v183
  %228 = vmatpush.msra.mxu0 %v181
  %229 = vmatmul.f32.gmra.mxu0 %v149
  %v230 = vpop.f32.mrf.mxu0
  %v231 = vadd.f32 0.0, %v230
  %232 = vmatmul.f32.gmra.mxu0 %v150
  %v233 = vpop.f32.mrf.mxu0
  %v234 = vadd.f32 0.0, %v233
  %235 = vmatmul.f32.gmra.mxu0 %v151
  %v236 = vpop.f32.mrf.mxu0
  %v237 = vadd.f32 0.0, %v236
  %238 = vmatmul.f32.gmra.mxu0 %v152
  %v239 = vpop.f32.mrf.mxu0
  %v240 = vadd.f32 0.0, %v239
  %241 = vmatmul.f32.gmra.mxu0 %v153
  %v242 = vpop.f32.mrf.mxu0
  %v243 = vadd.f32 0.0, %v242
  %244 = vmatmul.f32.gmra.mxu0 %v154
  %v245 = vpop.f32.mrf.mxu0
  %v246 = vadd.f32 0.0, %v245
  %247 = vmatmul.f32.gmra.mxu0 %v155
  %v248 = vpop.f32.mrf.mxu0
  %v249 = vadd.f32 0.0, %v248
  %250 = vmatmul.f32.gmra.mxu0 %v156
  %v251 = vpop.f32.mrf.mxu0
  %v252 = vadd.f32 0.0, %v251
  %253 = vmatmul.f32.gmra.mxu0 %v157
  %v254 = vpop.f32.mrf.mxu0
  %v255 = vadd.f32 0.0, %v254
  %256 = vmatmul.f32.gmra.mxu0 %v158
  %v257 = vpop.f32.mrf.mxu0
  %v258 = vadd.f32 0.0, %v257
  %259 = vmatmul.f32.gmra.mxu0 %v159
  %v260 = vpop.f32.mrf.mxu0
  %v261 = vadd.f32 0.0, %v260
  %262 = vmatmul.f32.gmra.mxu0 %v160
  %v263 = vpop.f32.mrf.mxu0
  %v264 = vadd.f32 0.0, %v263
  %265 = vmatmul.f32.gmra.mxu0 %v161
  %v266 = vpop.f32.mrf.mxu0
  %v267 = vadd.f32 0.0, %v266
  %268 = vmatmul.f32.gmra.mxu0 %v162
  %v269 = vpop.f32.mrf.mxu0
  %v270 = vadd.f32 0.0, %v269
  %271 = vmatmul.f32.gmra.mxu0 %v163
  %v272 = vpop.f32.mrf.mxu0
  %v273 = vadd.f32 0.0, %v272
  %274 = vmatmul.f32.gmra.mxu0 %v164
  %v275 = vpop.f32.mrf.mxu0
  %v276 = vadd.f32 0.0, %v275
  %277 = vmatmul.f32.gmra.mxu0 %v165
  %v278 = vpop.f32.mrf.mxu0
  %v279 = vadd.f32 0.0, %v278
  %280 = vmatmul.f32.gmra.mxu0 %v166
  %v281 = vpop.f32.mrf.mxu0
  %v282 = vadd.f32 0.0, %v281
  %283 = vmatmul.f32.gmra.mxu0 %v167
  %v284 = vpop.f32.mrf.mxu0
  %v285 = vadd.f32 0.0, %v284
  %286 = vmatmul.f32.gmra.mxu0 %v168
  %v287 = vpop.f32.mrf.mxu0
  %v288 = vadd.f32 0.0, %v287
  %289 = vmatmul.f32.gmra.mxu0 %v169
  %v290 = vpop.f32.mrf.mxu0
  %v291 = vadd.f32 0.0, %v290
  %292 = vmatmul.f32.gmra.mxu0 %v170
  %v293 = vpop.f32.mrf.mxu0
  %v294 = vadd.f32 0.0, %v293
  %295 = vmatmul.f32.gmra.mxu0 %v171
  %v296 = vpop.f32.mrf.mxu0
  %v297 = vadd.f32 0.0, %v296
  %298 = vmatmul.f32.gmra.mxu0 %v172
  %v299 = vpop.f32.mrf.mxu0
  %v300 = vadd.f32 0.0, %v299
  %301 = vmatmul.f32.gmra.mxu0 %v173
  %v302 = vpop.f32.mrf.mxu0
  %v303 = vadd.f32 0.0, %v302
  %304 = vmatmul.f32.gmra.mxu0 %v174
  %v305 = vpop.f32.mrf.mxu0
  %v306 = vadd.f32 0.0, %v305
  %307 = vmatmul.f32.gmra.mxu0 %v175
  %v308 = vpop.f32.mrf.mxu0
  %v309 = vadd.f32 0.0, %v308
  %310 = vmatmul.f32.gmra.mxu0 %v176
  %v311 = vpop.f32.mrf.mxu0
  %v312 = vadd.f32 0.0, %v311
  %313 = vmatmul.f32.gmra.mxu0 %v177
  %v314 = vpop.f32.mrf.mxu0
  %v315 = vadd.f32 0.0, %v314
  %316 = vmatmul.f32.gmra.mxu0 %v178
  %v317 = vpop.f32.mrf.mxu0
  %v318 = vadd.f32 0.0, %v317
  %319 = vmatmul.f32.gmra.mxu0 %v179
  %v320 = vpop.f32.mrf.mxu0
  %v321 = vadd.f32 0.0, %v320
  %322 = vmatmul.f32.gmra.mxu0 %v180
  %v323 = vpop.f32.mrf.mxu0
  %v324 = vadd.f32 0.0, %v323
  %325 = vdwg.mxu0
  %326 = vmatpush.msra.mxu0 %v212
  %327 = vmatpush.msra.mxu0 %v210
  %328 = vmatpush.msra.mxu0 %v208
  %329 = vmatpush.msra.mxu0 %v206
  %330 = vmatpush.msra.mxu0 %v204
  %331 = vmatpush.msra.mxu0 %v202
  %332 = vmatpush.msra.mxu0 %v200
  %333 = vmatpush.msra.mxu0 %v198
  %334 = vmatpush.msra.mxu0 %v196
  %335 = vmatpush.msra.mxu0 %v194
  %336 = vmatpush.msra.mxu0 %v192
  %337 = vmatpush.msra.mxu0 %v190
  %338 = vmatpush.msra.mxu0 %v188
  %339 = vmatpush.msra.mxu0 %v186
  %340 = vmatpush.msra.mxu0 %v184
  %341 = vmatpush.msra.mxu0 %v182
  %342 = vmatmul.f32.gmra.mxu0 %v149
  %v343 = vpop.f32.mrf.mxu0
  %v344 = vadd.f32 0.0, %v343
  %345 = vmatmul.f32.gmra.mxu0 %v150
  %v346 = vpop.f32.mrf.mxu0
  %v347 = vadd.f32 0.0, %v346
  %348 = vmatmul.f32.gmra.mxu0 %v151
  %v349 = vpop.f32.mrf.mxu0
  %v350 = vadd.f32 0.0, %v349
  %351 = vmatmul.f32.gmra.mxu0 %v152
  %v352 = vpop.f32.mrf.mxu0
  %v353 = vadd.f32 0.0, %v352
  %354 = vmatmul.f32.gmra.mxu0 %v153
  %v355 = vpop.f32.mrf.mxu0
  %v356 = vadd.f32 0.0, %v355
  %357 = vmatmul.f32.gmra.mxu0 %v154
  %v358 = vpop.f32.mrf.mxu0
  %v359 = vadd.f32 0.0, %v358
  %360 = vmatmul.f32.gmra.mxu0 %v155
  %v361 = vpop.f32.mrf.mxu0
  %v362 = vadd.f32 0.0, %v361
  %363 = vmatmul.f32.gmra.mxu0 %v156
  %v364 = vpop.f32.mrf.mxu0
  %v365 = vadd.f32 0.0, %v364
  %366 = vmatmul.f32.gmra.mxu0 %v157
  %v367 = vpop.f32.mrf.mxu0
  %v368 = vadd.f32 0.0, %v367
  %369 = vmatmul.f32.gmra.mxu0 %v158
  %v370 = vpop.f32.mrf.mxu0
  %v371 = vadd.f32 0.0, %v370
  %372 = vmatmul.f32.gmra.mxu0 %v159
  %v373 = vpop.f32.mrf.mxu0
  %v374 = vadd.f32 0.0, %v373
  %375 = vmatmul.f32.gmra.mxu0 %v160
  %v376 = vpop.f32.mrf.mxu0
  %v377 = vadd.f32 0.0, %v376
  %378 = vmatmul.f32.gmra.mxu0 %v161
  %v379 = vpop.f32.mrf.mxu0
  %v380 = vadd.f32 0.0, %v379
  %381 = vmatmul.f32.gmra.mxu0 %v162
  %v382 = vpop.f32.mrf.mxu0
  %v383 = vadd.f32 0.0, %v382
  %384 = vmatmul.f32.gmra.mxu0 %v163
  %v385 = vpop.f32.mrf.mxu0
  %v386 = vadd.f32 0.0, %v385
  %387 = vmatmul.f32.gmra.mxu0 %v164
  %v388 = vpop.f32.mrf.mxu0
  %v389 = vadd.f32 0.0, %v388
  %390 = vmatmul.f32.gmra.mxu0 %v165
  %v391 = vpop.f32.mrf.mxu0
  %v392 = vadd.f32 0.0, %v391
  %393 = vmatmul.f32.gmra.mxu0 %v166
  %v394 = vpop.f32.mrf.mxu0
  %v395 = vadd.f32 0.0, %v394
  %396 = vmatmul.f32.gmra.mxu0 %v167
  %v397 = vpop.f32.mrf.mxu0
  %v398 = vadd.f32 0.0, %v397
  %399 = vmatmul.f32.gmra.mxu0 %v168
  %v400 = vpop.f32.mrf.mxu0
  %v401 = vadd.f32 0.0, %v400
  %402 = vmatmul.f32.gmra.mxu0 %v169
  %v403 = vpop.f32.mrf.mxu0
  %v404 = vadd.f32 0.0, %v403
  %405 = vmatmul.f32.gmra.mxu0 %v170
  %v406 = vpop.f32.mrf.mxu0
  %v407 = vadd.f32 0.0, %v406
  %408 = vmatmul.f32.gmra.mxu0 %v171
  %v409 = vpop.f32.mrf.mxu0
  %v410 = vadd.f32 0.0, %v409
  %411 = vmatmul.f32.gmra.mxu0 %v172
  %v412 = vpop.f32.mrf.mxu0
  %v413 = vadd.f32 0.0, %v412
  %414 = vmatmul.f32.gmra.mxu0 %v173
  %v415 = vpop.f32.mrf.mxu0
  %v416 = vadd.f32 0.0, %v415
  %417 = vmatmul.f32.gmra.mxu0 %v174
  %v418 = vpop.f32.mrf.mxu0
  %v419 = vadd.f32 0.0, %v418
  %420 = vmatmul.f32.gmra.mxu0 %v175
  %v421 = vpop.f32.mrf.mxu0
  %v422 = vadd.f32 0.0, %v421
  %423 = vmatmul.f32.gmra.mxu0 %v176
  %v424 = vpop.f32.mrf.mxu0
  %v425 = vadd.f32 0.0, %v424
  %426 = vmatmul.f32.gmra.mxu0 %v177
  %v427 = vpop.f32.mrf.mxu0
  %v428 = vadd.f32 0.0, %v427
  %429 = vmatmul.f32.gmra.mxu0 %v178
  %v430 = vpop.f32.mrf.mxu0
  %v431 = vadd.f32 0.0, %v430
  %432 = vmatmul.f32.gmra.mxu0 %v179
  %v433 = vpop.f32.mrf.mxu0
  %v434 = vadd.f32 0.0, %v433
  %435 = vmatmul.f32.gmra.mxu0 %v180
  %v436 = vpop.f32.mrf.mxu0
  %v437 = vadd.f32 0.0, %v436
  %438 = vdwg.mxu0
  %v439 = vadd.f32 %v85, %v231
  %v440 = vadd.f32 %v86, %v344
  %v441 = vadd.f32 %v87, %v234
  %v442 = vadd.f32 %v88, %v347
  %v443 = vadd.f32 %v89, %v237
  %v444 = vadd.f32 %v90, %v350
  %v445 = vadd.f32 %v91, %v240
  %v446 = vadd.f32 %v92, %v353
  %v447 = vadd.f32 %v93, %v243
  %v448 = vadd.f32 %v94, %v356
  %v449 = vadd.f32 %v95, %v246
  %v450 = vadd.f32 %v96, %v359
  %v451 = vadd.f32 %v97, %v249
  %v452 = vadd.f32 %v98, %v362
  %v453 = vadd.f32 %v99, %v252
  %v454 = vadd.f32 %v100, %v365
  %v455 = vadd.f32 %v101, %v255
  %v456 = vadd.f32 %v102, %v368
  %v457 = vadd.f32 %v103, %v258
  %v458 = vadd.f32 %v104, %v371
  %v459 = vadd.f32 %v105, %v261
  %v460 = vadd.f32 %v106, %v374
  %v461 = vadd.f32 %v107, %v264
  %v462 = vadd.f32 %v108, %v377
  %v463 = vadd.f32 %v109, %v267
  %v464 = vadd.f32 %v110, %v380
  %v465 = vadd.f32 %v111, %v270
  %v466 = vadd.f32 %v112, %v383
  %v467 = vadd.f32 %v113, %v273
  %v468 = vadd.f32 %v114, %v386
  %v469 = vadd.f32 %v115, %v276
  %v470 = vadd.f32 %v116, %v389
  %v471 = vadd.f32 %v117, %v279
  %v472 = vadd.f32 %v118, %v392
  %v473 = vadd.f32 %v119, %v282
  %v474 = vadd.f32 %v120, %v395
  %v475 = vadd.f32 %v121, %v285
  %v476 = vadd.f32 %v122, %v398
  %v477 = vadd.f32 %v123, %v288
  %v478 = vadd.f32 %v124, %v401
  %v479 = vadd.f32 %v125, %v291
  %v480 = vadd.f32 %v126, %v404
  %v481 = vadd.f32 %v127, %v294
  %v482 = vadd.f32 %v128, %v407
  %v483 = vadd.f32 %v129, %v297
  %v484 = vadd.f32 %v130, %v410
  %v485 = vadd.f32 %v131, %v300
  %v486 = vadd.f32 %v132, %v413
  %v487 = vadd.f32 %v133, %v303
  %v488 = vadd.f32 %v134, %v416
  %v489 = vadd.f32 %v135, %v306
  %v490 = vadd.f32 %v136, %v419
  %v491 = vadd.f32 %v137, %v309
  %v492 = vadd.f32 %v138, %v422
  %v493 = vadd.f32 %v139, %v312
  %v494 = vadd.f32 %v140, %v425
  %v495 = vadd.f32 %v141, %v315
  %v496 = vadd.f32 %v142, %v428
  %v497 = vadd.f32 %v143, %v318
  %v498 = vadd.f32 %v144, %v431
  %v499 = vadd.f32 %v145, %v321
  %v500 = vadd.f32 %v146, %v434
  %v501 = vadd.f32 %v147, %v324
  %v502 = vadd.f32 %v148, %v437
  %503 = vst [vmem:[#allocation2] sm:$0xff] %v439
  %504 = vst [vmem:[#allocation2 + $0x8] sm:$0xff] %v440
  %505 = vst [vmem:[#allocation2 + $0x10] sm:$0xff] %v441
  %506 = vst [vmem:[#allocation2 + $0x18] sm:$0xff] %v442
  %507 = vst [vmem:[#allocation2 + $0x20] sm:$0xff] %v443
  %508 = vst [vmem:[#allocation2 + $0x28] sm:$0xff] %v444
  %509 = vst [vmem:[#allocation2 + $0x30] sm:$0xff] %v445
  %510 = vst [vmem:[#allocation2 + $0x38] sm:$0xff] %v446
  %511 = vst [vmem:[#allocation2 + $0x40] sm:$0xff] %v447
  %512 = vst [vmem:[#allocation2 + $0x48] sm:$0xff] %v448
  %513 = vst [vmem:[#allocation2 + $0x50] sm:$0xff] %v449
  %514 = vst [vmem:[#allocation2 + $0x58] sm:$0xff] %v450
  %515 = vst [vmem:[#allocation2 + $0x60] sm:$0xff] %v451
  %516 = vst [vmem:[#allocation2 + $0x68] sm:$0xff] %v452
  %517 = vst [vmem:[#allocation2 + $0x70] sm:$0xff] %v453
  %518 = vst [vmem:[#allocation2 + $0x78] sm:$0xff] %v454
  %519 = vst [vmem:[#allocation2 + $0x80] sm:$0xff] %v455
  %520 = vst [vmem:[#allocation2 + $0x88] sm:$0xff] %v456
  %521 = vst [vmem:[#allocation2 + $0x90] sm:$0xff] %v457
  %522 = vst [vmem:[#allocation2 + $0x98] sm:$0xff] %v458
  %523 = vst [vmem:[#allocation2 + $0xa0] sm:$0xff] %v459
  %524 = vst [vmem:[#allocation2 + $0xa8] sm:$0xff] %v460
  %525 = vst [vmem:[#allocation2 + $0xb0] sm:$0xff] %v461
  %526 = vst [vmem:[#allocation2 + $0xb8] sm:$0xff] %v462
  %527 = vst [vmem:[#allocation2 + $0xc0] sm:$0xff] %v463
  %528 = vst [vmem:[#allocation2 + $0xc8] sm:$0xff] %v464
  %529 = vst [vmem:[#allocation2 + $0xd0] sm:$0xff] %v465
  %530 = vst [vmem:[#allocation2 + $0xd8] sm:$0xff] %v466
  %531 = vst [vmem:[#allocation2 + $0xe0] sm:$0xff] %v467
  %532 = vst [vmem:[#allocation2 + $0xe8] sm:$0xff] %v468
  %533 = vst [vmem:[#allocation2 + $0xf0] sm:$0xff] %v469
  %534 = vst [vmem:[#allocation2 + $0xf8] sm:$0xff] %v470
  %535 = vst [vmem:[#allocation2 + $0x100] sm:$0xff] %v471
  %536 = vst [vmem:[#allocation2 + $0x108] sm:$0xff] %v472
  %537 = vst [vmem:[#allocation2 + $0x110] sm:$0xff] %v473
  %538 = vst [vmem:[#allocation2 + $0x118] sm:$0xff] %v474
  %539 = vst [vmem:[#allocation2 + $0x120] sm:$0xff] %v475
  %540 = vst [vmem:[#allocation2 + $0x128] sm:$0xff] %v476
  %541 = vst [vmem:[#allocation2 + $0x130] sm:$0xff] %v477
  %542 = vst [vmem:[#allocation2 + $0x138] sm:$0xff] %v478
  %543 = vst [vmem:[#allocation2 + $0x140] sm:$0xff] %v479
  %544 = vst [vmem:[#allocation2 + $0x148] sm:$0xff] %v480
  %545 = vst [vmem:[#allocation2 + $0x150] sm:$0xff] %v481
  %546 = vst [vmem:[#allocation2 + $0x158] sm:$0xff] %v482
  %547 = vst [vmem:[#allocation2 + $0x160] sm:$0xff] %v483
  %548 = vst [vmem:[#allocation2 + $0x168] sm:$0xff] %v484
  %549 = vst [vmem:[#allocation2 + $0x170] sm:$0xff] %v485
  %550 = vst [vmem:[#allocation2 + $0x178] sm:$0xff] %v486
  %551 = vst [vmem:[#allocation2 + $0x180] sm:$0xff] %v487
  %552 = vst [vmem:[#allocation2 + $0x188] sm:$0xff] %v488
  %553 = vst [vmem:[#allocation2 + $0x190] sm:$0xff] %v489
  %554 = vst [vmem:[#allocation2 + $0x198] sm:$0xff] %v490
  %555 = vst [vmem:[#allocation2 + $0x1a0] sm:$0xff] %v491
  %556 = vst [vmem:[#allocation2 + $0x1a8] sm:$0xff] %v492
  %557 = vst [vmem:[#allocation2 + $0x1b0] sm:$0xff] %v493
  %558 = vst [vmem:[#allocation2 + $0x1b8] sm:$0xff] %v494
  %559 = vst [vmem:[#allocation2 + $0x1c0] sm:$0xff] %v495
  %560 = vst [vmem:[#allocation2 + $0x1c8] sm:$0xff] %v496
  %561 = vst [vmem:[#allocation2 + $0x1d0] sm:$0xff] %v497
  %562 = vst [vmem:[#allocation2 + $0x1d8] sm:$0xff] %v498
  %563 = vst [vmem:[#allocation2 + $0x1e0] sm:$0xff] %v499
  %564 = vst [vmem:[#allocation2 + $0x1e8] sm:$0xff] %v500
  %565 = vst [vmem:[#allocation2 + $0x1f0] sm:$0xff] %v501
  %566 = vst [vmem:[#allocation2 + $0x1f8] sm:$0xff] %v502
  // Predicated region
  $region22: #{rerank_loss_forward.7} parent=0 // pred_check
    %p567 = pneg %p17
  $region23: #{rerank_loss_forward.7} parent=0 // pred_check_branch
    %569 = sbr.rel (%p567) target = $region25
  $region24: #{rerank_loss_forward.7} parent=0 // pred_region
    %v570 = vld [vmem:[%s2] sm:$0xff]
    %v571 = vld [vmem:[%s2 + $0x8] sm:$0xff]
    %v572 = vld [vmem:[%s2 + $0x10] sm:$0xff]
    %v573 = vld [vmem:[%s2 + $0x18] sm:$0xff]
    %v574 = vld [vmem:[%s2 + $0x20] sm:$0xff]
    %v575 = vld [vmem:[%s2 + $0x28] sm:$0xff]
    %v576 = vld [vmem:[%s2 + $0x30] sm:$0xff]
    %v577 = vld [vmem:[%s2 + $0x38] sm:$0xff]
    %v578 = vld [vmem:[%s2 + $0x40] sm:$0xff]
    %v579 = vld [vmem:[%s2 + $0x48] sm:$0xff]
    %v580 = vld [vmem:[%s2 + $0x50] sm:$0xff]
    %v581 = vld [vmem:[%s2 + $0x58] sm:$0xff]
    %v582 = vld [vmem:[%s2 + $0x60] sm:$0xff]
    %v583 = vld [vmem:[%s2 + $0x68] sm:$0xff]
    %v584 = vld [vmem:[%s2 + $0x70] sm:$0xff]
    %v585 = vld [vmem:[%s2 + $0x78] sm:$0xff]
    %v586 = vld [vmem:[%s2 + $0x80] sm:$0xff]
    %v587 = vld [vmem:[%s2 + $0x88] sm:$0xff]
    %v588 = vld [vmem:[%s2 + $0x90] sm:$0xff]
    %v589 = vld [vmem:[%s2 + $0x98] sm:$0xff]
    %v590 = vld [vmem:[%s2 + $0xa0] sm:$0xff]
    %v591 = vld [vmem:[%s2 + $0xa8] sm:$0xff]
    %v592 = vld [vmem:[%s2 + $0xb0] sm:$0xff]
    %v593 = vld [vmem:[%s2 + $0xb8] sm:$0xff]
    %v594 = vld [vmem:[%s2 + $0xc0] sm:$0xff]
    %v595 = vld [vmem:[%s2 + $0xc8] sm:$0xff]
    %v596 = vld [vmem:[%s2 + $0xd0] sm:$0xff]
    %v597 = vld [vmem:[%s2 + $0xd8] sm:$0xff]
    %v598 = vld [vmem:[%s2 + $0xe0] sm:$0xff]
    %v599 = vld [vmem:[%s2 + $0xe8] sm:$0xff]
    %v600 = vld [vmem:[%s2 + $0xf0] sm:$0xff]
    %v601 = vld [vmem:[%s2 + $0xf8] sm:$0xff]
    %v602 = vld [vmem:[%s3] sm:$0x3]
    %604 = vset.pattern.permute.xlu0 0
    %605 = vperm.xlu0 %604, %v570
    %v606 = vpop.permute.xlu0 %605
    %609 = vset.pattern.permute.xlu0 0
    %610 = vperm.xlu0 %609, %v571
    %v611 = vpop.permute.xlu0 %610
    %614 = vset.pattern.permute.xlu0 0
    %615 = vperm.xlu0 %614, %v572
    %v616 = vpop.permute.xlu0 %615
    %619 = vset.pattern.permute.xlu0 0
    %620 = vperm.xlu0 %619, %v573
    %v621 = vpop.permute.xlu0 %620
    %624 = vset.pattern.permute.xlu0 0
    %625 = vperm.xlu0 %624, %v574
    %v626 = vpop.permute.xlu0 %625
    %629 = vset.pattern.permute.xlu0 0
    %630 = vperm.xlu0 %629, %v575
    %v631 = vpop.permute.xlu0 %630
    %634 = vset.pattern.permute.xlu0 0
    %635 = vperm.xlu0 %634, %v576
    %v636 = vpop.permute.xlu0 %635
    %639 = vset.pattern.permute.xlu0 0
    %640 = vperm.xlu0 %639, %v577
    %v641 = vpop.permute.xlu0 %640
    %644 = vset.pattern.permute.xlu0 0
    %645 = vperm.xlu0 %644, %v578
    %v646 = vpop.permute.xlu0 %645
    %649 = vset.pattern.permute.xlu0 0
    %650 = vperm.xlu0 %649, %v579
    %v651 = vpop.permute.xlu0 %650
    %654 = vset.pattern.permute.xlu0 0
    %655 = vperm.xlu0 %654, %v580
    %v656 = vpop.permute.xlu0 %655
    %659 = vset.pattern.permute.xlu0 0
    %660 = vperm.xlu0 %659, %v581
    %v661 = vpop.permute.xlu0 %660
    %664 = vset.pattern.permute.xlu0 0
    %665 = vperm.xlu0 %664, %v582
    %v666 = vpop.permute.xlu0 %665
    %669 = vset.pattern.permute.xlu0 0
    %670 = vperm.xlu0 %669, %v583
    %v671 = vpop.permute.xlu0 %670
    %674 = vset.pattern.permute.xlu0 0
    %675 = vperm.xlu0 %674, %v584
    %v676 = vpop.permute.xlu0 %675
    %679 = vset.pattern.permute.xlu0 0
    %680 = vperm.xlu0 %679, %v585
    %v681 = vpop.permute.xlu0 %680
    %684 = vset.pattern.permute.xlu0 0
    %685 = vperm.xlu0 %684, %v586
    %v686 = vpop.permute.xlu0 %685
    %689 = vset.pattern.permute.xlu0 0
    %690 = vperm.xlu0 %689, %v587
    %v691 = vpop.permute.xlu0 %690
    %694 = vset.pattern.permute.xlu0 0
    %695 = vperm.xlu0 %694, %v588
    %v696 = vpop.permute.xlu0 %695
    %699 = vset.pattern.permute.xlu0 0
    %700 = vperm.xlu0 %699, %v589
    %v701 = vpop.permute.xlu0 %700
    %704 = vset.pattern.permute.xlu0 0
    %705 = vperm.xlu0 %704, %v590
    %v706 = vpop.permute.xlu0 %705
    %709 = vset.pattern.permute.xlu0 0
    %710 = vperm.xlu0 %709, %v591
    %v711 = vpop.permute.xlu0 %710
    %714 = vset.pattern.permute.xlu0 0
    %715 = vperm.xlu0 %714, %v592
    %v716 = vpop.permute.xlu0 %715
    %719 = vset.pattern.permute.xlu0 0
    %720 = vperm.xlu0 %719, %v593
    %v721 = vpop.permute.xlu0 %720
    %724 = vset.pattern.permute.xlu0 0
    %725 = vperm.xlu0 %724, %v594
    %v726 = vpop.permute.xlu0 %725
    %729 = vset.pattern.permute.xlu0 0
    %730 = vperm.xlu0 %729, %v595
    %v731 = vpop.permute.xlu0 %730
    %734 = vset.pattern.permute.xlu0 0
    %735 = vperm.xlu0 %734, %v596
    %v736 = vpop.permute.xlu0 %735
    %739 = vset.pattern.permute.xlu0 0
    %740 = vperm.xlu0 %739, %v597
    %v741 = vpop.permute.xlu0 %740
    %744 = vset.pattern.permute.xlu0 0
    %745 = vperm.xlu0 %744, %v598
    %v746 = vpop.permute.xlu0 %745
    %749 = vset.pattern.permute.xlu0 0
    %750 = vperm.xlu0 %749, %v599
    %v751 = vpop.permute.xlu0 %750
    %754 = vset.pattern.permute.xlu0 0
    %755 = vperm.xlu0 %754, %v600
    %v756 = vpop.permute.xlu0 %755
    %759 = vset.pattern.permute.xlu0 0
    %760 = vperm.xlu0 %759, %v601
    %v761 = vpop.permute.xlu0 %760
    %v764 = vperm.slane %v602, 0
    %v765 = vperm.slane %v602, 1
    %v768 = vadd.f32 %v606, %v764
    %v769 = vadd.f32 %v606, %v765
    %v770 = vadd.f32 %v611, %v764
    %v771 = vadd.f32 %v611, %v765
    %v772 = vadd.f32 %v616, %v764
    %v773 = vadd.f32 %v616, %v765
    %v774 = vadd.f32 %v621, %v764
    %v775 = vadd.f32 %v621, %v765
    %v776 = vadd.f32 %v626, %v764
    %v777 = vadd.f32 %v626, %v765
    %v778 = vadd.f32 %v631, %v764
    %v779 = vadd.f32 %v631, %v765
    %v780 = vadd.f32 %v636, %v764
    %v781 = vadd.f32 %v636, %v765
    %v782 = vadd.f32 %v641, %v764
    %v783 = vadd.f32 %v641, %v765
    %v784 = vadd.f32 %v646, %v764
    %v785 = vadd.f32 %v646, %v765
    %v786 = vadd.f32 %v651, %v764
    %v787 = vadd.f32 %v651, %v765
    %v788 = vadd.f32 %v656, %v764
    %v789 = vadd.f32 %v656, %v765
    %v790 = vadd.f32 %v661, %v764
    %v791 = vadd.f32 %v661, %v765
    %v792 = vadd.f32 %v666, %v764
    %v793 = vadd.f32 %v666, %v765
    %v794 = vadd.f32 %v671, %v764
    %v795 = vadd.f32 %v671, %v765
    %v796 = vadd.f32 %v676, %v764
    %v797 = vadd.f32 %v676, %v765
    %v798 = vadd.f32 %v681, %v764
    %v799 = vadd.f32 %v681, %v765
    %v800 = vadd.f32 %v686, %v764
    %v801 = vadd.f32 %v686, %v765
    %v802 = vadd.f32 %v691, %v764
    %v803 = vadd.f32 %v691, %v765
    %v804 = vadd.f32 %v696, %v764
    %v805 = vadd.f32 %v696, %v765
    %v806 = vadd.f32 %v701, %v764
    %v807 = vadd.f32 %v701, %v765
    %v808 = vadd.f32 %v706, %v764
    %v809 = vadd.f32 %v706, %v765
    %v810 = vadd.f32 %v711, %v764
    %v811 = vadd.f32 %v711, %v765
    %v812 = vadd.f32 %v716, %v764
    %v813 = vadd.f32 %v716, %v765
    %v814 = vadd.f32 %v721, %v764
    %v815 = vadd.f32 %v721, %v765
    %v816 = vadd.f32 %v726, %v764
    %v817 = vadd.f32 %v726, %v765
    %v818 = vadd.f32 %v731, %v764
    %v819 = vadd.f32 %v731, %v765
    %v820 = vadd.f32 %v736, %v764
    %v821 = vadd.f32 %v736, %v765
    %v822 = vadd.f32 %v741, %v764
    %v823 = vadd.f32 %v741, %v765
    %v824 = vadd.f32 %v746, %v764
    %v825 = vadd.f32 %v746, %v765
    %v826 = vadd.f32 %v751, %v764
    %v827 = vadd.f32 %v751, %v765
    %v828 = vadd.f32 %v756, %v764
    %v829 = vadd.f32 %v756, %v765
    %v830 = vadd.f32 %v761, %v764
    %v831 = vadd.f32 %v761, %v765
    %v832 = vld [vmem:[#allocation2] sm:$0xff]
    %v833 = vld [vmem:[#allocation2 + $0x8] sm:$0xff]
    %v834 = vld [vmem:[#allocation2 + $0x10] sm:$0xff]
    %v835 = vld [vmem:[#allocation2 + $0x18] sm:$0xff]
    %v836 = vld [vmem:[#allocation2 + $0x20] sm:$0xff]
    %v837 = vld [vmem:[#allocation2 + $0x28] sm:$0xff]
    %v838 = vld [vmem:[#allocation2 + $0x30] sm:$0xff]
    %v839 = vld [vmem:[#allocation2 + $0x38] sm:$0xff]
    %v840 = vld [vmem:[#allocation2 + $0x40] sm:$0xff]
    %v841 = vld [vmem:[#allocation2 + $0x48] sm:$0xff]
    %v842 = vld [vmem:[#allocation2 + $0x50] sm:$0xff]
    %v843 = vld [vmem:[#allocation2 + $0x58] sm:$0xff]
    %v844 = vld [vmem:[#allocation2 + $0x60] sm:$0xff]
    %v845 = vld [vmem:[#allocation2 + $0x68] sm:$0xff]
    %v846 = vld [vmem:[#allocation2 + $0x70] sm:$0xff]
    %v847 = vld [vmem:[#allocation2 + $0x78] sm:$0xff]
    %v848 = vld [vmem:[#allocation2 + $0x80] sm:$0xff]
    %v849 = vld [vmem:[#allocation2 + $0x88] sm:$0xff]
    %v850 = vld [vmem:[#allocation2 + $0x90] sm:$0xff]
    %v851 = vld [vmem:[#allocation2 + $0x98] sm:$0xff]
    %v852 = vld [vmem:[#allocation2 + $0xa0] sm:$0xff]
    %v853 = vld [vmem:[#allocation2 + $0xa8] sm:$0xff]
    %v854 = vld [vmem:[#allocation2 + $0xb0] sm:$0xff]
    %v855 = vld [vmem:[#allocation2 + $0xb8] sm:$0xff]
    %v856 = vld [vmem:[#allocation2 + $0xc0] sm:$0xff]
    %v857 = vld [vmem:[#allocation2 + $0xc8] sm:$0xff]
    %v858 = vld [vmem:[#allocation2 + $0xd0] sm:$0xff]
    %v859 = vld [vmem:[#allocation2 + $0xd8] sm:$0xff]
    %v860 = vld [vmem:[#allocation2 + $0xe0] sm:$0xff]
    %v861 = vld [vmem:[#allocation2 + $0xe8] sm:$0xff]
    %v862 = vld [vmem:[#allocation2 + $0xf0] sm:$0xff]
    %v863 = vld [vmem:[#allocation2 + $0xf8] sm:$0xff]
    %v864 = vld [vmem:[#allocation2 + $0x100] sm:$0xff]
    %v865 = vld [vmem:[#allocation2 + $0x108] sm:$0xff]
    %v866 = vld [vmem:[#allocation2 + $0x110] sm:$0xff]
    %v867 = vld [vmem:[#allocation2 + $0x118] sm:$0xff]
    %v868 = vld [vmem:[#allocation2 + $0x120] sm:$0xff]
    %v869 = vld [vmem:[#allocation2 + $0x128] sm:$0xff]
    %v870 = vld [vmem:[#allocation2 + $0x130] sm:$0xff]
    %v871 = vld [vmem:[#allocation2 + $0x138] sm:$0xff]
    %v872 = vld [vmem:[#allocation2 + $0x140] sm:$0xff]
    %v873 = vld [vmem:[#allocation2 + $0x148] sm:$0xff]
    %v874 = vld [vmem:[#allocation2 + $0x150] sm:$0xff]
    %v875 = vld [vmem:[#allocation2 + $0x158] sm:$0xff]
    %v876 = vld [vmem:[#allocation2 + $0x160] sm:$0xff]
    %v877 = vld [vmem:[#allocation2 + $0x168] sm:$0xff]
    %v878 = vld [vmem:[#allocation2 + $0x170] sm:$0xff]
    %v879 = vld [vmem:[#allocation2 + $0x178] sm:$0xff]
    %v880 = vld [vmem:[#allocation2 + $0x180] sm:$0xff]
    %v881 = vld [vmem:[#allocation2 + $0x188] sm:$0xff]
    %v882 = vld [vmem:[#allocation2 + $0x190] sm:$0xff]
    %v883 = vld [vmem:[#allocation2 + $0x198] sm:$0xff]
    %v884 = vld [vmem:[#allocation2 + $0x1a0] sm:$0xff]
    %v885 = vld [vmem:[#allocation2 + $0x1a8] sm:$0xff]
    %v886 = vld [vmem:[#allocation2 + $0x1b0] sm:$0xff]
    %v887 = vld [vmem:[#allocation2 + $0x1b8] sm:$0xff]
    %v888 = vld [vmem:[#allocation2 + $0x1c0] sm:$0xff]
    %v889 = vld [vmem:[#allocation2 + $0x1c8] sm:$0xff]
    %v890 = vld [vmem:[#allocation2 + $0x1d0] sm:$0xff]
    %v891 = vld [vmem:[#allocation2 + $0x1d8] sm:$0xff]
    %v892 = vld [vmem:[#allocation2 + $0x1e0] sm:$0xff]
    %v893 = vld [vmem:[#allocation2 + $0x1e8] sm:$0xff]
    %v894 = vld [vmem:[#allocation2 + $0x1f0] sm:$0xff]
    %v895 = vld [vmem:[#allocation2 + $0x1f8] sm:$0xff]
    %v896 = vmul.f32 %v832, 2.0
    %v897 = vmul.f32 %v833, 2.0
    %v898 = vmul.f32 %v834, 2.0
    %v899 = vmul.f32 %v835, 2.0
    %v900 = vmul.f32 %v836, 2.0
    %v901 = vmul.f32 %v837, 2.0
    %v902 = vmul.f32 %v838, 2.0
    %v903 = vmul.f32 %v839, 2.0
    %v904 = vmul.f32 %v840, 2.0
    %v905 = vmul.f32 %v841, 2.0
    %v906 = vmul.f32 %v842, 2.0
    %v907 = vmul.f32 %v843, 2.0
    %v908 = vmul.f32 %v844, 2.0
    %v909 = vmul.f32 %v845, 2.0
    %v910 = vmul.f32 %v846, 2.0
    %v911 = vmul.f32 %v847, 2.0
    %v912 = vmul.f32 %v848, 2.0
    %v913 = vmul.f32 %v849, 2.0
    %v914 = vmul.f32 %v850, 2.0
    %v915 = vmul.f32 %v851, 2.0
    %v916 = vmul.f32 %v852, 2.0
    %v917 = vmul.f32 %v853, 2.0
    %v918 = vmul.f32 %v854, 2.0
    %v919 = vmul.f32 %v855, 2.0
    %v920 = vmul.f32 %v856, 2.0
    %v921 = vmul.f32 %v857, 2.0
    %v922 = vmul.f32 %v858, 2.0
    %v923 = vmul.f32 %v859, 2.0
    %v924 = vmul.f32 %v860, 2.0
    %v925 = vmul.f32 %v861, 2.0
    %v926 = vmul.f32 %v862, 2.0
    %v927 = vmul.f32 %v863, 2.0
    %v928 = vmul.f32 %v864, 2.0
    %v929 = vmul.f32 %v865, 2.0
    %v930 = vmul.f32 %v866, 2.0
    %v931 = vmul.f32 %v867, 2.0
    %v932 = vmul.f32 %v868, 2.0
    %v933 = vmul.f32 %v869, 2.0
    %v934 = vmul.f32 %v870, 2.0
    %v935 = vmul.f32 %v871, 2.0
    %v936 = vmul.f32 %v872, 2.0
    %v937 = vmul.f32 %v873, 2.0
    %v938 = vmul.f32 %v874, 2.0
    %v939 = vmul.f32 %v875, 2.0
    %v940 = vmul.f32 %v876, 2.0
    %v941 = vmul.f32 %v877, 2.0
    %v942 = vmul.f32 %v878, 2.0
    %v943 = vmul.f32 %v879, 2.0
    %v944 = vmul.f32 %v880, 2.0
    %v945 = vmul.f32 %v881, 2.0
    %v946 = vmul.f32 %v882, 2.0
    %v947 = vmul.f32 %v883, 2.0
    %v948 = vmul.f32 %v884, 2.0
    %v949 = vmul.f32 %v885, 2.0
    %v950 = vmul.f32 %v886, 2.0
    %v951 = vmul.f32 %v887, 2.0
    %v952 = vmul.f32 %v888, 2.0
    %v953 = vmul.f32 %v889, 2.0
    %v954 = vmul.f32 %v890, 2.0
    %v955 = vmul.f32 %v891, 2.0
    %v956 = vmul.f32 %v892, 2.0
    %v957 = vmul.f32 %v893, 2.0
    %v958 = vmul.f32 %v894, 2.0
    %v959 = vmul.f32 %v895, 2.0
    %v960 = vsub.f32 %v768, %v896
    %v961 = vsub.f32 %v769, %v897
    %v962 = vsub.f32 %v770, %v898
    %v963 = vsub.f32 %v771, %v899
    %v964 = vsub.f32 %v772, %v900
    %v965 = vsub.f32 %v773, %v901
    %v966 = vsub.f32 %v774, %v902
    %v967 = vsub.f32 %v775, %v903
    %v968 = vsub.f32 %v776, %v904
    %v969 = vsub.f32 %v777, %v905
    %v970 = vsub.f32 %v778, %v906
    %v971 = vsub.f32 %v779, %v907
    %v972 = vsub.f32 %v780, %v908
    %v973 = vsub.f32 %v781, %v909
    %v974 = vsub.f32 %v782, %v910
    %v975 = vsub.f32 %v783, %v911
    %v976 = vsub.f32 %v784, %v912
    %v977 = vsub.f32 %v785, %v913
    %v978 = vsub.f32 %v786, %v914
    %v979 = vsub.f32 %v787, %v915
    %v980 = vsub.f32 %v788, %v916
    %v981 = vsub.f32 %v789, %v917
    %v982 = vsub.f32 %v790, %v918
    %v983 = vsub.f32 %v791, %v919
    %v984 = vsub.f32 %v792, %v920
    %v985 = vsub.f32 %v793, %v921
    %v986 = vsub.f32 %v794, %v922
    %v987 = vsub.f32 %v795, %v923
    %v988 = vsub.f32 %v796, %v924
    %v989 = vsub.f32 %v797, %v925
    %v990 = vsub.f32 %v798, %v926
    %v991 = vsub.f32 %v799, %v927
    %v992 = vsub.f32 %v800, %v928
    %v993 = vsub.f32 %v801, %v929
    %v994 = vsub.f32 %v802, %v930
    %v995 = vsub.f32 %v803, %v931
    %v996 = vsub.f32 %v804, %v932
    %v997 = vsub.f32 %v805, %v933
    %v998 = vsub.f32 %v806, %v934
    %v999 = vsub.f32 %v807, %v935
    %v1000 = vsub.f32 %v808, %v936
    %v1001 = vsub.f32 %v809, %v937
    %v1002 = vsub.f32 %v810, %v938
    %v1003 = vsub.f32 %v811, %v939
    %v1004 = vsub.f32 %v812, %v940
    %v1005 = vsub.f32 %v813, %v941
    %v1006 = vsub.f32 %v814, %v942
    %v1007 = vsub.f32 %v815, %v943
    %v1008 = vsub.f32 %v816, %v944
    %v1009 = vsub.f32 %v817, %v945
    %v1010 = vsub.f32 %v818, %v946
    %v1011 = vsub.f32 %v819, %v947
    %v1012 = vsub.f32 %v820, %v948
    %v1013 = vsub.f32 %v821, %v949
    %v1014 = vsub.f32 %v822, %v950
    %v1015 = vsub.f32 %v823, %v951
    %v1016 = vsub.f32 %v824, %v952
    %v1017 = vsub.f32 %v825, %v953
    %v1018 = vsub.f32 %v826, %v954
    %v1019 = vsub.f32 %v827, %v955
    %v1020 = vsub.f32 %v828, %v956
    %v1021 = vsub.f32 %v829, %v957
    %v1022 = vsub.f32 %v830, %v958
    %v1023 = vsub.f32 %v831, %v959
    %v1024 = vmax.f32 %v960, 0.0
    %v1025 = vmax.f32 %v961, 0.0
    %v1026 = vmax.f32 %v962, 0.0
    %v1027 = vmax.f32 %v963, 0.0
    %v1028 = vmax.f32 %v964, 0.0
    %v1029 = vmax.f32 %v965, 0.0
    %v1030 = vmax.f32 %v966, 0.0
    %v1031 = vmax.f32 %v967, 0.0
    %v1032 = vmax.f32 %v968, 0.0
    %v1033 = vmax.f32 %v969, 0.0
    %v1034 = vmax.f32 %v970, 0.0
    %v1035 = vmax.f32 %v971, 0.0
    %v1036 = vmax.f32 %v972, 0.0
    %v1037 = vmax.f32 %v973, 0.0
    %v1038 = vmax.f32 %v974, 0.0
    %v1039 = vmax.f32 %v975, 0.0
    %v1040 = vmax.f32 %v976, 0.0
    %v1041 = vmax.f32 %v977, 0.0
    %v1042 = vmax.f32 %v978, 0.0
    %v1043 = vmax.f32 %v979, 0.0
    %v1044 = vmax.f32 %v980, 0.0
    %v1045 = vmax.f32 %v981, 0.0
    %v1046 = vmax.f32 %v982, 0.0
    %v1047 = vmax.f32 %v983, 0.0
    %v1048 = vmax.f32 %v984, 0.0
    %v1049 = vmax.f32 %v985, 0.0
    %v1050 = vmax.f32 %v986, 0.0
    %v1051 = vmax.f32 %v987, 0.0
    %v1052 = vmax.f32 %v988, 0.0
    %v1053 = vmax.f32 %v989, 0.0
    %v1054 = vmax.f32 %v990, 0.0
    %v1055 = vmax.f32 %v991, 0.0
    %v1056 = vmax.f32 %v992, 0.0
    %v1057 = vmax.f32 %v993, 0.0
    %v1058 = vmax.f32 %v994, 0.0
    %v1059 = vmax.f32 %v995, 0.0
    %v1060 = vmax.f32 %v996, 0.0
    %v1061 = vmax.f32 %v997, 0.0
    %v1062 = vmax.f32 %v998, 0.0
    %v1063 = vmax.f32 %v999, 0.0
    %v1064 = vmax.f32 %v1000, 0.0
    %v1065 = vmax.f32 %v1001, 0.0
    %v1066 = vmax.f32 %v1002, 0.0
    %v1067 = vmax.f32 %v1003, 0.0
    %v1068 = vmax.f32 %v1004, 0.0
    %v1069 = vmax.f32 %v1005, 0.0
    %v1070 = vmax.f32 %v1006, 0.0
    %v1071 = vmax.f32 %v1007, 0.0
    %v1072 = vmax.f32 %v1008, 0.0
    %v1073 = vmax.f32 %v1009, 0.0
    %v1074 = vmax.f32 %v1010, 0.0
    %v1075 = vmax.f32 %v1011, 0.0
    %v1076 = vmax.f32 %v1012, 0.0
    %v1077 = vmax.f32 %v1013, 0.0
    %v1078 = vmax.f32 %v1014, 0.0
    %v1079 = vmax.f32 %v1015, 0.0
    %v1080 = vmax.f32 %v1016, 0.0
    %v1081 = vmax.f32 %v1017, 0.0
    %v1082 = vmax.f32 %v1018, 0.0
    %v1083 = vmax.f32 %v1019, 0.0
    %v1084 = vmax.f32 %v1020, 0.0
    %v1085 = vmax.f32 %v1021, 0.0
    %v1086 = vmax.f32 %v1022, 0.0
    %v1087 = vmax.f32 %v1023, 0.0
    %1088 = vst [vmem:[%s4] sm:$0xff] %v1024
    %1089 = vst [vmem:[%s4 + $0x8] sm:$0xff] %v1025
    %1090 = vst [vmem:[%s4 + $0x10] sm:$0xff] %v1026
    %1091 = vst [vmem:[%s4 + $0x18] sm:$0xff] %v1027
    %1092 = vst [vmem:[%s4 + $0x20] sm:$0xff] %v1028
    %1093 = vst [vmem:[%s4 + $0x28] sm:$0xff] %v1029
    %1094 = vst [vmem:[%s4 + $0x30] sm:$0xff] %v1030
    %1095 = vst [vmem:[%s4 + $0x38] sm:$0xff] %v1031
    %1096 = vst [vmem:[%s4 + $0x40] sm:$0xff] %v1032
    %1097 = vst [vmem:[%s4 + $0x48] sm:$0xff] %v1033
    %1098 = vst [vmem:[%s4 + $0x50] sm:$0xff] %v1034
    %1099 = vst [vmem:[%s4 + $0x58] sm:$0xff] %v1035
    %1100 = vst [vmem:[%s4 + $0x60] sm:$0xff] %v1036
    %1101 = vst [vmem:[%s4 + $0x68] sm:$0xff] %v1037
    %1102 = vst [vmem:[%s4 + $0x70] sm:$0xff] %v1038
    %1103 = vst [vmem:[%s4 + $0x78] sm:$0xff] %v1039
    %1104 = vst [vmem:[%s4 + $0x80] sm:$0xff] %v1040
    %1105 = vst [vmem:[%s4 + $0x88] sm:$0xff] %v1041
    %1106 = vst [vmem:[%s4 + $0x90] sm:$0xff] %v1042
    %1107 = vst [vmem:[%s4 + $0x98] sm:$0xff] %v1043
    %1108 = vst [vmem:[%s4 + $0xa0] sm:$0xff] %v1044
    %1109 = vst [vmem:[%s4 + $0xa8] sm:$0xff] %v1045
    %1110 = vst [vmem:[%s4 + $0xb0] sm:$0xff] %v1046
    %1111 = vst [vmem:[%s4 + $0xb8] sm:$0xff] %v1047
    %1112 = vst [vmem:[%s4 + $0xc0] sm:$0xff] %v1048
    %1113 = vst [vmem:[%s4 + $0xc8] sm:$0xff] %v1049
    %1114 = vst [vmem:[%s4 + $0xd0] sm:$0xff] %v1050
    %1115 = vst [vmem:[%s4 + $0xd8] sm:$0xff] %v1051
    %1116 = vst [vmem:[%s4 + $0xe0] sm:$0xff] %v1052
    %1117 = vst [vmem:[%s4 + $0xe8] sm:$0xff] %v1053
    %1118 = vst [vmem:[%s4 + $0xf0] sm:$0xff] %v1054
    %1119 = vst [vmem:[%s4 + $0xf8] sm:$0xff] %v1055
    %1120 = vst [vmem:[%s4 + $0x100] sm:$0xff] %v1056
    %1121 = vst [vmem:[%s4 + $0x108] sm:$0xff] %v1057
    %1122 = vst [vmem:[%s4 + $0x110] sm:$0xff] %v1058
    %1123 = vst [vmem:[%s4 + $0x118] sm:$0xff] %v1059
    %1124 = vst [vmem:[%s4 + $0x120] sm:$0xff] %v1060
    %1125 = vst [vmem:[%s4 + $0x128] sm:$0xff] %v1061
    %1126 = vst [vmem:[%s4 + $0x130] sm:$0xff] %v1062
    %1127 = vst [vmem:[%s4 + $0x138] sm:$0xff] %v1063
    %1128 = vst [vmem:[%s4 + $0x140] sm:$0xff] %v1064
    %1129 = vst [vmem:[%s4 + $0x148] sm:$0xff] %v1065
    %1130 = vst [vmem:[%s4 + $0x150] sm:$0xff] %v1066
    %1131 = vst [vmem:[%s4 + $0x158] sm:$0xff] %v1067
    %1132 = vst [vmem:[%s4 + $0x160] sm:$0xff] %v1068
    %1133 = vst [vmem:[%s4 + $0x168] sm:$0xff] %v1069
    %1134 = vst [vmem:[%s4 + $0x170] sm:$0xff] %v1070
    %1135 = vst [vmem:[%s4 + $0x178] sm:$0xff] %v1071
    %1136 = vst [vmem:[%s4 + $0x180] sm:$0xff] %v1072
    %1137 = vst [vmem:[%s4 + $0x188] sm:$0xff] %v1073
    %1138 = vst [vmem:[%s4 + $0x190] sm:$0xff] %v1074
    %1139 = vst [vmem:[%s4 + $0x198] sm:$0xff] %v1075
    %1140 = vst [vmem:[%s4 + $0x1a0] sm:$0xff] %v1076
    %1141 = vst [vmem:[%s4 + $0x1a8] sm:$0xff] %v1077
    %1142 = vst [vmem:[%s4 + $0x1b0] sm:$0xff] %v1078
    %1143 = vst [vmem:[%s4 + $0x1b8] sm:$0xff] %v1079
    %1144 = vst [vmem:[%s4 + $0x1c0] sm:$0xff] %v1080
    %1145 = vst [vmem:[%s4 + $0x1c8] sm:$0xff] %v1081
    %1146 = vst [vmem:[%s4 + $0x1d0] sm:$0xff] %v1082
    %1147 = vst [vmem:[%s4 + $0x1d8] sm:$0xff] %v1083
    %1148 = vst [vmem:[%s4 + $0x1e0] sm:$0xff] %v1084
    %1149 = vst [vmem:[%s4 + $0x1e8] sm:$0xff] %v1085
    %1150 = vst [vmem:[%s4 + $0x1f0] sm:$0xff] %v1086
    %1151 = vst [vmem:[%s4 + $0x1f8] sm:$0xff] %v1087
  $region25: #{rerank_loss_forward.7} parent=0 // pred_fallthru
    _
  // Predicated region
  $region26: #{rerank_loss_forward.7} parent=0 // pred_check
    _
  $region27: #{rerank_loss_forward.7} parent=0 // pred_check_branch
    %1153 = sbr.rel (0) target = $region29
  $region28: #{rerank_loss_forward.7} parent=0 // pred_region
    _
  $region29: #{rerank_loss_forward.7} parent=0 // pred_fallthru
    _
  // Predicated region
  $region30: #{rerank_loss_forward.7} parent=0 // pred_check
    _
  $region31: #{rerank_loss_forward.7} parent=0 // pred_check_branch
    %1155 = sbr.rel (0) target = $region33
  $region32: #{rerank_loss_forward.7} parent=0 // pred_region
    _
  $region33: #{rerank_loss_forward.7} parent=0 // pred_fallthru
    _

// kernel: rerank_loss_forward.11
$region0: #{rerank_loss_forward.11}
  #allocation0 [shape = 'u32[]', space=smem, size = 0x4, offset = 0x4, fixed_abs, tag = 'smem constant byte address 0x4 - core index']
  #allocation1 [shape = 'u32[72,128]{1,0:T(1,128)}', space=vmem, size = 0x9000, scoped, tag = 'internal scratch']
  #allocation2 [shape = 'f32[256,256]{1,0:T(8,128)}', space=vmem, size = 0x40000, scoped, tag = 'scratch operand']
  %s0 = inlined_call_operand.vmem [shape: f32[256,256], index: 0, kind: input, shape index: {}]
  %s1 = inlined_call_operand.vmem [shape: f32[256,256], index: 1, kind: input, shape index: {}]
  %s2 = inlined_call_operand.vmem [shape: f32[256,256], index: 2, kind: output, shape index: {}]
  %s3 = sld [smem:[#allocation0]]
  $region26: #{rerank_loss_forward.11} parent=0
    _
  %s5 = ssub.s32 1, %s3
  %s6 = scalar_select 0, %s5, %s3
  // Predicated region
  $region2: #{rerank_loss_forward.11} parent=0 // pred_check
    _
  $region3: #{rerank_loss_forward.11} parent=0 // pred_check_branch
    %8 = sbr.rel (0) target = $region5
  $region4: #{rerank_loss_forward.11} parent=0 // pred_region
    _
  $region5: #{rerank_loss_forward.11} parent=0 // pred_fallthru
    _
  // Predicated region
  $region6: #{rerank_loss_forward.11} parent=0 // pred_check
    _
  $region7: #{rerank_loss_forward.11} parent=0 // pred_check_branch
    %10 = sbr.rel (0) target = $region9
  $region8: #{rerank_loss_forward.11} parent=0 // pred_region
    _
  $region9: #{rerank_loss_forward.11} parent=0 // pred_fallthru
    _
  %p11 = scmp.eq.s32.totalorder 0, 0
  // Predicated region
  $region10: #{rerank_loss_forward.11} parent=0 // pred_check
    %p12 = pneg %p11
  $region11: #{rerank_loss_forward.11} parent=0 // pred_check_branch
    %14 = sbr.rel (%p12) target = $region13
  $region12: #{rerank_loss_forward.11} parent=0 // pred_region
    %15 = vst [vmem:[#allocation2] sm:$0xff] 0.0
    %16 = vst [vmem:[#allocation2 + $0x8] sm:$0xff] 0.0
    %17 = vst [vmem:[#allocation2 + $0x10] sm:$0xff] 0.0
    %18 = vst [vmem:[#allocation2 + $0x18] sm:$0xff] 0.0
    %19 = vst [vmem:[#allocation2 + $0x20] sm:$0xff] 0.0
    %20 = vst [vmem:[#allocation2 + $0x28] sm:$0xff] 0.0
    %21 = vst [vmem:[#allocation2 + $0x30] sm:$0xff] 0.0
    %22 = vst [vmem:[#allocation2 + $0x38] sm:$0xff] 0.0
    %23 = vst [vmem:[#allocation2 + $0x40] sm:$0xff] 0.0
    %24 = vst [vmem:[#allocation2 + $0x48] sm:$0xff] 0.0
    %25 = vst [vmem:[#allocation2 + $0x50] sm:$0xff] 0.0
    %26 = vst [vmem:[#allocation2 + $0x58] sm:$0xff] 0.0
    %27 = vst [vmem:[#allocation2 + $0x60] sm:$0xff] 0.0
    %28 = vst [vmem:[#allocation2 + $0x68] sm:$0xff] 0.0
    %29 = vst [vmem:[#allocation2 + $0x70] sm:$0xff] 0.0
    %30 = vst [vmem:[#allocation2 + $0x78] sm:$0xff] 0.0
    %31 = vst [vmem:[#allocation2 + $0x80] sm:$0xff] 0.0
    %32 = vst [vmem:[#allocation2 + $0x88] sm:$0xff] 0.0
    %33 = vst [vmem:[#allocation2 + $0x90] sm:$0xff] 0.0
    %34 = vst [vmem:[#allocation2 + $0x98] sm:$0xff] 0.0
    %35 = vst [vmem:[#allocation2 + $0xa0] sm:$0xff] 0.0
    %36 = vst [vmem:[#allocation2 + $0xa8] sm:$0xff] 0.0
    %37 = vst [vmem:[#allocation2 + $0xb0] sm:$0xff] 0.0
    %38 = vst [vmem:[#allocation2 + $0xb8] sm:$0xff] 0.0
    %39 = vst [vmem:[#allocation2 + $0xc0] sm:$0xff] 0.0
    %40 = vst [vmem:[#allocation2 + $0xc8] sm:$0xff] 0.0
    %41 = vst [vmem:[#allocation2 + $0xd0] sm:$0xff] 0.0
    %42 = vst [vmem:[#allocation2 + $0xd8] sm:$0xff] 0.0
    %43 = vst [vmem:[#allocation2 + $0xe0] sm:$0xff] 0.0
    %44 = vst [vmem:[#allocation2 + $0xe8] sm:$0xff] 0.0
    %45 = vst [vmem:[#allocation2 + $0xf0] sm:$0xff] 0.0
    %46 = vst [vmem:[#allocation2 + $0xf8] sm:$0xff] 0.0
    %47 = vst [vmem:[#allocation2 + $0x100] sm:$0xff] 0.0
    %48 = vst [vmem:[#allocation2 + $0x108] sm:$0xff] 0.0
    %49 = vst [vmem:[#allocation2 + $0x110] sm:$0xff] 0.0
    %50 = vst [vmem:[#allocation2 + $0x118] sm:$0xff] 0.0
    %51 = vst [vmem:[#allocation2 + $0x120] sm:$0xff] 0.0
    %52 = vst [vmem:[#allocation2 + $0x128] sm:$0xff] 0.0
    %53 = vst [vmem:[#allocation2 + $0x130] sm:$0xff] 0.0
    %54 = vst [vmem:[#allocation2 + $0x138] sm:$0xff] 0.0
    %55 = vst [vmem:[#allocation2 + $0x140] sm:$0xff] 0.0
    %56 = vst [vmem:[#allocation2 + $0x148] sm:$0xff] 0.0
    %57 = vst [vmem:[#allocation2 + $0x150] sm:$0xff] 0.0
    %58 = vst [vmem:[#allocation2 + $0x158] sm:$0xff] 0.0
    %59 = vst [vmem:[#allocation2 + $0x160] sm:$0xff] 0.0
    %60 = vst [vmem:[#allocation2 + $0x168] sm:$0xff] 0.0
    %61 = vst [vmem:[#allocation2 + $0x170] sm:$0xff] 0.0
    %62 = vst [vmem:[#allocation2 + $0x178] sm:$0xff] 0.0
    %63 = vst [vmem:[#allocation2 + $0x180] sm:$0xff] 0.0
    %64 = vst [vmem:[#allocation2 + $0x188] sm:$0xff] 0.0
    %65 = vst [vmem:[#allocation2 + $0x190] sm:$0xff] 0.0
    %66 = vst [vmem:[#allocation2 + $0x198] sm:$0xff] 0.0
    %67 = vst [vmem:[#allocation2 + $0x1a0] sm:$0xff] 0.0
    %68 = vst [vmem:[#allocation2 + $0x1a8] sm:$0xff] 0.0
    %69 = vst [vmem:[#allocation2 + $0x1b0] sm:$0xff] 0.0
    %70 = vst [vmem:[#allocation2 + $0x1b8] sm:$0xff] 0.0
    %71 = vst [vmem:[#allocation2 + $0x1c0] sm:$0xff] 0.0
    %72 = vst [vmem:[#allocation2 + $0x1c8] sm:$0xff] 0.0
    %73 = vst [vmem:[#allocation2 + $0x1d0] sm:$0xff] 0.0
    %74 = vst [vmem:[#allocation2 + $0x1d8] sm:$0xff] 0.0
    %75 = vst [vmem:[#allocation2 + $0x1e0] sm:$0xff] 0.0
    %76 = vst [vmem:[#allocation2 + $0x1e8] sm:$0xff] 0.0
    %77 = vst [vmem:[#allocation2 + $0x1f0] sm:$0xff] 0.0
    %78 = vst [vmem:[#allocation2 + $0x1f8] sm:$0xff] 0.0
  $region13: #{rerank_loss_forward.11} parent=0 // pred_fallthru
    _
  %v79 = vld [vmem:[#allocation2] sm:$0xff]
  %v80 = vld [vmem:[#allocation2 + $0x8] sm:$0xff]
  %v81 = vld [vmem:[#allocation2 + $0x10] sm:$0xff]
  %v82 = vld [vmem:[#allocation2 + $0x18] sm:$0xff]
  %v83 = vld [vmem:[#allocation2 + $0x20] sm:$0xff]
  %v84 = vld [vmem:[#allocation2 + $0x28] sm:$0xff]
  %v85 = vld [vmem:[#allocation2 + $0x30] sm:$0xff]
  %v86 = vld [vmem:[#allocation2 + $0x38] sm:$0xff]
  %v87 = vld [vmem:[#allocation2 + $0x40] sm:$0xff]
  %v88 = vld [vmem:[#allocation2 + $0x48] sm:$0xff]
  %v89 = vld [vmem:[#allocation2 + $0x50] sm:$0xff]
  %v90 = vld [vmem:[#allocation2 + $0x58] sm:$0xff]
  %v91 = vld [vmem:[#allocation2 + $0x60] sm:$0xff]
  %v92 = vld [vmem:[#allocation2 + $0x68] sm:$0xff]
  %v93 = vld [vmem:[#allocation2 + $0x70] sm:$0xff]
  %v94 = vld [vmem:[#allocation2 + $0x78] sm:$0xff]
  %v95 = vld [vmem:[#allocation2 + $0x80] sm:$0xff]
  %v96 = vld [vmem:[#allocation2 + $0x88] sm:$0xff]
  %v97 = vld [vmem:[#allocation2 + $0x90] sm:$0xff]
  %v98 = vld [vmem:[#allocation2 + $0x98] sm:$0xff]
  %v99 = vld [vmem:[#allocation2 + $0xa0] sm:$0xff]
  %v100 = vld [vmem:[#allocation2 + $0xa8] sm:$0xff]
  %v101 = vld [vmem:[#allocation2 + $0xb0] sm:$0xff]
  %v102 = vld [vmem:[#allocation2 + $0xb8] sm:$0xff]
  %v103 = vld [vmem:[#allocation2 + $0xc0] sm:$0xff]
  %v104 = vld [vmem:[#allocation2 + $0xc8] sm:$0xff]
  %v105 = vld [vmem:[#allocation2 + $0xd0] sm:$0xff]
  %v106 = vld [vmem:[#allocation2 + $0xd8] sm:$0xff]
  %v107 = vld [vmem:[#allocation2 + $0xe0] sm:$0xff]
  %v108 = vld [vmem:[#allocation2 + $0xe8] sm:$0xff]
  %v109 = vld [vmem:[#allocation2 + $0xf0] sm:$0xff]
  %v110 = vld [vmem:[#allocation2 + $0xf8] sm:$0xff]
  %v111 = vld [vmem:[#allocation2 + $0x100] sm:$0xff]
  %v112 = vld [vmem:[#allocation2 + $0x108] sm:$0xff]
  %v113 = vld [vmem:[#allocation2 + $0x110] sm:$0xff]
  %v114 = vld [vmem:[#allocation2 + $0x118] sm:$0xff]
  %v115 = vld [vmem:[#allocation2 + $0x120] sm:$0xff]
  %v116 = vld [vmem:[#allocation2 + $0x128] sm:$0xff]
  %v117 = vld [vmem:[#allocation2 + $0x130] sm:$0xff]
  %v118 = vld [vmem:[#allocation2 + $0x138] sm:$0xff]
  %v119 = vld [vmem:[#allocation2 + $0x140] sm:$0xff]
  %v120 = vld [vmem:[#allocation2 + $0x148] sm:$0xff]
  %v121 = vld [vmem:[#allocation2 + $0x150] sm:$0xff]
  %v122 = vld [vmem:[#allocation2 + $0x158] sm:$0xff]
  %v123 = vld [vmem:[#allocation2 + $0x160] sm:$0xff]
  %v124 = vld [vmem:[#allocation2 + $0x168] sm:$0xff]
  %v125 = vld [vmem:[#allocation2 + $0x170] sm:$0xff]
  %v126 = vld [vmem:[#allocation2 + $0x178] sm:$0xff]
  %v127 = vld [vmem:[#allocation2 + $0x180] sm:$0xff]
  %v128 = vld [vmem:[#allocation2 + $0x188] sm:$0xff]
  %v129 = vld [vmem:[#allocation2 + $0x190] sm:$0xff]
  %v130 = vld [vmem:[#allocation2 + $0x198] sm:$0xff]
  %v131 = vld [vmem:[#allocation2 + $0x1a0] sm:$0xff]
  %v132 = vld [vmem:[#allocation2 + $0x1a8] sm:$0xff]
  %v133 = vld [vmem:[#allocation2 + $0x1b0] sm:$0xff]
  %v134 = vld [vmem:[#allocation2 + $0x1b8] sm:$0xff]
  %v135 = vld [vmem:[#allocation2 + $0x1c0] sm:$0xff]
  %v136 = vld [vmem:[#allocation2 + $0x1c8] sm:$0xff]
  %v137 = vld [vmem:[#allocation2 + $0x1d0] sm:$0xff]
  %v138 = vld [vmem:[#allocation2 + $0x1d8] sm:$0xff]
  %v139 = vld [vmem:[#allocation2 + $0x1e0] sm:$0xff]
  %v140 = vld [vmem:[#allocation2 + $0x1e8] sm:$0xff]
  %v141 = vld [vmem:[#allocation2 + $0x1f0] sm:$0xff]
  %v142 = vld [vmem:[#allocation2 + $0x1f8] sm:$0xff]
  %v143 = vld [vmem:[%s0] sm:$0xff]
  %v144 = vld [vmem:[%s0 + $0x8] sm:$0xff]
  %v145 = vld [vmem:[%s0 + $0x10] sm:$0xff]
  %v146 = vld [vmem:[%s0 + $0x18] sm:$0xff]
  %v147 = vld [vmem:[%s0 + $0x20] sm:$0xff]
  %v148 = vld [vmem:[%s0 + $0x28] sm:$0xff]
  %v149 = vld [vmem:[%s0 + $0x30] sm:$0xff]
  %v150 = vld [vmem:[%s0 + $0x38] sm:$0xff]
  %v151 = vld [vmem:[%s0 + $0x40] sm:$0xff]
  %v152 = vld [vmem:[%s0 + $0x48] sm:$0xff]
  %v153 = vld [vmem:[%s0 + $0x50] sm:$0xff]
  %v154 = vld [vmem:[%s0 + $0x58] sm:$0xff]
  %v155 = vld [vmem:[%s0 + $0x60] sm:$0xff]
  %v156 = vld [vmem:[%s0 + $0x68] sm:$0xff]
  %v157 = vld [vmem:[%s0 + $0x70] sm:$0xff]
  %v158 = vld [vmem:[%s0 + $0x78] sm:$0xff]
  %v159 = vld [vmem:[%s0 + $0x80] sm:$0xff]
  %v160 = vld [vmem:[%s0 + $0x88] sm:$0xff]
  %v161 = vld [vmem:[%s0 + $0x90] sm:$0xff]
  %v162 = vld [vmem:[%s0 + $0x98] sm:$0xff]
  %v163 = vld [vmem:[%s0 + $0xa0] sm:$0xff]
  %v164 = vld [vmem:[%s0 + $0xa8] sm:$0xff]
  %v165 = vld [vmem:[%s0 + $0xb0] sm:$0xff]
  %v166 = vld [vmem:[%s0 + $0xb8] sm:$0xff]
  %v167 = vld [vmem:[%s0 + $0xc0] sm:$0xff]
  %v168 = vld [vmem:[%s0 + $0xc8] sm:$0xff]
  %v169 = vld [vmem:[%s0 + $0xd0] sm:$0xff]
  %v170 = vld [vmem:[%s0 + $0xd8] sm:$0xff]
  %v171 = vld [vmem:[%s0 + $0xe0] sm:$0xff]
  %v172 = vld [vmem:[%s0 + $0xe8] sm:$0xff]
  %v173 = vld [vmem:[%s0 + $0xf0] sm:$0xff]
  %v174 = vld [vmem:[%s0 + $0xf8] sm:$0xff]
  %v175 = vld [vmem:[%s0 + $0x100] sm:$0xff]
  %v176 = vld [vmem:[%s0 + $0x108] sm:$0xff]
  %v177 = vld [vmem:[%s0 + $0x110] sm:$0xff]
  %v178 = vld [vmem:[%s0 + $0x118] sm:$0xff]
  %v179 = vld [vmem:[%s0 + $0x120] sm:$0xff]
  %v180 = vld [vmem:[%s0 + $0x128] sm:$0xff]
  %v181 = vld [vmem:[%s0 + $0x130] sm:$0xff]
  %v182 = vld [vmem:[%s0 + $0x138] sm:$0xff]
  %v183 = vld [vmem:[%s0 + $0x140] sm:$0xff]
  %v184 = vld [vmem:[%s0 + $0x148] sm:$0xff]
  %v185 = vld [vmem:[%s0 + $0x150] sm:$0xff]
  %v186 = vld [vmem:[%s0 + $0x158] sm:$0xff]
  %v187 = vld [vmem:[%s0 + $0x160] sm:$0xff]
  %v188 = vld [vmem:[%s0 + $0x168] sm:$0xff]
  %v189 = vld [vmem:[%s0 + $0x170] sm:$0xff]
  %v190 = vld [vmem:[%s0 + $0x178] sm:$0xff]
  %v191 = vld [vmem:[%s0 + $0x180] sm:$0xff]
  %v192 = vld [vmem:[%s0 + $0x188] sm:$0xff]
  %v193 = vld [vmem:[%s0 + $0x190] sm:$0xff]
  %v194 = vld [vmem:[%s0 + $0x198] sm:$0xff]
  %v195 = vld [vmem:[%s0 + $0x1a0] sm:$0xff]
  %v196 = vld [vmem:[%s0 + $0x1a8] sm:$0xff]
  %v197 = vld [vmem:[%s0 + $0x1b0] sm:$0xff]
  %v198 = vld [vmem:[%s0 + $0x1b8] sm:$0xff]
  %v199 = vld [vmem:[%s0 + $0x1c0] sm:$0xff]
  %v200 = vld [vmem:[%s0 + $0x1c8] sm:$0xff]
  %v201 = vld [vmem:[%s0 + $0x1d0] sm:$0xff]
  %v202 = vld [vmem:[%s0 + $0x1d8] sm:$0xff]
  %v203 = vld [vmem:[%s0 + $0x1e0] sm:$0xff]
  %v204 = vld [vmem:[%s0 + $0x1e8] sm:$0xff]
  %v205 = vld [vmem:[%s0 + $0x1f0] sm:$0xff]
  %v206 = vld [vmem:[%s0 + $0x1f8] sm:$0xff]
  %v207 = vld [vmem:[%s1] sm:$0xff]
  %v208 = vld [vmem:[%s1 + $0x8] sm:$0xff]
  %v209 = vld [vmem:[%s1 + $0x10] sm:$0xff]
  %v210 = vld [vmem:[%s1 + $0x18] sm:$0xff]
  %v211 = vld [vmem:[%s1 + $0x20] sm:$0xff]
  %v212 = vld [vmem:[%s1 + $0x28] sm:$0xff]
  %v213 = vld [vmem:[%s1 + $0x30] sm:$0xff]
  %v214 = vld [vmem:[%s1 + $0x38] sm:$0xff]
  %v215 = vld [vmem:[%s1 + $0x40] sm:$0xff]
  %v216 = vld [vmem:[%s1 + $0x48] sm:$0xff]
  %v217 = vld [vmem:[%s1 + $0x50] sm:$0xff]
  %v218 = vld [vmem:[%s1 + $0x58] sm:$0xff]
  %v219 = vld [vmem:[%s1 + $0x60] sm:$0xff]
  %v220 = vld [vmem:[%s1 + $0x68] sm:$0xff]
  %v221 = vld [vmem:[%s1 + $0x70] sm:$0xff]
  %v222 = vld [vmem:[%s1 + $0x78] sm:$0xff]
  %v223 = vld [vmem:[%s1 + $0x80] sm:$0xff]
  %v224 = vld [vmem:[%s1 + $0x88] sm:$0xff]
  %v225 = vld [vmem:[%s1 + $0x90] sm:$0xff]
  %v226 = vld [vmem:[%s1 + $0x98] sm:$0xff]
  %v227 = vld [vmem:[%s1 + $0xa0] sm:$0xff]
  %v228 = vld [vmem:[%s1 + $0xa8] sm:$0xff]
  %v229 = vld [vmem:[%s1 + $0xb0] sm:$0xff]
  %v230 = vld [vmem:[%s1 + $0xb8] sm:$0xff]
  %v231 = vld [vmem:[%s1 + $0xc0] sm:$0xff]
  %v232 = vld [vmem:[%s1 + $0xc8] sm:$0xff]
  %v233 = vld [vmem:[%s1 + $0xd0] sm:$0xff]
  %v234 = vld [vmem:[%s1 + $0xd8] sm:$0xff]
  %v235 = vld [vmem:[%s1 + $0xe0] sm:$0xff]
  %v236 = vld [vmem:[%s1 + $0xe8] sm:$0xff]
  %v237 = vld [vmem:[%s1 + $0xf0] sm:$0xff]
  %v238 = vld [vmem:[%s1 + $0xf8] sm:$0xff]
  %v239 = vld [vmem:[%s1 + $0x100] sm:$0xff]
  %v240 = vld [vmem:[%s1 + $0x108] sm:$0xff]
  %v241 = vld [vmem:[%s1 + $0x110] sm:$0xff]
  %v242 = vld [vmem:[%s1 + $0x118] sm:$0xff]
  %v243 = vld [vmem:[%s1 + $0x120] sm:$0xff]
  %v244 = vld [vmem:[%s1 + $0x128] sm:$0xff]
  %v245 = vld [vmem:[%s1 + $0x130] sm:$0xff]
  %v246 = vld [vmem:[%s1 + $0x138] sm:$0xff]
  %v247 = vld [vmem:[%s1 + $0x140] sm:$0xff]
  %v248 = vld [vmem:[%s1 + $0x148] sm:$0xff]
  %v249 = vld [vmem:[%s1 + $0x150] sm:$0xff]
  %v250 = vld [vmem:[%s1 + $0x158] sm:$0xff]
  %v251 = vld [vmem:[%s1 + $0x160] sm:$0xff]
  %v252 = vld [vmem:[%s1 + $0x168] sm:$0xff]
  %v253 = vld [vmem:[%s1 + $0x170] sm:$0xff]
  %v254 = vld [vmem:[%s1 + $0x178] sm:$0xff]
  %v255 = vld [vmem:[%s1 + $0x180] sm:$0xff]
  %v256 = vld [vmem:[%s1 + $0x188] sm:$0xff]
  %v257 = vld [vmem:[%s1 + $0x190] sm:$0xff]
  %v258 = vld [vmem:[%s1 + $0x198] sm:$0xff]
  %v259 = vld [vmem:[%s1 + $0x1a0] sm:$0xff]
  %v260 = vld [vmem:[%s1 + $0x1a8] sm:$0xff]
  %v261 = vld [vmem:[%s1 + $0x1b0] sm:$0xff]
  %v262 = vld [vmem:[%s1 + $0x1b8] sm:$0xff]
  %v263 = vld [vmem:[%s1 + $0x1c0] sm:$0xff]
  %v264 = vld [vmem:[%s1 + $0x1c8] sm:$0xff]
  %v265 = vld [vmem:[%s1 + $0x1d0] sm:$0xff]
  %v266 = vld [vmem:[%s1 + $0x1d8] sm:$0xff]
  %v267 = vld [vmem:[%s1 + $0x1e0] sm:$0xff]
  %v268 = vld [vmem:[%s1 + $0x1e8] sm:$0xff]
  %v269 = vld [vmem:[%s1 + $0x1f0] sm:$0xff]
  %v270 = vld [vmem:[%s1 + $0x1f8] sm:$0xff]
  %271 = vmatpush.msra.mxu0 %v237
  %272 = vmatpush.msra.mxu0 %v235
  %273 = vmatpush.msra.mxu0 %v233
  %274 = vmatpush.msra.mxu0 %v231
  %275 = vmatpush.msra.mxu0 %v229
  %276 = vmatpush.msra.mxu0 %v227
  %277 = vmatpush.msra.mxu0 %v225
  %278 = vmatpush.msra.mxu0 %v223
  %279 = vmatpush.msra.mxu0 %v221
  %280 = vmatpush.msra.mxu0 %v219
  %281 = vmatpush.msra.mxu0 %v217
  %282 = vmatpush.msra.mxu0 %v215
  %283 = vmatpush.msra.mxu0 %v213
  %284 = vmatpush.msra.mxu0 %v211
  %285 = vmatpush.msra.mxu0 %v209
  %286 = vmatpush.msra.mxu0 %v207
  %287 = vmatmul.f32.gmra.mxu0 %v143
  %v288 = vpop.f32.mrf.mxu0
  %v289 = vadd.f32 0.0, %v288
  %290 = vmatmul.f32.gmra.mxu0 %v145
  %v291 = vpop.f32.mrf.mxu0
  %v292 = vadd.f32 0.0, %v291
  %293 = vmatmul.f32.gmra.mxu0 %v147
  %v294 = vpop.f32.mrf.mxu0
  %v295 = vadd.f32 0.0, %v294
  %296 = vmatmul.f32.gmra.mxu0 %v149
  %v297 = vpop.f32.mrf.mxu0
  %v298 = vadd.f32 0.0, %v297
  %299 = vmatmul.f32.gmra.mxu0 %v151
  %v300 = vpop.f32.mrf.mxu0
  %v301 = vadd.f32 0.0, %v300
  %302 = vmatmul.f32.gmra.mxu0 %v153
  %v303 = vpop.f32.mrf.mxu0
  %v304 = vadd.f32 0.0, %v303
  %305 = vmatmul.f32.gmra.mxu0 %v155
  %v306 = vpop.f32.mrf.mxu0
  %v307 = vadd.f32 0.0, %v306
  %308 = vmatmul.f32.gmra.mxu0 %v157
  %v309 = vpop.f32.mrf.mxu0
  %v310 = vadd.f32 0.0, %v309
  %311 = vmatmul.f32.gmra.mxu0 %v159
  %v312 = vpop.f32.mrf.mxu0
  %v313 = vadd.f32 0.0, %v312
  %314 = vmatmul.f32.gmra.mxu0 %v161
  %v315 = vpop.f32.mrf.mxu0
  %v316 = vadd.f32 0.0, %v315
  %317 = vmatmul.f32.gmra.mxu0 %v163
  %v318 = vpop.f32.mrf.mxu0
  %v319 = vadd.f32 0.0, %v318
  %320 = vmatmul.f32.gmra.mxu0 %v165
  %v321 = vpop.f32.mrf.mxu0
  %v322 = vadd.f32 0.0, %v321
  %323 = vmatmul.f32.gmra.mxu0 %v167
  %v324 = vpop.f32.mrf.mxu0
  %v325 = vadd.f32 0.0, %v324
  %326 = vmatmul.f32.gmra.mxu0 %v169
  %v327 = vpop.f32.mrf.mxu0
  %v328 = vadd.f32 0.0, %v327
  %329 = vmatmul.f32.gmra.mxu0 %v171
  %v330 = vpop.f32.mrf.mxu0
  %v331 = vadd.f32 0.0, %v330
  %332 = vmatmul.f32.gmra.mxu0 %v173
  %v333 = vpop.f32.mrf.mxu0
  %v334 = vadd.f32 0.0, %v333
  %335 = vmatmul.f32.gmra.mxu0 %v175
  %v336 = vpop.f32.mrf.mxu0
  %v337 = vadd.f32 0.0, %v336
  %338 = vmatmul.f32.gmra.mxu0 %v177
  %v339 = vpop.f32.mrf.mxu0
  %v340 = vadd.f32 0.0, %v339
  %341 = vmatmul.f32.gmra.mxu0 %v179
  %v342 = vpop.f32.mrf.mxu0
  %v343 = vadd.f32 0.0, %v342
  %344 = vmatmul.f32.gmra.mxu0 %v181
  %v345 = vpop.f32.mrf.mxu0
  %v346 = vadd.f32 0.0, %v345
  %347 = vmatmul.f32.gmra.mxu0 %v183
  %v348 = vpop.f32.mrf.mxu0
  %v349 = vadd.f32 0.0, %v348
  %350 = vmatmul.f32.gmra.mxu0 %v185
  %v351 = vpop.f32.mrf.mxu0
  %v352 = vadd.f32 0.0, %v351
  %353 = vmatmul.f32.gmra.mxu0 %v187
  %v354 = vpop.f32.mrf.mxu0
  %v355 = vadd.f32 0.0, %v354
  %356 = vmatmul.f32.gmra.mxu0 %v189
  %v357 = vpop.f32.mrf.mxu0
  %v358 = vadd.f32 0.0, %v357
  %359 = vmatmul.f32.gmra.mxu0 %v191
  %v360 = vpop.f32.mrf.mxu0
  %v361 = vadd.f32 0.0, %v360
  %362 = vmatmul.f32.gmra.mxu0 %v193
  %v363 = vpop.f32.mrf.mxu0
  %v364 = vadd.f32 0.0, %v363
  %365 = vmatmul.f32.gmra.mxu0 %v195
  %v366 = vpop.f32.mrf.mxu0
  %v367 = vadd.f32 0.0, %v366
  %368 = vmatmul.f32.gmra.mxu0 %v197
  %v369 = vpop.f32.mrf.mxu0
  %v370 = vadd.f32 0.0, %v369
  %371 = vmatmul.f32.gmra.mxu0 %v199
  %v372 = vpop.f32.mrf.mxu0
  %v373 = vadd.f32 0.0, %v372
  %374 = vmatmul.f32.gmra.mxu0 %v201
  %v375 = vpop.f32.mrf.mxu0
  %v376 = vadd.f32 0.0, %v375
  %377 = vmatmul.f32.gmra.mxu0 %v203
  %v378 = vpop.f32.mrf.mxu0
  %v379 = vadd.f32 0.0, %v378
  %380 = vmatmul.f32.gmra.mxu0 %v205
  %v381 = vpop.f32.mrf.mxu0
  %v382 = vadd.f32 0.0, %v381
  %383 = vdwg.mxu0
  %384 = vmatpush.msra.mxu0 %v269
  %385 = vmatpush.msra.mxu0 %v267
  %386 = vmatpush.msra.mxu0 %v265
  %387 = vmatpush.msra.mxu0 %v263
  %388 = vmatpush.msra.mxu0 %v261
  %389 = vmatpush.msra.mxu0 %v259
  %390 = vmatpush.msra.mxu0 %v257
  %391 = vmatpush.msra.mxu0 %v255
  %392 = vmatpush.msra.mxu0 %v253
  %393 = vmatpush.msra.mxu0 %v251
  %394 = vmatpush.msra.mxu0 %v249
  %395 = vmatpush.msra.mxu0 %v247
  %396 = vmatpush.msra.mxu0 %v245
  %397 = vmatpush.msra.mxu0 %v243
  %398 = vmatpush.msra.mxu0 %v241
  %399 = vmatpush.msra.mxu0 %v239
  %400 = vmatmul.f32.gmra.mxu0 %v144
  %v401 = vpop.f32.mrf.mxu0
  %v402 = vadd.f32 %v289, %v401
  %403 = vmatmul.f32.gmra.mxu0 %v146
  %v404 = vpop.f32.mrf.mxu0
  %v405 = vadd.f32 %v292, %v404
  %406 = vmatmul.f32.gmra.mxu0 %v148
  %v407 = vpop.f32.mrf.mxu0
  %v408 = vadd.f32 %v295, %v407
  %409 = vmatmul.f32.gmra.mxu0 %v150
  %v410 = vpop.f32.mrf.mxu0
  %v411 = vadd.f32 %v298, %v410
  %412 = vmatmul.f32.gmra.mxu0 %v152
  %v413 = vpop.f32.mrf.mxu0
  %v414 = vadd.f32 %v301, %v413
  %415 = vmatmul.f32.gmra.mxu0 %v154
  %v416 = vpop.f32.mrf.mxu0
  %v417 = vadd.f32 %v304, %v416
  %418 = vmatmul.f32.gmra.mxu0 %v156
  %v419 = vpop.f32.mrf.mxu0
  %v420 = vadd.f32 %v307, %v419
  %421 = vmatmul.f32.gmra.mxu0 %v158
  %v422 = vpop.f32.mrf.mxu0
  %v423 = vadd.f32 %v310, %v422
  %424 = vmatmul.f32.gmra.mxu0 %v160
  %v425 = vpop.f32.mrf.mxu0
  %v426 = vadd.f32 %v313, %v425
  %427 = vmatmul.f32.gmra.mxu0 %v162
  %v428 = vpop.f32.mrf.mxu0
  %v429 = vadd.f32 %v316, %v428
  %430 = vmatmul.f32.gmra.mxu0 %v164
  %v431 = vpop.f32.mrf.mxu0
  %v432 = vadd.f32 %v319, %v431
  %433 = vmatmul.f32.gmra.mxu0 %v166
  %v434 = vpop.f32.mrf.mxu0
  %v435 = vadd.f32 %v322, %v434
  %436 = vmatmul.f32.gmra.mxu0 %v168
  %v437 = vpop.f32.mrf.mxu0
  %v438 = vadd.f32 %v325, %v437
  %439 = vmatmul.f32.gmra.mxu0 %v170
  %v440 = vpop.f32.mrf.mxu0
  %v441 = vadd.f32 %v328, %v440
  %442 = vmatmul.f32.gmra.mxu0 %v172
  %v443 = vpop.f32.mrf.mxu0
  %v444 = vadd.f32 %v331, %v443
  %445 = vmatmul.f32.gmra.mxu0 %v174
  %v446 = vpop.f32.mrf.mxu0
  %v447 = vadd.f32 %v334, %v446
  %448 = vmatmul.f32.gmra.mxu0 %v176
  %v449 = vpop.f32.mrf.mxu0
  %v450 = vadd.f32 %v337, %v449
  %451 = vmatmul.f32.gmra.mxu0 %v178
  %v452 = vpop.f32.mrf.mxu0
  %v453 = vadd.f32 %v340, %v452
  %454 = vmatmul.f32.gmra.mxu0 %v180
  %v455 = vpop.f32.mrf.mxu0
  %v456 = vadd.f32 %v343, %v455
  %457 = vmatmul.f32.gmra.mxu0 %v182
  %v458 = vpop.f32.mrf.mxu0
  %v459 = vadd.f32 %v346, %v458
  %460 = vmatmul.f32.gmra.mxu0 %v184
  %v461 = vpop.f32.mrf.mxu0
  %v462 = vadd.f32 %v349, %v461
  %463 = vmatmul.f32.gmra.mxu0 %v186
  %v464 = vpop.f32.mrf.mxu0
  %v465 = vadd.f32 %v352, %v464
  %466 = vmatmul.f32.gmra.mxu0 %v188
  %v467 = vpop.f32.mrf.mxu0
  %v468 = vadd.f32 %v355, %v467
  %469 = vmatmul.f32.gmra.mxu0 %v190
  %v470 = vpop.f32.mrf.mxu0
  %v471 = vadd.f32 %v358, %v470
  %472 = vmatmul.f32.gmra.mxu0 %v192
  %v473 = vpop.f32.mrf.mxu0
  %v474 = vadd.f32 %v361, %v473
  %475 = vmatmul.f32.gmra.mxu0 %v194
  %v476 = vpop.f32.mrf.mxu0
  %v477 = vadd.f32 %v364, %v476
  %478 = vmatmul.f32.gmra.mxu0 %v196
  %v479 = vpop.f32.mrf.mxu0
  %v480 = vadd.f32 %v367, %v479
  %481 = vmatmul.f32.gmra.mxu0 %v198
  %v482 = vpop.f32.mrf.mxu0
  %v483 = vadd.f32 %v370, %v482
  %484 = vmatmul.f32.gmra.mxu0 %v200
  %v485 = vpop.f32.mrf.mxu0
  %v486 = vadd.f32 %v373, %v485
  %487 = vmatmul.f32.gmra.mxu0 %v202
  %v488 = vpop.f32.mrf.mxu0
  %v489 = vadd.f32 %v376, %v488
  %490 = vmatmul.f32.gmra.mxu0 %v204
  %v491 = vpop.f32.mrf.mxu0
  %v492 = vadd.f32 %v379, %v491
  %493 = vmatmul.f32.gmra.mxu0 %v206
  %v494 = vpop.f32.mrf.mxu0
  %v495 = vadd.f32 %v382, %v494
  %496 = vdwg.mxu0
  %497 = vmatpush.msra.mxu0 %v238
  %498 = vmatpush.msra.mxu0 %v236
  %499 = vmatpush.msra.mxu0 %v234
  %500 = vmatpush.msra.mxu0 %v232
  %501 = vmatpush.msra.mxu0 %v230
  %502 = vmatpush.msra.mxu0 %v228
  %503 = vmatpush.msra.mxu0 %v226
  %504 = vmatpush.msra.mxu0 %v224
  %505 = vmatpush.msra.mxu0 %v222
  %506 = vmatpush.msra.mxu0 %v220
  %507 = vmatpush.msra.mxu0 %v218
  %508 = vmatpush.msra.mxu0 %v216
  %509 = vmatpush.msra.mxu0 %v214
  %510 = vmatpush.msra.mxu0 %v212
  %511 = vmatpush.msra.mxu0 %v210
  %512 = vmatpush.msra.mxu0 %v208
  %513 = vmatmul.f32.gmra.mxu0 %v143
  %v514 = vpop.f32.mrf.mxu0
  %v515 = vadd.f32 0.0, %v514
  %516 = vmatmul.f32.gmra.mxu0 %v145
  %v517 = vpop.f32.mrf.mxu0
  %v518 = vadd.f32 0.0, %v517
  %519 = vmatmul.f32.gmra.mxu0 %v147
  %v520 = vpop.f32.mrf.mxu0
  %v521 = vadd.f32 0.0, %v520
  %522 = vmatmul.f32.gmra.mxu0 %v149
  %v523 = vpop.f32.mrf.mxu0
  %v524 = vadd.f32 0.0, %v523
  %525 = vmatmul.f32.gmra.mxu0 %v151
  %v526 = vpop.f32.mrf.mxu0
  %v527 = vadd.f32 0.0, %v526
  %528 = vmatmul.f32.gmra.mxu0 %v153
  %v529 = vpop.f32.mrf.mxu0
  %v530 = vadd.f32 0.0, %v529
  %531 = vmatmul.f32.gmra.mxu0 %v155
  %v532 = vpop.f32.mrf.mxu0
  %v533 = vadd.f32 0.0, %v532
  %534 = vmatmul.f32.gmra.mxu0 %v157
  %v535 = vpop.f32.mrf.mxu0
  %v536 = vadd.f32 0.0, %v535
  %537 = vmatmul.f32.gmra.mxu0 %v159
  %v538 = vpop.f32.mrf.mxu0
  %v539 = vadd.f32 0.0, %v538
  %540 = vmatmul.f32.gmra.mxu0 %v161
  %v541 = vpop.f32.mrf.mxu0
  %v542 = vadd.f32 0.0, %v541
  %543 = vmatmul.f32.gmra.mxu0 %v163
  %v544 = vpop.f32.mrf.mxu0
  %v545 = vadd.f32 0.0, %v544
  %546 = vmatmul.f32.gmra.mxu0 %v165
  %v547 = vpop.f32.mrf.mxu0
  %v548 = vadd.f32 0.0, %v547
  %549 = vmatmul.f32.gmra.mxu0 %v167
  %v550 = vpop.f32.mrf.mxu0
  %v551 = vadd.f32 0.0, %v550
  %552 = vmatmul.f32.gmra.mxu0 %v169
  %v553 = vpop.f32.mrf.mxu0
  %v554 = vadd.f32 0.0, %v553
  %555 = vmatmul.f32.gmra.mxu0 %v171
  %v556 = vpop.f32.mrf.mxu0
  %v557 = vadd.f32 0.0, %v556
  %558 = vmatmul.f32.gmra.mxu0 %v173
  %v559 = vpop.f32.mrf.mxu0
  %v560 = vadd.f32 0.0, %v559
  %561 = vmatmul.f32.gmra.mxu0 %v175
  %v562 = vpop.f32.mrf.mxu0
  %v563 = vadd.f32 0.0, %v562
  %564 = vmatmul.f32.gmra.mxu0 %v177
  %v565 = vpop.f32.mrf.mxu0
  %v566 = vadd.f32 0.0, %v565
  %567 = vmatmul.f32.gmra.mxu0 %v179
  %v568 = vpop.f32.mrf.mxu0
  %v569 = vadd.f32 0.0, %v568
  %570 = vmatmul.f32.gmra.mxu0 %v181
  %v571 = vpop.f32.mrf.mxu0
  %v572 = vadd.f32 0.0, %v571
  %573 = vmatmul.f32.gmra.mxu0 %v183
  %v574 = vpop.f32.mrf.mxu0
  %v575 = vadd.f32 0.0, %v574
  %576 = vmatmul.f32.gmra.mxu0 %v185
  %v577 = vpop.f32.mrf.mxu0
  %v578 = vadd.f32 0.0, %v577
  %579 = vmatmul.f32.gmra.mxu0 %v187
  %v580 = vpop.f32.mrf.mxu0
  %v581 = vadd.f32 0.0, %v580
  %582 = vmatmul.f32.gmra.mxu0 %v189
  %v583 = vpop.f32.mrf.mxu0
  %v584 = vadd.f32 0.0, %v583
  %585 = vmatmul.f32.gmra.mxu0 %v191
  %v586 = vpop.f32.mrf.mxu0
  %v587 = vadd.f32 0.0, %v586
  %588 = vmatmul.f32.gmra.mxu0 %v193
  %v589 = vpop.f32.mrf.mxu0
  %v590 = vadd.f32 0.0, %v589
  %591 = vmatmul.f32.gmra.mxu0 %v195
  %v592 = vpop.f32.mrf.mxu0
  %v593 = vadd.f32 0.0, %v592
  %594 = vmatmul.f32.gmra.mxu0 %v197
  %v595 = vpop.f32.mrf.mxu0
  %v596 = vadd.f32 0.0, %v595
  %597 = vmatmul.f32.gmra.mxu0 %v199
  %v598 = vpop.f32.mrf.mxu0
  %v599 = vadd.f32 0.0, %v598
  %600 = vmatmul.f32.gmra.mxu0 %v201
  %v601 = vpop.f32.mrf.mxu0
  %v602 = vadd.f32 0.0, %v601
  %603 = vmatmul.f32.gmra.mxu0 %v203
  %v604 = vpop.f32.mrf.mxu0
  %v605 = vadd.f32 0.0, %v604
  %606 = vmatmul.f32.gmra.mxu0 %v205
  %v607 = vpop.f32.mrf.mxu0
  %v608 = vadd.f32 0.0, %v607
  %609 = vdwg.mxu0
  %610 = vmatpush.msra.mxu0 %v270
  %611 = vmatpush.msra.mxu0 %v268
  %612 = vmatpush.msra.mxu0 %v266
  %613 = vmatpush.msra.mxu0 %v264
  %614 = vmatpush.msra.mxu0 %v262
  %615 = vmatpush.msra.mxu0 %v260
  %616 = vmatpush.msra.mxu0 %v258
  %617 = vmatpush.msra.mxu0 %v256
  %618 = vmatpush.msra.mxu0 %v254
  %619 = vmatpush.msra.mxu0 %v252
  %620 = vmatpush.msra.mxu0 %v250
  %621 = vmatpush.msra.mxu0 %v248
  %622 = vmatpush.msra.mxu0 %v246
  %623 = vmatpush.msra.mxu0 %v244
  %624 = vmatpush.msra.mxu0 %v242
  %625 = vmatpush.msra.mxu0 %v240
  %626 = vmatmul.f32.gmra.mxu0 %v144
  %v627 = vpop.f32.mrf.mxu0
  %v628 = vadd.f32 %v515, %v627
  %629 = vmatmul.f32.gmra.mxu0 %v146
  %v630 = vpop.f32.mrf.mxu0
  %v631 = vadd.f32 %v518, %v630
  %632 = vmatmul.f32.gmra.mxu0 %v148
  %v633 = vpop.f32.mrf.mxu0
  %v634 = vadd.f32 %v521, %v633
  %635 = vmatmul.f32.gmra.mxu0 %v150
  %v636 = vpop.f32.mrf.mxu0
  %v637 = vadd.f32 %v524, %v636
  %638 = vmatmul.f32.gmra.mxu0 %v152
  %v639 = vpop.f32.mrf.mxu0
  %v640 = vadd.f32 %v527, %v639
  %641 = vmatmul.f32.gmra.mxu0 %v154
  %v642 = vpop.f32.mrf.mxu0
  %v643 = vadd.f32 %v530, %v642
  %644 = vmatmul.f32.gmra.mxu0 %v156
  %v645 = vpop.f32.mrf.mxu0
  %v646 = vadd.f32 %v533, %v645
  %647 = vmatmul.f32.gmra.mxu0 %v158
  %v648 = vpop.f32.mrf.mxu0
  %v649 = vadd.f32 %v536, %v648
  %650 = vmatmul.f32.gmra.mxu0 %v160
  %v651 = vpop.f32.mrf.mxu0
  %v652 = vadd.f32 %v539, %v651
  %653 = vmatmul.f32.gmra.mxu0 %v162
  %v654 = vpop.f32.mrf.mxu0
  %v655 = vadd.f32 %v542, %v654
  %656 = vmatmul.f32.gmra.mxu0 %v164
  %v657 = vpop.f32.mrf.mxu0
  %v658 = vadd.f32 %v545, %v657
  %659 = vmatmul.f32.gmra.mxu0 %v166
  %v660 = vpop.f32.mrf.mxu0
  %v661 = vadd.f32 %v548, %v660
  %662 = vmatmul.f32.gmra.mxu0 %v168
  %v663 = vpop.f32.mrf.mxu0
  %v664 = vadd.f32 %v551, %v663
  %665 = vmatmul.f32.gmra.mxu0 %v170
  %v666 = vpop.f32.mrf.mxu0
  %v667 = vadd.f32 %v554, %v666
  %668 = vmatmul.f32.gmra.mxu0 %v172
  %v669 = vpop.f32.mrf.mxu0
  %v670 = vadd.f32 %v557, %v669
  %671 = vmatmul.f32.gmra.mxu0 %v174
  %v672 = vpop.f32.mrf.mxu0
  %v673 = vadd.f32 %v560, %v672
  %674 = vmatmul.f32.gmra.mxu0 %v176
  %v675 = vpop.f32.mrf.mxu0
  %v676 = vadd.f32 %v563, %v675
  %677 = vmatmul.f32.gmra.mxu0 %v178
  %v678 = vpop.f32.mrf.mxu0
  %v679 = vadd.f32 %v566, %v678
  %680 = vmatmul.f32.gmra.mxu0 %v180
  %v681 = vpop.f32.mrf.mxu0
  %v682 = vadd.f32 %v569, %v681
  %683 = vmatmul.f32.gmra.mxu0 %v182
  %v684 = vpop.f32.mrf.mxu0
  %v685 = vadd.f32 %v572, %v684
  %686 = vmatmul.f32.gmra.mxu0 %v184
  %v687 = vpop.f32.mrf.mxu0
  %v688 = vadd.f32 %v575, %v687
  %689 = vmatmul.f32.gmra.mxu0 %v186
  %v690 = vpop.f32.mrf.mxu0
  %v691 = vadd.f32 %v578, %v690
  %692 = vmatmul.f32.gmra.mxu0 %v188
  %v693 = vpop.f32.mrf.mxu0
  %v694 = vadd.f32 %v581, %v693
  %695 = vmatmul.f32.gmra.mxu0 %v190
  %v696 = vpop.f32.mrf.mxu0
  %v697 = vadd.f32 %v584, %v696
  %698 = vmatmul.f32.gmra.mxu0 %v192
  %v699 = vpop.f32.mrf.mxu0
  %v700 = vadd.f32 %v587, %v699
  %701 = vmatmul.f32.gmra.mxu0 %v194
  %v702 = vpop.f32.mrf.mxu0
  %v703 = vadd.f32 %v590, %v702
  %704 = vmatmul.f32.gmra.mxu0 %v196
  %v705 = vpop.f32.mrf.mxu0
  %v706 = vadd.f32 %v593, %v705
  %707 = vmatmul.f32.gmra.mxu0 %v198
  %v708 = vpop.f32.mrf.mxu0
  %v709 = vadd.f32 %v596, %v708
  %710 = vmatmul.f32.gmra.mxu0 %v200
  %v711 = vpop.f32.mrf.mxu0
  %v712 = vadd.f32 %v599, %v711
  %713 = vmatmul.f32.gmra.mxu0 %v202
  %v714 = vpop.f32.mrf.mxu0
  %v715 = vadd.f32 %v602, %v714
  %716 = vmatmul.f32.gmra.mxu0 %v204
  %v717 = vpop.f32.mrf.mxu0
  %v718 = vadd.f32 %v605, %v717
  %719 = vmatmul.f32.gmra.mxu0 %v206
  %v720 = vpop.f32.mrf.mxu0
  %v721 = vadd.f32 %v608, %v720
  %722 = vdwg.mxu0
  %v723 = vadd.f32 %v79, %v402
  %v724 = vadd.f32 %v80, %v628
  %v725 = vadd.f32 %v81, %v405
  %v726 = vadd.f32 %v82, %v631
  %v727 = vadd.f32 %v83, %v408
  %v728 = vadd.f32 %v84, %v634
  %v729 = vadd.f32 %v85, %v411
  %v730 = vadd.f32 %v86, %v637
  %v731 = vadd.f32 %v87, %v414
  %v732 = vadd.f32 %v88, %v640
  %v733 = vadd.f32 %v89, %v417
  %v734 = vadd.f32 %v90, %v643
  %v735 = vadd.f32 %v91, %v420
  %v736 = vadd.f32 %v92, %v646
  %v737 = vadd.f32 %v93, %v423
  %v738 = vadd.f32 %v94, %v649
  %v739 = vadd.f32 %v95, %v426
  %v740 = vadd.f32 %v96, %v652
  %v741 = vadd.f32 %v97, %v429
  %v742 = vadd.f32 %v98, %v655
  %v743 = vadd.f32 %v99, %v432
  %v744 = vadd.f32 %v100, %v658
  %v745 = vadd.f32 %v101, %v435
  %v746 = vadd.f32 %v102, %v661
  %v747 = vadd.f32 %v103, %v438
  %v748 = vadd.f32 %v104, %v664
  %v749 = vadd.f32 %v105, %v441
  %v750 = vadd.f32 %v106, %v667
  %v751 = vadd.f32 %v107, %v444
  %v752 = vadd.f32 %v108, %v670
  %v753 = vadd.f32 %v109, %v447
  %v754 = vadd.f32 %v110, %v673
  %v755 = vadd.f32 %v111, %v450
  %v756 = vadd.f32 %v112, %v676
  %v757 = vadd.f32 %v113, %v453
  %v758 = vadd.f32 %v114, %v679
  %v759 = vadd.f32 %v115, %v456
  %v760 = vadd.f32 %v116, %v682
  %v761 = vadd.f32 %v117, %v459
  %v762 = vadd.f32 %v118, %v685
  %v763 = vadd.f32 %v119, %v462
  %v764 = vadd.f32 %v120, %v688
  %v765 = vadd.f32 %v121, %v465
  %v766 = vadd.f32 %v122, %v691
  %v767 = vadd.f32 %v123, %v468
  %v768 = vadd.f32 %v124, %v694
  %v769 = vadd.f32 %v125, %v471
  %v770 = vadd.f32 %v126, %v697
  %v771 = vadd.f32 %v127, %v474
  %v772 = vadd.f32 %v128, %v700
  %v773 = vadd.f32 %v129, %v477
  %v774 = vadd.f32 %v130, %v703
  %v775 = vadd.f32 %v131, %v480
  %v776 = vadd.f32 %v132, %v706
  %v777 = vadd.f32 %v133, %v483
  %v778 = vadd.f32 %v134, %v709
  %v779 = vadd.f32 %v135, %v486
  %v780 = vadd.f32 %v136, %v712
  %v781 = vadd.f32 %v137, %v489
  %v782 = vadd.f32 %v138, %v715
  %v783 = vadd.f32 %v139, %v492
  %v784 = vadd.f32 %v140, %v718
  %v785 = vadd.f32 %v141, %v495
  %v786 = vadd.f32 %v142, %v721
  %787 = vst [vmem:[#allocation2] sm:$0xff] %v723
  %788 = vst [vmem:[#allocation2 + $0x8] sm:$0xff] %v724
  %789 = vst [vmem:[#allocation2 + $0x10] sm:$0xff] %v725
  %790 = vst [vmem:[#allocation2 + $0x18] sm:$0xff] %v726
  %791 = vst [vmem:[#allocation2 + $0x20] sm:$0xff] %v727
  %792 = vst [vmem:[#allocation2 + $0x28] sm:$0xff] %v728
  %793 = vst [vmem:[#allocation2 + $0x30] sm:$0xff] %v729
  %794 = vst [vmem:[#allocation2 + $0x38] sm:$0xff] %v730
  %795 = vst [vmem:[#allocation2 + $0x40] sm:$0xff] %v731
  %796 = vst [vmem:[#allocation2 + $0x48] sm:$0xff] %v732
  %797 = vst [vmem:[#allocation2 + $0x50] sm:$0xff] %v733
  %798 = vst [vmem:[#allocation2 + $0x58] sm:$0xff] %v734
  %799 = vst [vmem:[#allocation2 + $0x60] sm:$0xff] %v735
  %800 = vst [vmem:[#allocation2 + $0x68] sm:$0xff] %v736
  %801 = vst [vmem:[#allocation2 + $0x70] sm:$0xff] %v737
  %802 = vst [vmem:[#allocation2 + $0x78] sm:$0xff] %v738
  %803 = vst [vmem:[#allocation2 + $0x80] sm:$0xff] %v739
  %804 = vst [vmem:[#allocation2 + $0x88] sm:$0xff] %v740
  %805 = vst [vmem:[#allocation2 + $0x90] sm:$0xff] %v741
  %806 = vst [vmem:[#allocation2 + $0x98] sm:$0xff] %v742
  %807 = vst [vmem:[#allocation2 + $0xa0] sm:$0xff] %v743
  %808 = vst [vmem:[#allocation2 + $0xa8] sm:$0xff] %v744
  %809 = vst [vmem:[#allocation2 + $0xb0] sm:$0xff] %v745
  %810 = vst [vmem:[#allocation2 + $0xb8] sm:$0xff] %v746
  %811 = vst [vmem:[#allocation2 + $0xc0] sm:$0xff] %v747
  %812 = vst [vmem:[#allocation2 + $0xc8] sm:$0xff] %v748
  %813 = vst [vmem:[#allocation2 + $0xd0] sm:$0xff] %v749
  %814 = vst [vmem:[#allocation2 + $0xd8] sm:$0xff] %v750
  %815 = vst [vmem:[#allocation2 + $0xe0] sm:$0xff] %v751
  %816 = vst [vmem:[#allocation2 + $0xe8] sm:$0xff] %v752
  %817 = vst [vmem:[#allocation2 + $0xf0] sm:$0xff] %v753
  %818 = vst [vmem:[#allocation2 + $0xf8] sm:$0xff] %v754
  %819 = vst [vmem:[#allocation2 + $0x100] sm:$0xff] %v755
  %820 = vst [vmem:[#allocation2 + $0x108] sm:$0xff] %v756
  %821 = vst [vmem:[#allocation2 + $0x110] sm:$0xff] %v757
  %822 = vst [vmem:[#allocation2 + $0x118] sm:$0xff] %v758
  %823 = vst [vmem:[#allocation2 + $0x120] sm:$0xff] %v759
  %824 = vst [vmem:[#allocation2 + $0x128] sm:$0xff] %v760
  %825 = vst [vmem:[#allocation2 + $0x130] sm:$0xff] %v761
  %826 = vst [vmem:[#allocation2 + $0x138] sm:$0xff] %v762
  %827 = vst [vmem:[#allocation2 + $0x140] sm:$0xff] %v763
  %828 = vst [vmem:[#allocation2 + $0x148] sm:$0xff] %v764
  %829 = vst [vmem:[#allocation2 + $0x150] sm:$0xff] %v765
  %830 = vst [vmem:[#allocation2 + $0x158] sm:$0xff] %v766
  %831 = vst [vmem:[#allocation2 + $0x160] sm:$0xff] %v767
  %832 = vst [vmem:[#allocation2 + $0x168] sm:$0xff] %v768
  %833 = vst [vmem:[#allocation2 + $0x170] sm:$0xff] %v769
  %834 = vst [vmem:[#allocation2 + $0x178] sm:$0xff] %v770
  %835 = vst [vmem:[#allocation2 + $0x180] sm:$0xff] %v771
  %836 = vst [vmem:[#allocation2 + $0x188] sm:$0xff] %v772
  %837 = vst [vmem:[#allocation2 + $0x190] sm:$0xff] %v773
  %838 = vst [vmem:[#allocation2 + $0x198] sm:$0xff] %v774
  %839 = vst [vmem:[#allocation2 + $0x1a0] sm:$0xff] %v775
  %840 = vst [vmem:[#allocation2 + $0x1a8] sm:$0xff] %v776
  %841 = vst [vmem:[#allocation2 + $0x1b0] sm:$0xff] %v777
  %842 = vst [vmem:[#allocation2 + $0x1b8] sm:$0xff] %v778
  %843 = vst [vmem:[#allocation2 + $0x1c0] sm:$0xff] %v779
  %844 = vst [vmem:[#allocation2 + $0x1c8] sm:$0xff] %v780
  %845 = vst [vmem:[#allocation2 + $0x1d0] sm:$0xff] %v781
  %846 = vst [vmem:[#allocation2 + $0x1d8] sm:$0xff] %v782
  %847 = vst [vmem:[#allocation2 + $0x1e0] sm:$0xff] %v783
  %848 = vst [vmem:[#allocation2 + $0x1e8] sm:$0xff] %v784
  %849 = vst [vmem:[#allocation2 + $0x1f0] sm:$0xff] %v785
  %850 = vst [vmem:[#allocation2 + $0x1f8] sm:$0xff] %v786
  // Predicated region
  $region14: #{rerank_loss_forward.11} parent=0 // pred_check
    %p851 = pneg %p11
  $region15: #{rerank_loss_forward.11} parent=0 // pred_check_branch
    %853 = sbr.rel (%p851) target = $region17
  $region16: #{rerank_loss_forward.11} parent=0 // pred_region
    %v854 = vld [vmem:[#allocation2] sm:$0xff]
    %v855 = vld [vmem:[#allocation2 + $0x8] sm:$0xff]
    %v856 = vld [vmem:[#allocation2 + $0x10] sm:$0xff]
    %v857 = vld [vmem:[#allocation2 + $0x18] sm:$0xff]
    %v858 = vld [vmem:[#allocation2 + $0x20] sm:$0xff]
    %v859 = vld [vmem:[#allocation2 + $0x28] sm:$0xff]
    %v860 = vld [vmem:[#allocation2 + $0x30] sm:$0xff]
    %v861 = vld [vmem:[#allocation2 + $0x38] sm:$0xff]
    %v862 = vld [vmem:[#allocation2 + $0x40] sm:$0xff]
    %v863 = vld [vmem:[#allocation2 + $0x48] sm:$0xff]
    %v864 = vld [vmem:[#allocation2 + $0x50] sm:$0xff]
    %v865 = vld [vmem:[#allocation2 + $0x58] sm:$0xff]
    %v866 = vld [vmem:[#allocation2 + $0x60] sm:$0xff]
    %v867 = vld [vmem:[#allocation2 + $0x68] sm:$0xff]
    %v868 = vld [vmem:[#allocation2 + $0x70] sm:$0xff]
    %v869 = vld [vmem:[#allocation2 + $0x78] sm:$0xff]
    %v870 = vld [vmem:[#allocation2 + $0x80] sm:$0xff]
    %v871 = vld [vmem:[#allocation2 + $0x88] sm:$0xff]
    %v872 = vld [vmem:[#allocation2 + $0x90] sm:$0xff]
    %v873 = vld [vmem:[#allocation2 + $0x98] sm:$0xff]
    %v874 = vld [vmem:[#allocation2 + $0xa0] sm:$0xff]
    %v875 = vld [vmem:[#allocation2 + $0xa8] sm:$0xff]
    %v876 = vld [vmem:[#allocation2 + $0xb0] sm:$0xff]
    %v877 = vld [vmem:[#allocation2 + $0xb8] sm:$0xff]
    %v878 = vld [vmem:[#allocation2 + $0xc0] sm:$0xff]
    %v879 = vld [vmem:[#allocation2 + $0xc8] sm:$0xff]
    %v880 = vld [vmem:[#allocation2 + $0xd0] sm:$0xff]
    %v881 = vld [vmem:[#allocation2 + $0xd8] sm:$0xff]
    %v882 = vld [vmem:[#allocation2 + $0xe0] sm:$0xff]
    %v883 = vld [vmem:[#allocation2 + $0xe8] sm:$0xff]
    %v884 = vld [vmem:[#allocation2 + $0xf0] sm:$0xff]
    %v885 = vld [vmem:[#allocation2 + $0xf8] sm:$0xff]
    %v886 = vld [vmem:[#allocation2 + $0x100] sm:$0xff]
    %v887 = vld [vmem:[#allocation2 + $0x108] sm:$0xff]
    %v888 = vld [vmem:[#allocation2 + $0x110] sm:$0xff]
    %v889 = vld [vmem:[#allocation2 + $0x118] sm:$0xff]
    %v890 = vld [vmem:[#allocation2 + $0x120] sm:$0xff]
    %v891 = vld [vmem:[#allocation2 + $0x128] sm:$0xff]
    %v892 = vld [vmem:[#allocation2 + $0x130] sm:$0xff]
    %v893 = vld [vmem:[#allocation2 + $0x138] sm:$0xff]
    %v894 = vld [vmem:[#allocation2 + $0x140] sm:$0xff]
    %v895 = vld [vmem:[#allocation2 + $0x148] sm:$0xff]
    %v896 = vld [vmem:[#allocation2 + $0x150] sm:$0xff]
    %v897 = vld [vmem:[#allocation2 + $0x158] sm:$0xff]
    %v898 = vld [vmem:[#allocation2 + $0x160] sm:$0xff]
    %v899 = vld [vmem:[#allocation2 + $0x168] sm:$0xff]
    %v900 = vld [vmem:[#allocation2 + $0x170] sm:$0xff]
    %v901 = vld [vmem:[#allocation2 + $0x178] sm:$0xff]
    %v902 = vld [vmem:[#allocation2 + $0x180] sm:$0xff]
    %v903 = vld [vmem:[#allocation2 + $0x188] sm:$0xff]
    %v904 = vld [vmem:[#allocation2 + $0x190] sm:$0xff]
    %v905 = vld [vmem:[#allocation2 + $0x198] sm:$0xff]
    %v906 = vld [vmem:[#allocation2 + $0x1a0] sm:$0xff]
    %v907 = vld [vmem:[#allocation2 + $0x1a8] sm:$0xff]
    %v908 = vld [vmem:[#allocation2 + $0x1b0] sm:$0xff]
    %v909 = vld [vmem:[#allocation2 + $0x1b8] sm:$0xff]
    %v910 = vld [vmem:[#allocation2 + $0x1c0] sm:$0xff]
    %v911 = vld [vmem:[#allocation2 + $0x1c8] sm:$0xff]
    %v912 = vld [vmem:[#allocation2 + $0x1d0] sm:$0xff]
    %v913 = vld [vmem:[#allocation2 + $0x1d8] sm:$0xff]
    %v914 = vld [vmem:[#allocation2 + $0x1e0] sm:$0xff]
    %v915 = vld [vmem:[#allocation2 + $0x1e8] sm:$0xff]
    %v916 = vld [vmem:[#allocation2 + $0x1f0] sm:$0xff]
    %v917 = vld [vmem:[#allocation2 + $0x1f8] sm:$0xff]
    %v918 = vmul.f32 %v854, 0.16666667
    %v919 = vmul.f32 %v855, 0.16666667
    %v920 = vmul.f32 %v856, 0.16666667
    %v921 = vmul.f32 %v857, 0.16666667
    %v922 = vmul.f32 %v858, 0.16666667
    %v923 = vmul.f32 %v859, 0.16666667
    %v924 = vmul.f32 %v860, 0.16666667
    %v925 = vmul.f32 %v861, 0.16666667
    %v926 = vmul.f32 %v862, 0.16666667
    %v927 = vmul.f32 %v863, 0.16666667
    %v928 = vmul.f32 %v864, 0.16666667
    %v929 = vmul.f32 %v865, 0.16666667
    %v930 = vmul.f32 %v866, 0.16666667
    %v931 = vmul.f32 %v867, 0.16666667
    %v932 = vmul.f32 %v868, 0.16666667
    %v933 = vmul.f32 %v869, 0.16666667
    %v934 = vmul.f32 %v870, 0.16666667
    %v935 = vmul.f32 %v871, 0.16666667
    %v936 = vmul.f32 %v872, 0.16666667
    %v937 = vmul.f32 %v873, 0.16666667
    %v938 = vmul.f32 %v874, 0.16666667
    %v939 = vmul.f32 %v875, 0.16666667
    %v940 = vmul.f32 %v876, 0.16666667
    %v941 = vmul.f32 %v877, 0.16666667
    %v942 = vmul.f32 %v878, 0.16666667
    %v943 = vmul.f32 %v879, 0.16666667
    %v944 = vmul.f32 %v880, 0.16666667
    %v945 = vmul.f32 %v881, 0.16666667
    %v946 = vmul.f32 %v882, 0.16666667
    %v947 = vmul.f32 %v883, 0.16666667
    %v948 = vmul.f32 %v884, 0.16666667
    %v949 = vmul.f32 %v885, 0.16666667
    %v950 = vmul.f32 %v886, 0.16666667
    %v951 = vmul.f32 %v887, 0.16666667
    %v952 = vmul.f32 %v888, 0.16666667
    %v953 = vmul.f32 %v889, 0.16666667
    %v954 = vmul.f32 %v890, 0.16666667
    %v955 = vmul.f32 %v891, 0.16666667
    %v956 = vmul.f32 %v892, 0.16666667
    %v957 = vmul.f32 %v893, 0.16666667
    %v958 = vmul.f32 %v894, 0.16666667
    %v959 = vmul.f32 %v895, 0.16666667
    %v960 = vmul.f32 %v896, 0.16666667
    %v961 = vmul.f32 %v897, 0.16666667
    %v962 = vmul.f32 %v898, 0.16666667
    %v963 = vmul.f32 %v899, 0.16666667
    %v964 = vmul.f32 %v900, 0.16666667
    %v965 = vmul.f32 %v901, 0.16666667
    %v966 = vmul.f32 %v902, 0.16666667
    %v967 = vmul.f32 %v903, 0.16666667
    %v968 = vmul.f32 %v904, 0.16666667
    %v969 = vmul.f32 %v905, 0.16666667
    %v970 = vmul.f32 %v906, 0.16666667
    %v971 = vmul.f32 %v907, 0.16666667
    %v972 = vmul.f32 %v908, 0.16666667
    %v973 = vmul.f32 %v909, 0.16666667
    %v974 = vmul.f32 %v910, 0.16666667
    %v975 = vmul.f32 %v911, 0.16666667
    %v976 = vmul.f32 %v912, 0.16666667
    %v977 = vmul.f32 %v913, 0.16666667
    %v978 = vmul.f32 %v914, 0.16666667
    %v979 = vmul.f32 %v915, 0.16666667
    %v980 = vmul.f32 %v916, 0.16666667
    %v981 = vmul.f32 %v917, 0.16666667
    %982 = vst [vmem:[%s2] sm:$0xff] %v918
    %983 = vst [vmem:[%s2 + $0x8] sm:$0xff] %v919
    %984 = vst [vmem:[%s2 + $0x10] sm:$0xff] %v920
    %985 = vst [vmem:[%s2 + $0x18] sm:$0xff] %v921
    %986 = vst [vmem:[%s2 + $0x20] sm:$0xff] %v922
    %987 = vst [vmem:[%s2 + $0x28] sm:$0xff] %v923
    %988 = vst [vmem:[%s2 + $0x30] sm:$0xff] %v924
    %989 = vst [vmem:[%s2 + $0x38] sm:$0xff] %v925
    %990 = vst [vmem:[%s2 + $0x40] sm:$0xff] %v926
    %991 = vst [vmem:[%s2 + $0x48] sm:$0xff] %v927
    %992 = vst [vmem:[%s2 + $0x50] sm:$0xff] %v928
    %993 = vst [vmem:[%s2 + $0x58] sm:$0xff] %v929
    %994 = vst [vmem:[%s2 + $0x60] sm:$0xff] %v930
    %995 = vst [vmem:[%s2 + $0x68] sm:$0xff] %v931
    %996 = vst [vmem:[%s2 + $0x70] sm:$0xff] %v932
    %997 = vst [vmem:[%s2 + $0x78] sm:$0xff] %v933
    %998 = vst [vmem:[%s2 + $0x80] sm:$0xff] %v934
    %999 = vst [vmem:[%s2 + $0x88] sm:$0xff] %v935
    %1000 = vst [vmem:[%s2 + $0x90] sm:$0xff] %v936
    %1001 = vst [vmem:[%s2 + $0x98] sm:$0xff] %v937
    %1002 = vst [vmem:[%s2 + $0xa0] sm:$0xff] %v938
    %1003 = vst [vmem:[%s2 + $0xa8] sm:$0xff] %v939
    %1004 = vst [vmem:[%s2 + $0xb0] sm:$0xff] %v940
    %1005 = vst [vmem:[%s2 + $0xb8] sm:$0xff] %v941
    %1006 = vst [vmem:[%s2 + $0xc0] sm:$0xff] %v942
    %1007 = vst [vmem:[%s2 + $0xc8] sm:$0xff] %v943
    %1008 = vst [vmem:[%s2 + $0xd0] sm:$0xff] %v944
    %1009 = vst [vmem:[%s2 + $0xd8] sm:$0xff] %v945
    %1010 = vst [vmem:[%s2 + $0xe0] sm:$0xff] %v946
    %1011 = vst [vmem:[%s2 + $0xe8] sm:$0xff] %v947
    %1012 = vst [vmem:[%s2 + $0xf0] sm:$0xff] %v948
    %1013 = vst [vmem:[%s2 + $0xf8] sm:$0xff] %v949
    %1014 = vst [vmem:[%s2 + $0x100] sm:$0xff] %v950
    %1015 = vst [vmem:[%s2 + $0x108] sm:$0xff] %v951
    %1016 = vst [vmem:[%s2 + $0x110] sm:$0xff] %v952
    %1017 = vst [vmem:[%s2 + $0x118] sm:$0xff] %v953
    %1018 = vst [vmem:[%s2 + $0x120] sm:$0xff] %v954
    %1019 = vst [vmem:[%s2 + $0x128] sm:$0xff] %v955
    %1020 = vst [vmem:[%s2 + $0x130] sm:$0xff] %v956
    %1021 = vst [vmem:[%s2 + $0x138] sm:$0xff] %v957
    %1022 = vst [vmem:[%s2 + $0x140] sm:$0xff] %v958
    %1023 = vst [vmem:[%s2 + $0x148] sm:$0xff] %v959
    %1024 = vst [vmem:[%s2 + $0x150] sm:$0xff] %v960
    %1025 = vst [vmem:[%s2 + $0x158] sm:$0xff] %v961
    %1026 = vst [vmem:[%s2 + $0x160] sm:$0xff] %v962
    %1027 = vst [vmem:[%s2 + $0x168] sm:$0xff] %v963
    %1028 = vst [vmem:[%s2 + $0x170] sm:$0xff] %v964
    %1029 = vst [vmem:[%s2 + $0x178] sm:$0xff] %v965
    %1030 = vst [vmem:[%s2 + $0x180] sm:$0xff] %v966
    %1031 = vst [vmem:[%s2 + $0x188] sm:$0xff] %v967
    %1032 = vst [vmem:[%s2 + $0x190] sm:$0xff] %v968
    %1033 = vst [vmem:[%s2 + $0x198] sm:$0xff] %v969
    %1034 = vst [vmem:[%s2 + $0x1a0] sm:$0xff] %v970
    %1035 = vst [vmem:[%s2 + $0x1a8] sm:$0xff] %v971
    %1036 = vst [vmem:[%s2 + $0x1b0] sm:$0xff] %v972
    %1037 = vst [vmem:[%s2 + $0x1b8] sm:$0xff] %v973
    %1038 = vst [vmem:[%s2 + $0x1c0] sm:$0xff] %v974
    %1039 = vst [vmem:[%s2 + $0x1c8] sm:$0xff] %v975
    %1040 = vst [vmem:[%s2 + $0x1d0] sm:$0xff] %v976
    %1041 = vst [vmem:[%s2 + $0x1d8] sm:$0xff] %v977
    %1042 = vst [vmem:[%s2 + $0x1e0] sm:$0xff] %v978
    %1043 = vst [vmem:[%s2 + $0x1e8] sm:$0xff] %v979
    %1044 = vst [vmem:[%s2 + $0x1f0] sm:$0xff] %v980
    %1045 = vst [vmem:[%s2 + $0x1f8] sm:$0xff] %v981
  $region17: #{rerank_loss_forward.11} parent=0 // pred_fallthru
    _
  // Predicated region
  $region18: #{rerank_loss_forward.11} parent=0 // pred_check
    _
  $region19: #{rerank_loss_forward.11} parent=0 // pred_check_branch
    %1047 = sbr.rel (0) target = $region21
  $region20: #{rerank_loss_forward.11} parent=0 // pred_region
    _
  $region21: #{rerank_loss_forward.11} parent=0 // pred_fallthru
    _
  // Predicated region
  $region22: #{rerank_loss_forward.11} parent=0 // pred_check
    _
  $region23: #{rerank_loss_forward.11} parent=0 // pred_check_branch
    %1049 = sbr.rel (0) target = $region25
  $region24: #{rerank_loss_forward.11} parent=0 // pred_region
    _
  $region25: #{rerank_loss_forward.11} parent=0 // pred_fallthru
    _

// kernel: rerank_loss_forward.13
$region0: #{rerank_loss_forward.13}
  #allocation0 [shape = 'u32[]', space=smem, size = 0x4, offset = 0x4, fixed_abs, tag = 'smem constant byte address 0x4 - core index']
  #allocation1 [shape = 'u32[72,128]{1,0:T(1,128)}', space=vmem, size = 0x9000, scoped, tag = 'internal scratch']
  %s0 = inlined_call_operand.vmem [shape: f32[128,128], index: 0, kind: input, shape index: {}]
  %s1 = inlined_call_operand.vmem [shape: f32[128,128], index: 1, kind: input, shape index: {}]
  %s2 = inlined_call_operand.vmem [shape: f32[128,1], index: 2, kind: output, shape index: {0}]
  %s3 = inlined_call_operand.vmem [shape: f32[128,1], index: 3, kind: output, shape index: {1}]
  %s4 = inlined_call_operand.vmem [shape: f32[128,1], index: 4, kind: output, shape index: {2}]
  %5 = xla_tuple %s2, %s3, %s4
  %s6 = sld [smem:[#allocation0]]
  $region34: #{rerank_loss_forward.13} parent=0
    _
  %s8 = ssub.s32 1, %s6
  %s9 = scalar_select 0, %s8, %s6
  // Predicated region
  $region2: #{rerank_loss_forward.13} parent=0 // pred_check
    _
  $region3: #{rerank_loss_forward.13} parent=0 // pred_check_branch
    %11 = sbr.rel (0) target = $region5
  $region4: #{rerank_loss_forward.13} parent=0 // pred_region
    _
  $region5: #{rerank_loss_forward.13} parent=0 // pred_fallthru
    _
  // Predicated region
  $region6: #{rerank_loss_forward.13} parent=0 // pred_check
    _
  $region7: #{rerank_loss_forward.13} parent=0 // pred_check_branch
    %13 = sbr.rel (0) target = $region9
  $region8: #{rerank_loss_forward.13} parent=0 // pred_region
    _
  $region9: #{rerank_loss_forward.13} parent=0 // pred_fallthru
    _
  %v14 = vld [vmem:[%s0] sm:$0xff]
  %v15 = vld [vmem:[%s0 + $0x8] sm:$0xff]
  %v16 = vld [vmem:[%s0 + $0x10] sm:$0xff]
  %v17 = vld [vmem:[%s0 + $0x18] sm:$0xff]
  %v18 = vld [vmem:[%s0 + $0x20] sm:$0xff]
  %v19 = vld [vmem:[%s0 + $0x28] sm:$0xff]
  %v20 = vld [vmem:[%s0 + $0x30] sm:$0xff]
  %v21 = vld [vmem:[%s0 + $0x38] sm:$0xff]
  %v22 = vld [vmem:[%s0 + $0x40] sm:$0xff]
  %v23 = vld [vmem:[%s0 + $0x48] sm:$0xff]
  %v24 = vld [vmem:[%s0 + $0x50] sm:$0xff]
  %v25 = vld [vmem:[%s0 + $0x58] sm:$0xff]
  %v26 = vld [vmem:[%s0 + $0x60] sm:$0xff]
  %v27 = vld [vmem:[%s0 + $0x68] sm:$0xff]
  %v28 = vld [vmem:[%s0 + $0x70] sm:$0xff]
  %v29 = vld [vmem:[%s0 + $0x78] sm:$0xff]
  %v30 = vld [vmem:[%s1] sm:$0xff]
  %v31 = vld [vmem:[%s1 + $0x8] sm:$0xff]
  %v32 = vld [vmem:[%s1 + $0x10] sm:$0xff]
  %v33 = vld [vmem:[%s1 + $0x18] sm:$0xff]
  %v34 = vld [vmem:[%s1 + $0x20] sm:$0xff]
  %v35 = vld [vmem:[%s1 + $0x28] sm:$0xff]
  %v36 = vld [vmem:[%s1 + $0x30] sm:$0xff]
  %v37 = vld [vmem:[%s1 + $0x38] sm:$0xff]
  %v38 = vld [vmem:[%s1 + $0x40] sm:$0xff]
  %v39 = vld [vmem:[%s1 + $0x48] sm:$0xff]
  %v40 = vld [vmem:[%s1 + $0x50] sm:$0xff]
  %v41 = vld [vmem:[%s1 + $0x58] sm:$0xff]
  %v42 = vld [vmem:[%s1 + $0x60] sm:$0xff]
  %v43 = vld [vmem:[%s1 + $0x68] sm:$0xff]
  %v44 = vld [vmem:[%s1 + $0x70] sm:$0xff]
  %v45 = vld [vmem:[%s1 + $0x78] sm:$0xff]
  %vm46 = vcmp.gt.f32.partialorder %v30, 0.5
  %vm47 = vcmp.gt.f32.partialorder %v31, 0.5
  %vm48 = vcmp.gt.f32.partialorder %v32, 0.5
  %vm49 = vcmp.gt.f32.partialorder %v33, 0.5
  %vm50 = vcmp.gt.f32.partialorder %v34, 0.5
  %vm51 = vcmp.gt.f32.partialorder %v35, 0.5
  %vm52 = vcmp.gt.f32.partialorder %v36, 0.5
  %vm53 = vcmp.gt.f32.partialorder %v37, 0.5
  %vm54 = vcmp.gt.f32.partialorder %v38, 0.5
  %vm55 = vcmp.gt.f32.partialorder %v39, 0.5
  %vm56 = vcmp.gt.f32.partialorder %v40, 0.5
  %vm57 = vcmp.gt.f32.partialorder %v41, 0.5
  %vm58 = vcmp.gt.f32.partialorder %v42, 0.5
  %vm59 = vcmp.gt.f32.partialorder %v43, 0.5
  %vm60 = vcmp.gt.f32.partialorder %v44, 0.5
  %vm61 = vcmp.gt.f32.partialorder %v45, 0.5
  %v62 = vand.u32 2147483647, %v30
  %v63 = vand.u32 2147483647, %v31
  %v64 = vand.u32 2147483647, %v32
  %v65 = vand.u32 2147483647, %v33
  %v66 = vand.u32 2147483647, %v34
  %v67 = vand.u32 2147483647, %v35
  %v68 = vand.u32 2147483647, %v36
  %v69 = vand.u32 2147483647, %v37
  %v70 = vand.u32 2147483647, %v38
  %v71 = vand.u32 2147483647, %v39
  %v72 = vand.u32 2147483647, %v40
  %v73 = vand.u32 2147483647, %v41
  %v74 = vand.u32 2147483647, %v42
  %v75 = vand.u32 2147483647, %v43
  %v76 = vand.u32 2147483647, %v44
  %v77 = vand.u32 2147483647, %v45
  %vm78 = vcmp.lt.f32.partialorder %v62, 0.5
  %vm79 = vcmp.lt.f32.partialorder %v63, 0.5
  %vm80 = vcmp.lt.f32.partialorder %v64, 0.5
  %vm81 = vcmp.lt.f32.partialorder %v65, 0.5
  %vm82 = vcmp.lt.f32.partialorder %v66, 0.5
  %vm83 = vcmp.lt.f32.partialorder %v67, 0.5
  %vm84 = vcmp.lt.f32.partialorder %v68, 0.5
  %vm85 = vcmp.lt.f32.partialorder %v69, 0.5
  %vm86 = vcmp.lt.f32.partialorder %v70, 0.5
  %vm87 = vcmp.lt.f32.partialorder %v71, 0.5
  %vm88 = vcmp.lt.f32.partialorder %v72, 0.5
  %vm89 = vcmp.lt.f32.partialorder %v73, 0.5
  %vm90 = vcmp.lt.f32.partialorder %v74, 0.5
  %vm91 = vcmp.lt.f32.partialorder %v75, 0.5
  %vm92 = vcmp.lt.f32.partialorder %v76, 0.5
  %vm93 = vcmp.lt.f32.partialorder %v77, 0.5
  %v94 = vsel %vm46, %v14, -inf
  %v95 = vsel %vm47, %v15, -inf
  %v96 = vsel %vm48, %v16, -inf
  %v97 = vsel %vm49, %v17, -inf
  %v98 = vsel %vm50, %v18, -inf
  %v99 = vsel %vm51, %v19, -inf
  %v100 = vsel %vm52, %v20, -inf
  %v101 = vsel %vm53, %v21, -inf
  %v102 = vsel %vm54, %v22, -inf
  %v103 = vsel %vm55, %v23, -inf
  %v104 = vsel %vm56, %v24, -inf
  %v105 = vsel %vm57, %v25, -inf
  %v106 = vsel %vm58, %v26, -inf
  %v107 = vsel %vm59, %v27, -inf
  %v108 = vsel %vm60, %v28, -inf
  %v109 = vsel %vm61, %v29, -inf
  %110 = vmax.xlane.f32.xlu0 %v94
  %v111 = vpop.xlane.xlu0 %110
  %112 = vmax.xlane.f32.xlu0 %v95
  %v113 = vpop.xlane.xlu0 %112
  %114 = vmax.xlane.f32.xlu0 %v96
  %v115 = vpop.xlane.xlu0 %114
  %116 = vmax.xlane.f32.xlu0 %v97
  %v117 = vpop.xlane.xlu0 %116
  %118 = vmax.xlane.f32.xlu0 %v98
  %v119 = vpop.xlane.xlu0 %118
  %120 = vmax.xlane.f32.xlu0 %v99
  %v121 = vpop.xlane.xlu0 %120
  %122 = vmax.xlane.f32.xlu0 %v100
  %v123 = vpop.xlane.xlu0 %122
  %124 = vmax.xlane.f32.xlu0 %v101
  %v125 = vpop.xlane.xlu0 %124
  %126 = vmax.xlane.f32.xlu0 %v102
  %v127 = vpop.xlane.xlu0 %126
  %128 = vmax.xlane.f32.xlu0 %v103
  %v129 = vpop.xlane.xlu0 %128
  %130 = vmax.xlane.f32.xlu0 %v104
  %v131 = vpop.xlane.xlu0 %130
  %132 = vmax.xlane.f32.xlu0 %v105
  %v133 = vpop.xlane.xlu0 %132
  %134 = vmax.xlane.f32.xlu0 %v106
  %v135 = vpop.xlane.xlu0 %134
  %136 = vmax.xlane.f32.xlu0 %v107
  %v137 = vpop.xlane.xlu0 %136
  %138 = vmax.xlane.f32.xlu0 %v108
  %v139 = vpop.xlane.xlu0 %138
  %140 = vmax.xlane.f32.xlu0 %v109
  %v141 = vpop.xlane.xlu0 %140
  %v142 = vsel %vm78, %v14, inf
  %v143 = vsel %vm79, %v15, inf
  %v144 = vsel %vm80, %v16, inf
  %v145 = vsel %vm81, %v17, inf
  %v146 = vsel %vm82, %v18, inf
  %v147 = vsel %vm83, %v19, inf
  %v148 = vsel %vm84, %v20, inf
  %v149 = vsel %vm85, %v21, inf
  %v150 = vsel %vm86, %v22, inf
  %v151 = vsel %vm87, %v23, inf
  %v152 = vsel %vm88, %v24, inf
  %v153 = vsel %vm89, %v25, inf
  %v154 = vsel %vm90, %v26, inf
  %v155 = vsel %vm91, %v27, inf
  %v156 = vsel %vm92, %v28, inf
  %v157 = vsel %vm93, %v29, inf
  %158 = vmin.xlane.f32.xlu0 %v142
  %v159 = vpop.xlane.xlu0 %158
  %160 = vmin.xlane.f32.xlu0 %v143
  %v161 = vpop.xlane.xlu0 %160
  %162 = vmin.xlane.f32.xlu0 %v144
  %v163 = vpop.xlane.xlu0 %162
  %164 = vmin.xlane.f32.xlu0 %v145
  %v165 = vpop.xlane.xlu0 %164
  %166 = vmin.xlane.f32.xlu0 %v146
  %v167 = vpop.xlane.xlu0 %166
  %168 = vmin.xlane.f32.xlu0 %v147
  %v169 = vpop.xlane.xlu0 %168
  %170 = vmin.xlane.f32.xlu0 %v148
  %v171 = vpop.xlane.xlu0 %170
  %172 = vmin.xlane.f32.xlu0 %v149
  %v173 = vpop.xlane.xlu0 %172
  %174 = vmin.xlane.f32.xlu0 %v150
  %v175 = vpop.xlane.xlu0 %174
  %176 = vmin.xlane.f32.xlu0 %v151
  %v177 = vpop.xlane.xlu0 %176
  %178 = vmin.xlane.f32.xlu0 %v152
  %v179 = vpop.xlane.xlu0 %178
  %180 = vmin.xlane.f32.xlu0 %v153
  %v181 = vpop.xlane.xlu0 %180
  %182 = vmin.xlane.f32.xlu0 %v154
  %v183 = vpop.xlane.xlu0 %182
  %184 = vmin.xlane.f32.xlu0 %v155
  %v185 = vpop.xlane.xlu0 %184
  %186 = vmin.xlane.f32.xlu0 %v156
  %v187 = vpop.xlane.xlu0 %186
  %188 = vmin.xlane.f32.xlu0 %v157
  %v189 = vpop.xlane.xlu0 %188
  %vm190 = vcmask 7168
  %191 = vst.msk [vmem:[%s2] sm:$0xff] %vm190, %v111
  %192 = vst.msk [vmem:[%s2 + $0x8] sm:$0xff] %vm190, %v113
  %193 = vst.msk [vmem:[%s2 + $0x10] sm:$0xff] %vm190, %v115
  %194 = vst.msk [vmem:[%s2 + $0x18] sm:$0xff] %vm190, %v117
  %195 = vst.msk [vmem:[%s2 + $0x20] sm:$0xff] %vm190, %v119
  %196 = vst.msk [vmem:[%s2 + $0x28] sm:$0xff] %vm190, %v121
  %197 = vst.msk [vmem:[%s2 + $0x30] sm:$0xff] %vm190, %v123
  %198 = vst.msk [vmem:[%s2 + $0x38] sm:$0xff] %vm190, %v125
  %199 = vst.msk [vmem:[%s2 + $0x40] sm:$0xff] %vm190, %v127
  %200 = vst.msk [vmem:[%s2 + $0x48] sm:$0xff] %vm190, %v129
  %201 = vst.msk [vmem:[%s2 + $0x50] sm:$0xff] %vm190, %v131
  %202 = vst.msk [vmem:[%s2 + $0x58] sm:$0xff] %vm190, %v133
  %203 = vst.msk [vmem:[%s2 + $0x60] sm:$0xff] %vm190, %v135
  %204 = vst.msk [vmem:[%s2 + $0x68] sm:$0xff] %vm190, %v137
  %205 = vst.msk [vmem:[%s2 + $0x70] sm:$0xff] %vm190, %v139
  %206 = vst.msk [vmem:[%s2 + $0x78] sm:$0xff] %vm190, %v141
  %207 = vst.msk [vmem:[%s3] sm:$0xff] %vm190, %v159
  %208 = vst.msk [vmem:[%s3 + $0x8] sm:$0xff] %vm190, %v161
  %209 = vst.msk [vmem:[%s3 + $0x10] sm:$0xff] %vm190, %v163
  %210 = vst.msk [vmem:[%s3 + $0x18] sm:$0xff] %vm190, %v165
  %211 = vst.msk [vmem:[%s3 + $0x20] sm:$0xff] %vm190, %v167
  %212 = vst.msk [vmem:[%s3 + $0x28] sm:$0xff] %vm190, %v169
  %213 = vst.msk [vmem:[%s3 + $0x30] sm:$0xff] %vm190, %v171
  %214 = vst.msk [vmem:[%s3 + $0x38] sm:$0xff] %vm190, %v173
  %215 = vst.msk [vmem:[%s3 + $0x40] sm:$0xff] %vm190, %v175
  %216 = vst.msk [vmem:[%s3 + $0x48] sm:$0xff] %vm190, %v177
  %217 = vst.msk [vmem:[%s3 + $0x50] sm:$0xff] %vm190, %v179
  %218 = vst.msk [vmem:[%s3 + $0x58] sm:$0xff] %vm190, %v181
  %219 = vst.msk [vmem:[%s3 + $0x60] sm:$0xff] %vm190, %v183
  %220 = vst.msk [vmem:[%s3 + $0x68] sm:$0xff] %vm190, %v185
  %221 = vst.msk [vmem:[%s3 + $0x70] sm:$0xff] %vm190, %v187
  %222 = vst.msk [vmem:[%s3 + $0x78] sm:$0xff] %vm190, %v189
  %v223 = vsub.f32 %v111, %v159
  %v224 = vsub.f32 %v113, %v161
  %v225 = vsub.f32 %v115, %v163
  %v226 = vsub.f32 %v117, %v165
  %v227 = vsub.f32 %v119, %v167
  %v228 = vsub.f32 %v121, %v169
  %v229 = vsub.f32 %v123, %v171
  %v230 = vsub.f32 %v125, %v173
  %v231 = vsub.f32 %v127, %v175
  %v232 = vsub.f32 %v129, %v177
  %v233 = vsub.f32 %v131, %v179
  %v234 = vsub.f32 %v133, %v181
  %v235 = vsub.f32 %v135, %v183
  %v236 = vsub.f32 %v137, %v185
  %v237 = vsub.f32 %v139, %v187
  %v238 = vsub.f32 %v141, %v189
  %v239 = vadd.f32 %v223, 0.03
  %v240 = vadd.f32 %v224, 0.03
  %v241 = vadd.f32 %v225, 0.03
  %v242 = vadd.f32 %v226, 0.03
  %v243 = vadd.f32 %v227, 0.03
  %v244 = vadd.f32 %v228, 0.03
  %v245 = vadd.f32 %v229, 0.03
  %v246 = vadd.f32 %v230, 0.03
  %v247 = vadd.f32 %v231, 0.03
  %v248 = vadd.f32 %v232, 0.03
  %v249 = vadd.f32 %v233, 0.03
  %v250 = vadd.f32 %v234, 0.03
  %v251 = vadd.f32 %v235, 0.03
  %v252 = vadd.f32 %v236, 0.03
  %v253 = vadd.f32 %v237, 0.03
  %v254 = vadd.f32 %v238, 0.03
  %v255 = vmax.f32 %v239, 0.0
  %v256 = vmax.f32 %v240, 0.0
  %v257 = vmax.f32 %v241, 0.0
  %v258 = vmax.f32 %v242, 0.0
  %v259 = vmax.f32 %v243, 0.0
  %v260 = vmax.f32 %v244, 0.0
  %v261 = vmax.f32 %v245, 0.0
  %v262 = vmax.f32 %v246, 0.0
  %v263 = vmax.f32 %v247, 0.0
  %v264 = vmax.f32 %v248, 0.0
  %v265 = vmax.f32 %v249, 0.0
  %v266 = vmax.f32 %v250, 0.0
  %v267 = vmax.f32 %v251, 0.0
  %v268 = vmax.f32 %v252, 0.0
  %v269 = vmax.f32 %v253, 0.0
  %v270 = vmax.f32 %v254, 0.0
  %271 = vst.msk [vmem:[%s4] sm:$0xff] %vm190, %v255
  %272 = vst.msk [vmem:[%s4 + $0x8] sm:$0xff] %vm190, %v256
  %273 = vst.msk [vmem:[%s4 + $0x10] sm:$0xff] %vm190, %v257
  %274 = vst.msk [vmem:[%s4 + $0x18] sm:$0xff] %vm190, %v258
  %275 = vst.msk [vmem:[%s4 + $0x20] sm:$0xff] %vm190, %v259
  %276 = vst.msk [vmem:[%s4 + $0x28] sm:$0xff] %vm190, %v260
  %277 = vst.msk [vmem:[%s4 + $0x30] sm:$0xff] %vm190, %v261
  %278 = vst.msk [vmem:[%s4 + $0x38] sm:$0xff] %vm190, %v262
  %279 = vst.msk [vmem:[%s4 + $0x40] sm:$0xff] %vm190, %v263
  %280 = vst.msk [vmem:[%s4 + $0x48] sm:$0xff] %vm190, %v264
  %281 = vst.msk [vmem:[%s4 + $0x50] sm:$0xff] %vm190, %v265
  %282 = vst.msk [vmem:[%s4 + $0x58] sm:$0xff] %vm190, %v266
  %283 = vst.msk [vmem:[%s4 + $0x60] sm:$0xff] %vm190, %v267
  %284 = vst.msk [vmem:[%s4 + $0x68] sm:$0xff] %vm190, %v268
  %285 = vst.msk [vmem:[%s4 + $0x70] sm:$0xff] %vm190, %v269
  %286 = vst.msk [vmem:[%s4 + $0x78] sm:$0xff] %vm190, %v270
  // Predicated region
  $region10: #{rerank_loss_forward.13} parent=0 // pred_check
    _
  $region11: #{rerank_loss_forward.13} parent=0 // pred_check_branch
    %288 = sbr.rel (0) target = $region13
  $region12: #{rerank_loss_forward.13} parent=0 // pred_region
    _
  $region13: #{rerank_loss_forward.13} parent=0 // pred_fallthru
    _
  // Predicated region
  $region14: #{rerank_loss_forward.13} parent=0 // pred_check
    _
  $region15: #{rerank_loss_forward.13} parent=0 // pred_check_branch
    %290 = sbr.rel (0) target = $region17
  $region16: #{rerank_loss_forward.13} parent=0 // pred_region
    _
  $region17: #{rerank_loss_forward.13} parent=0 // pred_fallthru
    _
  // Predicated region
  $region18: #{rerank_loss_forward.13} parent=0 // pred_check
    _
  $region19: #{rerank_loss_forward.13} parent=0 // pred_check_branch
    %292 = sbr.rel (0) target = $region21
  $region20: #{rerank_loss_forward.13} parent=0 // pred_region
    _
  $region21: #{rerank_loss_forward.13} parent=0 // pred_fallthru
    _
  // Predicated region
  $region22: #{rerank_loss_forward.13} parent=0 // pred_check
    _
  $region23: #{rerank_loss_forward.13} parent=0 // pred_check_branch
    %294 = sbr.rel (0) target = $region25
  $region24: #{rerank_loss_forward.13} parent=0 // pred_region
    _
  $region25: #{rerank_loss_forward.13} parent=0 // pred_fallthru
    _
  // Predicated region
  $region26: #{rerank_loss_forward.13} parent=0 // pred_check
    _
  $region27: #{rerank_loss_forward.13} parent=0 // pred_check_branch
    %296 = sbr.rel (0) target = $region29
  $region28: #{rerank_loss_forward.13} parent=0 // pred_region
    _
  $region29: #{rerank_loss_forward.13} parent=0 // pred_fallthru
    _
  // Predicated region
  $region30: #{rerank_loss_forward.13} parent=0 // pred_check
    _
  $region31: #{rerank_loss_forward.13} parent=0 // pred_check_branch
    %298 = sbr.rel (0) target = $region33
  $region32: #{rerank_loss_forward.13} parent=0 // pred_region
    _
  $region33: #{rerank_loss_forward.13} parent=0 // pred_fallthru
    _

// kernel: rerank_loss_forward.12
$region0: #{rerank_loss_forward.12}
  #allocation0 [shape = 'u32[]', space=smem, size = 0x4, offset = 0x4, fixed_abs, tag = 'smem constant byte address 0x4 - core index']
  #allocation1 [shape = 'u32[72,128]{1,0:T(1,128)}', space=vmem, size = 0x9000, scoped, tag = 'internal scratch']
  #allocation2 [shape = 'f32[128,128]{1,0:T(8,128)}', space=vmem, size = 0x10000, scoped, tag = 'scratch operand']
  %s0 = inlined_call_operand.vmem [shape: f32[128,256], index: 0, kind: input, shape index: {}]
  %s1 = inlined_call_operand.vmem [shape: f32[128,256], index: 1, kind: input, shape index: {}]
  %s2 = inlined_call_operand.vmem [shape: f32[128,128], index: 2, kind: input, shape index: {}]
  %s3 = inlined_call_operand.vmem [shape: f32[128,128], index: 3, kind: output, shape index: {}]
  %s4 = sld [smem:[#allocation0]]
  $region37: #{rerank_loss_forward.12} parent=0
    _
  %s6 = ssub.s32 1, %s4
  %s7 = scalar_select 0, %s6, %s4
  // Predicated region
  $region2: #{rerank_loss_forward.12} parent=0 // pred_check
    _
  $region3: #{rerank_loss_forward.12} parent=0 // pred_check_branch
    %9 = sbr.rel (0) target = $region5
  $region4: #{rerank_loss_forward.12} parent=0 // pred_region
    _
  $region5: #{rerank_loss_forward.12} parent=0 // pred_fallthru
    _
  // Predicated region
  $region6: #{rerank_loss_forward.12} parent=0 // pred_check
    _
  $region7: #{rerank_loss_forward.12} parent=0 // pred_check_branch
    %11 = sbr.rel (0) target = $region9
  $region8: #{rerank_loss_forward.12} parent=0 // pred_region
    _
  $region9: #{rerank_loss_forward.12} parent=0 // pred_fallthru
    _
  // Predicated region
  $region10: #{rerank_loss_forward.12} parent=0 // pred_check
    _
  $region11: #{rerank_loss_forward.12} parent=0 // pred_check_branch
    %13 = sbr.rel (0) target = $region13
  $region12: #{rerank_loss_forward.12} parent=0 // pred_region
    _
  $region13: #{rerank_loss_forward.12} parent=0 // pred_fallthru
    _
  %p14 = scmp.eq.s32.totalorder 0, 0
  // Predicated region
  $region14: #{rerank_loss_forward.12} parent=0 // pred_check
    %p15 = pneg %p14
  $region15: #{rerank_loss_forward.12} parent=0 // pred_check_branch
    %17 = sbr.rel (%p15) target = $region17
  $region16: #{rerank_loss_forward.12} parent=0 // pred_region
    %18 = vst [vmem:[#allocation2] sm:$0xff] 0.0
    %19 = vst [vmem:[#allocation2 + $0x8] sm:$0xff] 0.0
    %20 = vst [vmem:[#allocation2 + $0x10] sm:$0xff] 0.0
    %21 = vst [vmem:[#allocation2 + $0x18] sm:$0xff] 0.0
    %22 = vst [vmem:[#allocation2 + $0x20] sm:$0xff] 0.0
    %23 = vst [vmem:[#allocation2 + $0x28] sm:$0xff] 0.0
    %24 = vst [vmem:[#allocation2 + $0x30] sm:$0xff] 0.0
    %25 = vst [vmem:[#allocation2 + $0x38] sm:$0xff] 0.0
    %26 = vst [vmem:[#allocation2 + $0x40] sm:$0xff] 0.0
    %27 = vst [vmem:[#allocation2 + $0x48] sm:$0xff] 0.0
    %28 = vst [vmem:[#allocation2 + $0x50] sm:$0xff] 0.0
    %29 = vst [vmem:[#allocation2 + $0x58] sm:$0xff] 0.0
    %30 = vst [vmem:[#allocation2 + $0x60] sm:$0xff] 0.0
    %31 = vst [vmem:[#allocation2 + $0x68] sm:$0xff] 0.0
    %32 = vst [vmem:[#allocation2 + $0x70] sm:$0xff] 0.0
    %33 = vst [vmem:[#allocation2 + $0x78] sm:$0xff] 0.0
  $region17: #{rerank_loss_forward.12} parent=0 // pred_fallthru
    _
  %v34 = vld [vmem:[%s1] sm:$0xff]
  %v35 = vld [vmem:[%s1 + $0x8] sm:$0xff]
  %v36 = vld [vmem:[%s1 + $0x10] sm:$0xff]
  %v37 = vld [vmem:[%s1 + $0x18] sm:$0xff]
  %v38 = vld [vmem:[%s1 + $0x20] sm:$0xff]
  %v39 = vld [vmem:[%s1 + $0x28] sm:$0xff]
  %v40 = vld [vmem:[%s1 + $0x30] sm:$0xff]
  %v41 = vld [vmem:[%s1 + $0x38] sm:$0xff]
  %v42 = vld [vmem:[%s1 + $0x40] sm:$0xff]
  %v43 = vld [vmem:[%s1 + $0x48] sm:$0xff]
  %v44 = vld [vmem:[%s1 + $0x50] sm:$0xff]
  %v45 = vld [vmem:[%s1 + $0x58] sm:$0xff]
  %v46 = vld [vmem:[%s1 + $0x60] sm:$0xff]
  %v47 = vld [vmem:[%s1 + $0x68] sm:$0xff]
  %v48 = vld [vmem:[%s1 + $0x70] sm:$0xff]
  %v49 = vld [vmem:[%s1 + $0x78] sm:$0xff]
  %v50 = vld [vmem:[%s1 + $0x80] sm:$0xff]
  %v51 = vld [vmem:[%s1 + $0x88] sm:$0xff]
  %v52 = vld [vmem:[%s1 + $0x90] sm:$0xff]
  %v53 = vld [vmem:[%s1 + $0x98] sm:$0xff]
  %v54 = vld [vmem:[%s1 + $0xa0] sm:$0xff]
  %v55 = vld [vmem:[%s1 + $0xa8] sm:$0xff]
  %v56 = vld [vmem:[%s1 + $0xb0] sm:$0xff]
  %v57 = vld [vmem:[%s1 + $0xb8] sm:$0xff]
  %v58 = vld [vmem:[%s1 + $0xc0] sm:$0xff]
  %v59 = vld [vmem:[%s1 + $0xc8] sm:$0xff]
  %v60 = vld [vmem:[%s1 + $0xd0] sm:$0xff]
  %v61 = vld [vmem:[%s1 + $0xd8] sm:$0xff]
  %v62 = vld [vmem:[%s1 + $0xe0] sm:$0xff]
  %v63 = vld [vmem:[%s1 + $0xe8] sm:$0xff]
  %v64 = vld [vmem:[%s1 + $0xf0] sm:$0xff]
  %v65 = vld [vmem:[%s1 + $0xf8] sm:$0xff]
  loop: start=0, step=1, limit=128
  $region18: #{rerank_loss_forward.12} parent=0 // loop_pre_header
    _
  $region19: #{rerank_loss_forward.12} parent=0 // loop_header
    %s67 = sphi 0, %s71
    %p68 = scmp.ge.s32.totalorder %s67, 128
  $region20: #{rerank_loss_forward.12} parent=0 // loop_header_branch
    %70 = sbr.rel (%p68) target = $region24
  $region21: #{rerank_loss_forward.12} parent=0 // loop_body
    %s72 = sshra.s32 %s67, 3
    %s73 = sand.u32 %s67, 7
    %s74 = sshra.s32 %s67, 3
    %s75 = sand.u32 %s67, 7
    %s76 = smul.u32 %s72, 2
    %s77 = smul.u32 %s76, 8
    %s78 = sadd.s32 %s77, %s75
    %s79 = scalar_lea.vmem %s0, %s78
    %v80 = vld [vmem:[%s79] ss:$8 sm:$0x3]
    %v82 = vperm.slane %v80, 0
    %v83 = vperm.slane %v80, 1
    %v86 = vmin.f32 %v82, %v34
    %v87 = vmin.f32 %v83, %v35
    %v88 = vmin.f32 %v82, %v36
    %v89 = vmin.f32 %v83, %v37
    %v90 = vmin.f32 %v82, %v38
    %v91 = vmin.f32 %v83, %v39
    %v92 = vmin.f32 %v82, %v40
    %v93 = vmin.f32 %v83, %v41
    %v94 = vmin.f32 %v82, %v42
    %v95 = vmin.f32 %v83, %v43
    %v96 = vmin.f32 %v82, %v44
    %v97 = vmin.f32 %v83, %v45
    %v98 = vmin.f32 %v82, %v46
    %v99 = vmin.f32 %v83, %v47
    %v100 = vmin.f32 %v82, %v48
    %v101 = vmin.f32 %v83, %v49
    %v102 = vmin.f32 %v82, %v50
    %v103 = vmin.f32 %v83, %v51
    %v104 = vmin.f32 %v82, %v52
    %v105 = vmin.f32 %v83, %v53
    %v106 = vmin.f32 %v82, %v54
    %v107 = vmin.f32 %v83, %v55
    %v108 = vmin.f32 %v82, %v56
    %v109 = vmin.f32 %v83, %v57
    %v110 = vmin.f32 %v82, %v58
    %v111 = vmin.f32 %v83, %v59
    %v112 = vmin.f32 %v82, %v60
    %v113 = vmin.f32 %v83, %v61
    %v114 = vmin.f32 %v82, %v62
    %v115 = vmin.f32 %v83, %v63
    %v116 = vmin.f32 %v82, %v64
    %v117 = vmin.f32 %v83, %v65
    %v118 = vadd.f32 %v86, %v87
    %119 = vadd.xlane.f32.xlu0 %v118
    %v120 = vpop.xlane.xlu0 %119
    %v121 = vadd.f32 %v88, %v89
    %122 = vadd.xlane.f32.xlu0 %v121
    %v123 = vpop.xlane.xlu0 %122
    %v124 = vadd.f32 %v90, %v91
    %125 = vadd.xlane.f32.xlu0 %v124
    %v126 = vpop.xlane.xlu0 %125
    %v127 = vadd.f32 %v92, %v93
    %128 = vadd.xlane.f32.xlu0 %v127
    %v129 = vpop.xlane.xlu0 %128
    %v130 = vadd.f32 %v94, %v95
    %131 = vadd.xlane.f32.xlu0 %v130
    %v132 = vpop.xlane.xlu0 %131
    %v133 = vadd.f32 %v96, %v97
    %134 = vadd.xlane.f32.xlu0 %v133
    %v135 = vpop.xlane.xlu0 %134
    %v136 = vadd.f32 %v98, %v99
    %137 = vadd.xlane.f32.xlu0 %v136
    %v138 = vpop.xlane.xlu0 %137
    %v139 = vadd.f32 %v100, %v101
    %140 = vadd.xlane.f32.xlu0 %v139
    %v141 = vpop.xlane.xlu0 %140
    %v142 = vadd.f32 %v102, %v103
    %143 = vadd.xlane.f32.xlu0 %v142
    %v144 = vpop.xlane.xlu0 %143
    %v145 = vadd.f32 %v104, %v105
    %146 = vadd.xlane.f32.xlu0 %v145
    %v147 = vpop.xlane.xlu0 %146
    %v148 = vadd.f32 %v106, %v107
    %149 = vadd.xlane.f32.xlu0 %v148
    %v150 = vpop.xlane.xlu0 %149
    %v151 = vadd.f32 %v108, %v109
    %152 = vadd.xlane.f32.xlu0 %v151
    %v153 = vpop.xlane.xlu0 %152
    %v154 = vadd.f32 %v110, %v111
    %155 = vadd.xlane.f32.xlu0 %v154
    %v156 = vpop.xlane.xlu0 %155
    %v157 = vadd.f32 %v112, %v113
    %158 = vadd.xlane.f32.xlu0 %v157
    %v159 = vpop.xlane.xlu0 %158
    %v160 = vadd.f32 %v114, %v115
    %161 = vadd.xlane.f32.xlu0 %v160
    %v162 = vpop.xlane.xlu0 %161
    %v163 = vadd.f32 %v116, %v117
    %164 = vadd.xlane.f32.xlu0 %v163
    %v165 = vpop.xlane.xlu0 %164
    %s166 = scalar_lea.vmem [#allocation2], %s67
    %v167 = vld [vmem:[%s166] sm:$0x1]
    %v184 = vlaneseq
    %v185 = vand.u32 %v184, 127
    %v186 = vperm.slane %v120, %v185
    %v187 = vadd.s32 %v185, 4294967288
    %v188 = vperm.slane %v123, %v187
    %vm189 = vcmask 130112
    %v190 = vsel %vm189, %v188, %v186
    %v191 = vadd.s32 %v185, 4294967280
    %v192 = vperm.slane %v126, %v191
    %vm193 = vcmask 195712
    %v194 = vsel %vm193, %v192, %v190
    %v195 = vadd.s32 %v185, 4294967272
    %v196 = vperm.slane %v129, %v195
    %vm197 = vcmask 261312
    %v198 = vsel %vm197, %v196, %v194
    %v199 = vadd.s32 %v185, 4294967264
    %v200 = vperm.slane %v132, %v199
    %vm201 = vcmask 326912
    %v202 = vsel %vm201, %v200, %v198
    %v203 = vadd.s32 %v185, 4294967256
    %v204 = vperm.slane %v135, %v203
    %vm205 = vcmask 392512
    %v206 = vsel %vm205, %v204, %v202
    %v207 = vadd.s32 %v185, 4294967248
    %v208 = vperm.slane %v138, %v207
    %vm209 = vcmask 458112
    %v210 = vsel %vm209, %v208, %v206
    %v211 = vadd.s32 %v185, 4294967240
    %v212 = vperm.slane %v141, %v211
    %vm213 = vcmask 523712
    %v214 = vsel %vm213, %v212, %v210
    %v215 = vadd.s32 %v185, 4294967232
    %v216 = vperm.slane %v144, %v215
    %vm217 = vcmask 589312
    %v218 = vsel %vm217, %v216, %v214
    %v219 = vadd.s32 %v185, 4294967224
    %v220 = vperm.slane %v147, %v219
    %vm221 = vcmask 654912
    %v222 = vsel %vm221, %v220, %v218
    %v223 = vadd.s32 %v185, 4294967216
    %v224 = vperm.slane %v150, %v223
    %vm225 = vcmask 720512
    %v226 = vsel %vm225, %v224, %v222
    %v227 = vadd.s32 %v185, 4294967208
    %v228 = vperm.slane %v153, %v227
    %vm229 = vcmask 786112
    %v230 = vsel %vm229, %v228, %v226
    %v231 = vadd.s32 %v185, 4294967200
    %v232 = vperm.slane %v156, %v231
    %vm233 = vcmask 851712
    %v234 = vsel %vm233, %v232, %v230
    %v235 = vadd.s32 %v185, 4294967192
    %v236 = vperm.slane %v159, %v235
    %vm237 = vcmask 917312
    %v238 = vsel %vm237, %v236, %v234
    %v239 = vadd.s32 %v185, 4294967184
    %v240 = vperm.slane %v162, %v239
    %vm241 = vcmask 982912
    %v242 = vsel %vm241, %v240, %v238
    %v243 = vadd.s32 %v185, 4294967176
    %v244 = vperm.slane %v165, %v243
    %vm245 = vcmask 1048512
    %v246 = vsel %vm245, %v244, %v242
    %v248 = vadd.f32 %v167, %v246
    %249 = vst [vmem:[%s166] sm:$0x1] %v248
  $region22: #{rerank_loss_forward.12} parent=0 // loop_footer
    %s71 = sadd.s32 1, %s67
  $region23: #{rerank_loss_forward.12} parent=0 // loop_footer_branch
    %66 = sbr.rel target = $region19
  $region24: #{rerank_loss_forward.12} parent=0 // loop_exit
    _
  // Predicated region
  $region25: #{rerank_loss_forward.12} parent=0 // pred_check
    %p250 = pneg %p14
  $region26: #{rerank_loss_forward.12} parent=0 // pred_check_branch
    %252 = sbr.rel (%p250) target = $region28
  $region27: #{rerank_loss_forward.12} parent=0 // pred_region
    %v253 = vld [vmem:[#allocation2] sm:$0xff]
    %v254 = vld [vmem:[#allocation2 + $0x8] sm:$0xff]
    %v255 = vld [vmem:[#allocation2 + $0x10] sm:$0xff]
    %v256 = vld [vmem:[#allocation2 + $0x18] sm:$0xff]
    %v257 = vld [vmem:[#allocation2 + $0x20] sm:$0xff]
    %v258 = vld [vmem:[#allocation2 + $0x28] sm:$0xff]
    %v259 = vld [vmem:[#allocation2 + $0x30] sm:$0xff]
    %v260 = vld [vmem:[#allocation2 + $0x38] sm:$0xff]
    %v261 = vld [vmem:[#allocation2 + $0x40] sm:$0xff]
    %v262 = vld [vmem:[#allocation2 + $0x48] sm:$0xff]
    %v263 = vld [vmem:[#allocation2 + $0x50] sm:$0xff]
    %v264 = vld [vmem:[#allocation2 + $0x58] sm:$0xff]
    %v265 = vld [vmem:[#allocation2 + $0x60] sm:$0xff]
    %v266 = vld [vmem:[#allocation2 + $0x68] sm:$0xff]
    %v267 = vld [vmem:[#allocation2 + $0x70] sm:$0xff]
    %v268 = vld [vmem:[#allocation2 + $0x78] sm:$0xff]
    %v269 = vsub.f32 2.0, %v253
    %v270 = vsub.f32 2.0, %v254
    %v271 = vsub.f32 2.0, %v255
    %v272 = vsub.f32 2.0, %v256
    %v273 = vsub.f32 2.0, %v257
    %v274 = vsub.f32 2.0, %v258
    %v275 = vsub.f32 2.0, %v259
    %v276 = vsub.f32 2.0, %v260
    %v277 = vsub.f32 2.0, %v261
    %v278 = vsub.f32 2.0, %v262
    %v279 = vsub.f32 2.0, %v263
    %v280 = vsub.f32 2.0, %v264
    %v281 = vsub.f32 2.0, %v265
    %v282 = vsub.f32 2.0, %v266
    %v283 = vsub.f32 2.0, %v267
    %v284 = vsub.f32 2.0, %v268
    %v285 = vrcp.pop %v269
    %v286 = vmul.f32 %v269, %v285
    %v287 = vsub.f32 1.0, %v286
    %v288 = vmul.f32 %v285, %v287
    %v289 = vadd.f32 %v285, %v288
    %vm290 = vweird.f32 %v269
    %vm291 = vweird.f32 %v285
    %vm292 = vmor %vm290, %vm291
    %v293 = vsel %vm292, %v285, %v289
    %v294 = vand.u32 2147483647, %v269
    %vm295 = vcmp.eq.f32.partialorder %v294, 8.507059e+37
    %v296 = vand.u32 %v269, 2147483648
    %v297 = vor.u32 1.1754944e-38, %v296
    %v298 = vsel %vm295, %v297, %v293
    %v299 = vmul.f32 %v253, %v298
    %v300 = vrcp.pop %v270
    %v301 = vmul.f32 %v270, %v300
    %v302 = vsub.f32 1.0, %v301
    %v303 = vmul.f32 %v300, %v302
    %v304 = vadd.f32 %v300, %v303
    %vm305 = vweird.f32 %v270
    %vm306 = vweird.f32 %v300
    %vm307 = vmor %vm305, %vm306
    %v308 = vsel %vm307, %v300, %v304
    %v309 = vand.u32 2147483647, %v270
    %vm310 = vcmp.eq.f32.partialorder %v309, 8.507059e+37
    %v311 = vand.u32 %v270, 2147483648
    %v312 = vor.u32 1.1754944e-38, %v311
    %v313 = vsel %vm310, %v312, %v308
    %v314 = vmul.f32 %v254, %v313
    %v315 = vrcp.pop %v271
    %v316 = vmul.f32 %v271, %v315
    %v317 = vsub.f32 1.0, %v316
    %v318 = vmul.f32 %v315, %v317
    %v319 = vadd.f32 %v315, %v318
    %vm320 = vweird.f32 %v271
    %vm321 = vweird.f32 %v315
    %vm322 = vmor %vm320, %vm321
    %v323 = vsel %vm322, %v315, %v319
    %v324 = vand.u32 2147483647, %v271
    %vm325 = vcmp.eq.f32.partialorder %v324, 8.507059e+37
    %v326 = vand.u32 %v271, 2147483648
    %v327 = vor.u32 1.1754944e-38, %v326
    %v328 = vsel %vm325, %v327, %v323
    %v329 = vmul.f32 %v255, %v328
    %v330 = vrcp.pop %v272
    %v331 = vmul.f32 %v272, %v330
    %v332 = vsub.f32 1.0, %v331
    %v333 = vmul.f32 %v330, %v332
    %v334 = vadd.f32 %v330, %v333
    %vm335 = vweird.f32 %v272
    %vm336 = vweird.f32 %v330
    %vm337 = vmor %vm335, %vm336
    %v338 = vsel %vm337, %v330, %v334
    %v339 = vand.u32 2147483647, %v272
    %vm340 = vcmp.eq.f32.partialorder %v339, 8.507059e+37
    %v341 = vand.u32 %v272, 2147483648
    %v342 = vor.u32 1.1754944e-38, %v341
    %v343 = vsel %vm340, %v342, %v338
    %v344 = vmul.f32 %v256, %v343
    %v345 = vrcp.pop %v273
    %v346 = vmul.f32 %v273, %v345
    %v347 = vsub.f32 1.0, %v346
    %v348 = vmul.f32 %v345, %v347
    %v349 = vadd.f32 %v345, %v348
    %vm350 = vweird.f32 %v273
    %vm351 = vweird.f32 %v345
    %vm352 = vmor %vm350, %vm351
    %v353 = vsel %vm352, %v345, %v349
    %v354 = vand.u32 2147483647, %v273
    %vm355 = vcmp.eq.f32.partialorder %v354, 8.507059e+37
    %v356 = vand.u32 %v273, 2147483648
    %v357 = vor.u32 1.1754944e-38, %v356
    %v358 = vsel %vm355, %v357, %v353
    %v359 = vmul.f32 %v257, %v358
    %v360 = vrcp.pop %v274
    %v361 = vmul.f32 %v274, %v360
    %v362 = vsub.f32 1.0, %v361
    %v363 = vmul.f32 %v360, %v362
    %v364 = vadd.f32 %v360, %v363
    %vm365 = vweird.f32 %v274
    %vm366 = vweird.f32 %v360
    %vm367 = vmor %vm365, %vm366
    %v368 = vsel %vm367, %v360, %v364
    %v369 = vand.u32 2147483647, %v274
    %vm370 = vcmp.eq.f32.partialorder %v369, 8.507059e+37
    %v371 = vand.u32 %v274, 2147483648
    %v372 = vor.u32 1.1754944e-38, %v371
    %v373 = vsel %vm370, %v372, %v368
    %v374 = vmul.f32 %v258, %v373
    %v375 = vrcp.pop %v275
    %v376 = vmul.f32 %v275, %v375
    %v377 = vsub.f32 1.0, %v376
    %v378 = vmul.f32 %v375, %v377
    %v379 = vadd.f32 %v375, %v378
    %vm380 = vweird.f32 %v275
    %vm381 = vweird.f32 %v375
    %vm382 = vmor %vm380, %vm381
    %v383 = vsel %vm382, %v375, %v379
    %v384 = vand.u32 2147483647, %v275
    %vm385 = vcmp.eq.f32.partialorder %v384, 8.507059e+37
    %v386 = vand.u32 %v275, 2147483648
    %v387 = vor.u32 1.1754944e-38, %v386
    %v388 = vsel %vm385, %v387, %v383
    %v389 = vmul.f32 %v259, %v388
    %v390 = vrcp.pop %v276
    %v391 = vmul.f32 %v276, %v390
    %v392 = vsub.f32 1.0, %v391
    %v393 = vmul.f32 %v390, %v392
    %v394 = vadd.f32 %v390, %v393
    %vm395 = vweird.f32 %v276
    %vm396 = vweird.f32 %v390
    %vm397 = vmor %vm395, %vm396
    %v398 = vsel %vm397, %v390, %v394
    %v399 = vand.u32 2147483647, %v276
    %vm400 = vcmp.eq.f32.partialorder %v399, 8.507059e+37
    %v401 = vand.u32 %v276, 2147483648
    %v402 = vor.u32 1.1754944e-38, %v401
    %v403 = vsel %vm400, %v402, %v398
    %v404 = vmul.f32 %v260, %v403
    %v405 = vrcp.pop %v277
    %v406 = vmul.f32 %v277, %v405
    %v407 = vsub.f32 1.0, %v406
    %v408 = vmul.f32 %v405, %v407
    %v409 = vadd.f32 %v405, %v408
    %vm410 = vweird.f32 %v277
    %vm411 = vweird.f32 %v405
    %vm412 = vmor %vm410, %vm411
    %v413 = vsel %vm412, %v405, %v409
    %v414 = vand.u32 2147483647, %v277
    %vm415 = vcmp.eq.f32.partialorder %v414, 8.507059e+37
    %v416 = vand.u32 %v277, 2147483648
    %v417 = vor.u32 1.1754944e-38, %v416
    %v418 = vsel %vm415, %v417, %v413
    %v419 = vmul.f32 %v261, %v418
    %v420 = vrcp.pop %v278
    %v421 = vmul.f32 %v278, %v420
    %v422 = vsub.f32 1.0, %v421
    %v423 = vmul.f32 %v420, %v422
    %v424 = vadd.f32 %v420, %v423
    %vm425 = vweird.f32 %v278
    %vm426 = vweird.f32 %v420
    %vm427 = vmor %vm425, %vm426
    %v428 = vsel %vm427, %v420, %v424
    %v429 = vand.u32 2147483647, %v278
    %vm430 = vcmp.eq.f32.partialorder %v429, 8.507059e+37
    %v431 = vand.u32 %v278, 2147483648
    %v432 = vor.u32 1.1754944e-38, %v431
    %v433 = vsel %vm430, %v432, %v428
    %v434 = vmul.f32 %v262, %v433
    %v435 = vrcp.pop %v279
    %v436 = vmul.f32 %v279, %v435
    %v437 = vsub.f32 1.0, %v436
    %v438 = vmul.f32 %v435, %v437
    %v439 = vadd.f32 %v435, %v438
    %vm440 = vweird.f32 %v279
    %vm441 = vweird.f32 %v435
    %vm442 = vmor %vm440, %vm441
    %v443 = vsel %vm442, %v435, %v439
    %v444 = vand.u32 2147483647, %v279
    %vm445 = vcmp.eq.f32.partialorder %v444, 8.507059e+37
    %v446 = vand.u32 %v279, 2147483648
    %v447 = vor.u32 1.1754944e-38, %v446
    %v448 = vsel %vm445, %v447, %v443
    %v449 = vmul.f32 %v263, %v448
    %v450 = vrcp.pop %v280
    %v451 = vmul.f32 %v280, %v450
    %v452 = vsub.f32 1.0, %v451
    %v453 = vmul.f32 %v450, %v452
    %v454 = vadd.f32 %v450, %v453
    %vm455 = vweird.f32 %v280
    %vm456 = vweird.f32 %v450
    %vm457 = vmor %vm455, %vm456
    %v458 = vsel %vm457, %v450, %v454
    %v459 = vand.u32 2147483647, %v280
    %vm460 = vcmp.eq.f32.partialorder %v459, 8.507059e+37
    %v461 = vand.u32 %v280, 2147483648
    %v462 = vor.u32 1.1754944e-38, %v461
    %v463 = vsel %vm460, %v462, %v458
    %v464 = vmul.f32 %v264, %v463
    %v465 = vrcp.pop %v281
    %v466 = vmul.f32 %v281, %v465
    %v467 = vsub.f32 1.0, %v466
    %v468 = vmul.f32 %v465, %v467
    %v469 = vadd.f32 %v465, %v468
    %vm470 = vweird.f32 %v281
    %vm471 = vweird.f32 %v465
    %vm472 = vmor %vm470, %vm471
    %v473 = vsel %vm472, %v465, %v469
    %v474 = vand.u32 2147483647, %v281
    %vm475 = vcmp.eq.f32.partialorder %v474, 8.507059e+37
    %v476 = vand.u32 %v281, 2147483648
    %v477 = vor.u32 1.1754944e-38, %v476
    %v478 = vsel %vm475, %v477, %v473
    %v479 = vmul.f32 %v265, %v478
    %v480 = vrcp.pop %v282
    %v481 = vmul.f32 %v282, %v480
    %v482 = vsub.f32 1.0, %v481
    %v483 = vmul.f32 %v480, %v482
    %v484 = vadd.f32 %v480, %v483
    %vm485 = vweird.f32 %v282
    %vm486 = vweird.f32 %v480
    %vm487 = vmor %vm485, %vm486
    %v488 = vsel %vm487, %v480, %v484
    %v489 = vand.u32 2147483647, %v282
    %vm490 = vcmp.eq.f32.partialorder %v489, 8.507059e+37
    %v491 = vand.u32 %v282, 2147483648
    %v492 = vor.u32 1.1754944e-38, %v491
    %v493 = vsel %vm490, %v492, %v488
    %v494 = vmul.f32 %v266, %v493
    %v495 = vrcp.pop %v283
    %v496 = vmul.f32 %v283, %v495
    %v497 = vsub.f32 1.0, %v496
    %v498 = vmul.f32 %v495, %v497
    %v499 = vadd.f32 %v495, %v498
    %vm500 = vweird.f32 %v283
    %vm501 = vweird.f32 %v495
    %vm502 = vmor %vm500, %vm501
    %v503 = vsel %vm502, %v495, %v499
    %v504 = vand.u32 2147483647, %v283
    %vm505 = vcmp.eq.f32.partialorder %v504, 8.507059e+37
    %v506 = vand.u32 %v283, 2147483648
    %v507 = vor.u32 1.1754944e-38, %v506
    %v508 = vsel %vm505, %v507, %v503
    %v509 = vmul.f32 %v267, %v508
    %v510 = vrcp.pop %v284
    %v511 = vmul.f32 %v284, %v510
    %v512 = vsub.f32 1.0, %v511
    %v513 = vmul.f32 %v510, %v512
    %v514 = vadd.f32 %v510, %v513
    %vm515 = vweird.f32 %v284
    %vm516 = vweird.f32 %v510
    %vm517 = vmor %vm515, %vm516
    %v518 = vsel %vm517, %v510, %v514
    %v519 = vand.u32 2147483647, %v284
    %vm520 = vcmp.eq.f32.partialorder %v519, 8.507059e+37
    %v521 = vand.u32 %v284, 2147483648
    %v522 = vor.u32 1.1754944e-38, %v521
    %v523 = vsel %vm520, %v522, %v518
    %v524 = vmul.f32 %v268, %v523
    %v525 = vsub.f32 1.0, %v299
    %v526 = vsub.f32 1.0, %v314
    %v527 = vsub.f32 1.0, %v329
    %v528 = vsub.f32 1.0, %v344
    %v529 = vsub.f32 1.0, %v359
    %v530 = vsub.f32 1.0, %v374
    %v531 = vsub.f32 1.0, %v389
    %v532 = vsub.f32 1.0, %v404
    %v533 = vsub.f32 1.0, %v419
    %v534 = vsub.f32 1.0, %v434
    %v535 = vsub.f32 1.0, %v449
    %v536 = vsub.f32 1.0, %v464
    %v537 = vsub.f32 1.0, %v479
    %v538 = vsub.f32 1.0, %v494
    %v539 = vsub.f32 1.0, %v509
    %v540 = vsub.f32 1.0, %v524
    %v541 = vmul.f32 %v525, 0.7
    %v542 = vmul.f32 %v526, 0.7
    %v543 = vmul.f32 %v527, 0.7
    %v544 = vmul.f32 %v528, 0.7
    %v545 = vmul.f32 %v529, 0.7
    %v546 = vmul.f32 %v530, 0.7
    %v547 = vmul.f32 %v531, 0.7
    %v548 = vmul.f32 %v532, 0.7
    %v549 = vmul.f32 %v533, 0.7
    %v550 = vmul.f32 %v534, 0.7
    %v551 = vmul.f32 %v535, 0.7
    %v552 = vmul.f32 %v536, 0.7
    %v553 = vmul.f32 %v537, 0.7
    %v554 = vmul.f32 %v538, 0.7
    %v555 = vmul.f32 %v539, 0.7
    %v556 = vmul.f32 %v540, 0.7
    %v557 = vld [vmem:[%s2] sm:$0xff]
    %v558 = vld [vmem:[%s2 + $0x8] sm:$0xff]
    %v559 = vld [vmem:[%s2 + $0x10] sm:$0xff]
    %v560 = vld [vmem:[%s2 + $0x18] sm:$0xff]
    %v561 = vld [vmem:[%s2 + $0x20] sm:$0xff]
    %v562 = vld [vmem:[%s2 + $0x28] sm:$0xff]
    %v563 = vld [vmem:[%s2 + $0x30] sm:$0xff]
    %v564 = vld [vmem:[%s2 + $0x38] sm:$0xff]
    %v565 = vld [vmem:[%s2 + $0x40] sm:$0xff]
    %v566 = vld [vmem:[%s2 + $0x48] sm:$0xff]
    %v567 = vld [vmem:[%s2 + $0x50] sm:$0xff]
    %v568 = vld [vmem:[%s2 + $0x58] sm:$0xff]
    %v569 = vld [vmem:[%s2 + $0x60] sm:$0xff]
    %v570 = vld [vmem:[%s2 + $0x68] sm:$0xff]
    %v571 = vld [vmem:[%s2 + $0x70] sm:$0xff]
    %v572 = vld [vmem:[%s2 + $0x78] sm:$0xff]
    %v573 = vmul.f32 %v557, 0.3
    %v574 = vmul.f32 %v558, 0.3
    %v575 = vmul.f32 %v559, 0.3
    %v576 = vmul.f32 %v560, 0.3
    %v577 = vmul.f32 %v561, 0.3
    %v578 = vmul.f32 %v562, 0.3
    %v579 = vmul.f32 %v563, 0.3
    %v580 = vmul.f32 %v564, 0.3
    %v581 = vmul.f32 %v565, 0.3
    %v582 = vmul.f32 %v566, 0.3
    %v583 = vmul.f32 %v567, 0.3
    %v584 = vmul.f32 %v568, 0.3
    %v585 = vmul.f32 %v569, 0.3
    %v586 = vmul.f32 %v570, 0.3
    %v587 = vmul.f32 %v571, 0.3
    %v588 = vmul.f32 %v572, 0.3
    %v589 = vadd.f32 %v541, %v573
    %v590 = vadd.f32 %v542, %v574
    %v591 = vadd.f32 %v543, %v575
    %v592 = vadd.f32 %v544, %v576
    %v593 = vadd.f32 %v545, %v577
    %v594 = vadd.f32 %v546, %v578
    %v595 = vadd.f32 %v547, %v579
    %v596 = vadd.f32 %v548, %v580
    %v597 = vadd.f32 %v549, %v581
    %v598 = vadd.f32 %v550, %v582
    %v599 = vadd.f32 %v551, %v583
    %v600 = vadd.f32 %v552, %v584
    %v601 = vadd.f32 %v553, %v585
    %v602 = vadd.f32 %v554, %v586
    %v603 = vadd.f32 %v555, %v587
    %v604 = vadd.f32 %v556, %v588
    %605 = vst [vmem:[%s3] sm:$0xff] %v589
    %606 = vst [vmem:[%s3 + $0x8] sm:$0xff] %v590
    %607 = vst [vmem:[%s3 + $0x10] sm:$0xff] %v591
    %608 = vst [vmem:[%s3 + $0x18] sm:$0xff] %v592
    %609 = vst [vmem:[%s3 + $0x20] sm:$0xff] %v593
    %610 = vst [vmem:[%s3 + $0x28] sm:$0xff] %v594
    %611 = vst [vmem:[%s3 + $0x30] sm:$0xff] %v595
    %612 = vst [vmem:[%s3 + $0x38] sm:$0xff] %v596
    %613 = vst [vmem:[%s3 + $0x40] sm:$0xff] %v597
    %614 = vst [vmem:[%s3 + $0x48] sm:$0xff] %v598
    %615 = vst [vmem:[%s3 + $0x50] sm:$0xff] %v599
    %616 = vst [vmem:[%s3 + $0x58] sm:$0xff] %v600
    %617 = vst [vmem:[%s3 + $0x60] sm:$0xff] %v601
    %618 = vst [vmem:[%s3 + $0x68] sm:$0xff] %v602
    %619 = vst [vmem:[%s3 + $0x70] sm:$0xff] %v603
    %620 = vst [vmem:[%s3 + $0x78] sm:$0xff] %v604
  $region28: #{rerank_loss_forward.12} parent=0 // pred_fallthru
    _
  // Predicated region
  $region29: #{rerank_loss_forward.12} parent=0 // pred_check
    _
  $region30: #{rerank_loss_forward.12} parent=0 // pred_check_branch
    %622 = sbr.rel (0) target = $region32
  $region31: #{rerank_loss_forward.12} parent=0 // pred_region
    _
  $region32: #{rerank_loss_forward.12} parent=0 // pred_fallthru
    _
  // Predicated region
  $region33: #{rerank_loss_forward.12} parent=0 // pred_check
    _
  $region34: #{rerank_loss_forward.12} parent=0 // pred_check_branch
    %624 = sbr.rel (0) target = $region36
  $region35: #{rerank_loss_forward.12} parent=0 // pred_region
    _
  $region36: #{rerank_loss_forward.12} parent=0 // pred_fallthru
    _

</llo_original>
